<compile_context>
chip_gen: v6e
topology: v6e:2x2x1
jax: 0.10.0
libtpu: 0.0.40
codegen_flags: <defaults>
</compile_context>

<pallas_src>
import jax
import jax.numpy as jnp
from jax.experimental import pallas as pl
from jax.experimental.pallas import tpu as pltpu


def gru_kernel(x_ref,
               wih0_ref, whh0_ref, b0_ref, bhh0n_ref,
               wih1_ref, whh1_ref, b1_ref, bhh1n_ref,
               wlin_ref, blin_ref,
               out_ref):
    S = x_ref.shape[0]
    H = whh0_ref.shape[0]

    # Hoisted layer-0 input projection for ALL time steps (one matmul).
    # b0 already contains bih0 + bhh0 for the r/z columns and bih0_n for n.
    gx0_all = (jnp.dot(x_ref[...], wih0_ref[...],
                       preferred_element_type=jnp.float32) + b0_ref[...])

    whh0 = whh0_ref[...]
    wih1 = wih1_ref[...]
    whh1 = whh1_ref[...]
    b1 = b1_ref[...]
    bhh0n = bhh0n_ref[...]
    bhh1n = bhh1n_ref[...]

    h1 = jnp.zeros((1, H), jnp.float32)
    h2 = jnp.zeros((1, H), jnp.float32)
    outs = []

    # Static unrolled loop over time (S is small and known at trace time).
    for t in range(S):
        # ---- layer 0: only the h-dependent matmul remains in the loop ----
        gh0 = jnp.dot(h1, whh0, preferred_element_type=jnp.float32)
        gx0 = gx0_all[t:t + 1, :]
        r0 = jax.nn.sigmoid(gx0[:, :H] + gh0[:, :H])
        z0 = jax.nn.sigmoid(gx0[:, H:2 * H] + gh0[:, H:2 * H])
        n0 = jnp.tanh(gx0[:, 2 * H:] + r0 * (gh0[:, 2 * H:] + bhh0n))
        h1 = (1.0 - z0) * n0 + z0 * h1

        # ---- layer 1 ----
        gx1 = jnp.dot(h1, wih1, preferred_element_type=jnp.float32) + b1
        gh1 = jnp.dot(h2, whh1, preferred_element_type=jnp.float32)
        r1 = jax.nn.sigmoid(gx1[:, :H] + gh1[:, :H])
        z1 = jax.nn.sigmoid(gx1[:, H:2 * H] + gh1[:, H:2 * H])
        n1 = jnp.tanh(gx1[:, 2 * H:] + r1 * (gh1[:, 2 * H:] + bhh1n))
        h2 = (1.0 - z1) * n1 + z1 * h2

        outs.append(h2)

    # One head matmul + one output store for the whole sequence.
    h2_all = jnp.concatenate(outs, axis=0)                    # (S, H)
    out_ref[...] = (jnp.dot(h2_all, wlin_ref[...],
                            preferred_element_type=jnp.float32)
                    + blin_ref[...])


@jax.jit
def gru_forward(sequences, params):
    """sequences: (seq_len, batch, n_features) f32 -> (seq_len, y_length) f32."""
    S, B, F = sequences.shape
    H = params["whh0"].shape[0]
    Y = params["wlin"].shape[1]

    # `lstm_out[:, -1]` (batch_first=False) uses only the last batch row, and
    # GRU batch rows are independent -> run the recurrence for that row only.
    x_last = sequences[:, B - 1, :]                            # (S, F)

    # Pre-combine biases: r/z gates use bih+bhh directly; bhh_n stays separate
    # because it lives inside the r*(...) term.
    def comb(bih, bhh):
        return jnp.concatenate(
            [bih[:, :2 * H] + bhh[:, :2 * H], bih[:, 2 * H:]], axis=1)

    b0_comb = comb(params["bih0"], params["bhh0"])
    b1_comb = comb(params["bih1"], params["bhh1"])
    bhh0_n = params["bhh0"][:, 2 * H:]
    bhh1_n = params["bhh1"][:, 2 * H:]

    vmem = pl.BlockSpec(memory_space=pltpu.MemorySpace.VMEM)   # whole array in VMEM

    return pl.pallas_call(
        gru_kernel,
        out_shape=jax.ShapeDtypeStruct((S, Y), jnp.float32),
        in_specs=[vmem] * 11,
        out_specs=vmem,
    )(x_last,
      params["wih0"], params["whh0"], b0_comb, bhh0_n,
      params["wih1"], params["whh1"], b1_comb, bhh1_n,
      params["wlin"], params["blin"])


def gru_reference(sequences, params):
    """Pure-JAX reference of the exact PyTorch forward."""
    S, B, F = sequences.shape
    H = params["whh0"].shape[0]

    def cell(x, h, wih, whh, bih, bhh):
        gx = x @ wih + bih
        gh = h @ whh + bhh
        r = jax.nn.sigmoid(gx[:, :H] + gh[:, :H])
        z = jax.nn.sigmoid(gx[:, H:2 * H] + gh[:, H:2 * H])
        n = jnp.tanh(gx[:, 2 * H:] + r * gh[:, 2 * H:])
        return (1.0 - z) * n + z * h

    h1 = jnp.zeros((B, H), jnp.float32)
    h2 = jnp.zeros((B, H), jnp.float32)
    outs = []
    for t in range(S):
        h1 = cell(sequences[t], h1, params["wih0"], params["whh0"],
                  params["bih0"], params["bhh0"])
        h2 = cell(h1, h2, params["wih1"], params["whh1"],
                  params["bih1"], params["bhh1"])
        outs.append(h2)
    lstm_out = jnp.stack(outs, axis=0)          # (S, B, H)
    last_time_step = lstm_out[:, -1]            # (S, H)  -- last BATCH element
    return last_time_step @ params["wlin"] + params["blin"]


def init_params(key, n_features, n_hidden, y_length):
    """Deterministic uniform(-1/sqrt(H), 1/sqrt(H)) init, PyTorch-style params
    (stored transposed so the math is x @ W)."""
    H = n_hidden
    bound = 1.0 / jnp.sqrt(jnp.float32(H))
    ks = jax.random.split(key, 11)
    u = lambda k, shape: jax.random.uniform(k, shape, jnp.float32, -bound, bound)
    return {
        "wih0": u(ks[0], (n_features, 3 * H)),
        "whh0": u(ks[1], (H, 3 * H)),
        "bih0": u(ks[2], (1, 3 * H)),
        "bhh0": u(ks[3], (1, 3 * H)),
        "wih1": u(ks[4], (H, 3 * H)),
        "whh1": u(ks[5], (H, 3 * H)),
        "bih1": u(ks[6], (1, 3 * H)),
        "bhh1": u(ks[7], (1, 3 * H)),
        "wlin": u(ks[8], (H, y_length)),
        "blin": u(ks[9], (1, y_length)),
    }


if __name__ == "__main__":
    n_features, n_hidden, seq_len, y_length = 4, 32, 8, 6
    batch = 2

    key = jax.random.PRNGKey(0)
    k_x, k_p = jax.random.split(key)
    sequences = jax.random.normal(k_x, (seq_len, batch, n_features), jnp.float32)
    params = init_params(k_p, n_features, n_hidden, y_length)

    y_pred = jax.block_until_ready(gru_forward(sequences, params))
    y_ref = gru_reference(sequences, params)

    assert y_pred.shape == (seq_len, y_length)
    assert jnp.allclose(y_pred, y_ref, atol=1e-5, rtol=1e-5), (
        "Pallas kernel mismatch vs reference")
    print("KERNEL_OK")
</pallas_src>

<mosaic_0001>
module attributes {stable_mosaic.version = 11 : i64} {
  func.func @gru_kernel(%arg0: memref<8x4xf32, #tpu.memory_space<vmem>>, %arg1: memref<4x96xf32, #tpu.memory_space<vmem>>, %arg2: memref<32x96xf32, #tpu.memory_space<vmem>>, %arg3: memref<1x96xf32, #tpu.memory_space<vmem>>, %arg4: memref<1x32xf32, #tpu.memory_space<vmem>>, %arg5: memref<32x96xf32, #tpu.memory_space<vmem>>, %arg6: memref<32x96xf32, #tpu.memory_space<vmem>>, %arg7: memref<1x96xf32, #tpu.memory_space<vmem>>, %arg8: memref<1x32xf32, #tpu.memory_space<vmem>>, %arg9: memref<32x6xf32, #tpu.memory_space<vmem>>, %arg10: memref<1x6xf32, #tpu.memory_space<vmem>>, %arg11: memref<8x6xf32, #tpu.memory_space<vmem>>) attributes {dimension_semantics = [], scalar_prefetch = 0 : i64, scratch_operands = 0 : i64, tpu.core_type = #tpu.core_type<tc>} {
    %c0 = arith.constant 0 : index
    %c0_0 = arith.constant 0 : index
    %0 = vector.load %arg0[%c0, %c0_0] : memref<8x4xf32, #tpu.memory_space<vmem>>, vector<8x4xf32>
    %c0_1 = arith.constant 0 : index
    %c0_2 = arith.constant 0 : index
    %1 = vector.load %arg1[%c0_1, %c0_2] : memref<4x96xf32, #tpu.memory_space<vmem>>, vector<4x96xf32>
    %cst = arith.constant dense<0.000000e+00> : vector<8x96xf32>
    %2 = tpu.matmul %0, %1, %cst {dimension_numbers = #tpu.dot_dimension_numbers<[1], [0], [0], [1], [0, 0, 1, 1], [], []>} : vector<8x4xf32>, vector<4x96xf32>, vector<8x96xf32> -> vector<8x96xf32>
    %c0_3 = arith.constant 0 : index
    %c0_4 = arith.constant 0 : index
    %3 = vector.load %arg3[%c0_3, %c0_4] : memref<1x96xf32, #tpu.memory_space<vmem>>, vector<1x96xf32>
    %4 = vector.broadcast %3 : vector<1x96xf32> to vector<8x96xf32>
    %5 = arith.addf %2, %4 : vector<8x96xf32>
    %c0_5 = arith.constant 0 : index
    %c0_6 = arith.constant 0 : index
    %6 = vector.load %arg2[%c0_5, %c0_6] : memref<32x96xf32, #tpu.memory_space<vmem>>, vector<32x96xf32>
    %c0_7 = arith.constant 0 : index
    %c0_8 = arith.constant 0 : index
    %7 = vector.load %arg5[%c0_7, %c0_8] : memref<32x96xf32, #tpu.memory_space<vmem>>, vector<32x96xf32>
    %c0_9 = arith.constant 0 : index
    %c0_10 = arith.constant 0 : index
    %8 = vector.load %arg6[%c0_9, %c0_10] : memref<32x96xf32, #tpu.memory_space<vmem>>, vector<32x96xf32>
    %c0_11 = arith.constant 0 : index
    %c0_12 = arith.constant 0 : index
    %9 = vector.load %arg7[%c0_11, %c0_12] : memref<1x96xf32, #tpu.memory_space<vmem>>, vector<1x96xf32>
    %c0_13 = arith.constant 0 : index
    %c0_14 = arith.constant 0 : index
    %10 = vector.load %arg4[%c0_13, %c0_14] : memref<1x32xf32, #tpu.memory_space<vmem>>, vector<1x32xf32>
    %c0_15 = arith.constant 0 : index
    %c0_16 = arith.constant 0 : index
    %11 = vector.load %arg8[%c0_15, %c0_16] : memref<1x32xf32, #tpu.memory_space<vmem>>, vector<1x32xf32>
    %cst_17 = arith.constant 0.000000e+00 : f32
    %12 = vector.broadcast %cst_17 : f32 to vector<1x32xf32>
    %cst_18 = arith.constant 0.000000e+00 : f32
    %13 = vector.broadcast %cst_18 : f32 to vector<1x32xf32>
    %cst_19 = arith.constant dense<0.000000e+00> : vector<1x96xf32>
    %14 = tpu.matmul %12, %6, %cst_19 {dimension_numbers = #tpu.dot_dimension_numbers<[1], [0], [0], [1], [0, 0, 1, 1], [], []>} : vector<1x32xf32>, vector<32x96xf32>, vector<1x96xf32> -> vector<1x96xf32>
    %15 = vector.extract_strided_slice %5 {offsets = [0, 0], sizes = [1, 96], strides = [1, 1]} : vector<8x96xf32> to vector<1x96xf32>
    %16 = vector.extract_strided_slice %15 {offsets = [0, 0], sizes = [1, 32], strides = [1, 1]} : vector<1x96xf32> to vector<1x32xf32>
    %17 = vector.extract_strided_slice %14 {offsets = [0, 0], sizes = [1, 32], strides = [1, 1]} : vector<1x96xf32> to vector<1x32xf32>
    %18 = arith.addf %16, %17 : vector<1x32xf32>
    %19 = arith.negf %18 : vector<1x32xf32>
    %20 = math.exp %19 : vector<1x32xf32>
    %cst_20 = arith.constant 1.000000e+00 : f32
    %21 = vector.broadcast %cst_20 : f32 to vector<1x32xf32>
    %22 = arith.addf %21, %20 : vector<1x32xf32>
    %23 = arith.divf %21, %22 : vector<1x32xf32>
    %24 = vector.extract_strided_slice %15 {offsets = [0, 32], sizes = [1, 32], strides = [1, 1]} : vector<1x96xf32> to vector<1x32xf32>
    %25 = vector.extract_strided_slice %14 {offsets = [0, 32], sizes = [1, 32], strides = [1, 1]} : vector<1x96xf32> to vector<1x32xf32>
    %26 = arith.addf %24, %25 : vector<1x32xf32>
    %27 = arith.negf %26 : vector<1x32xf32>
    %28 = math.exp %27 : vector<1x32xf32>
    %cst_21 = arith.constant 1.000000e+00 : f32
    %29 = vector.broadcast %cst_21 : f32 to vector<1x32xf32>
    %30 = arith.addf %29, %28 : vector<1x32xf32>
    %31 = arith.divf %29, %30 : vector<1x32xf32>
    %32 = vector.extract_strided_slice %15 {offsets = [0, 64], sizes = [1, 32], strides = [1, 1]} : vector<1x96xf32> to vector<1x32xf32>
    %33 = vector.extract_strided_slice %14 {offsets = [0, 64], sizes = [1, 32], strides = [1, 1]} : vector<1x96xf32> to vector<1x32xf32>
    %34 = arith.addf %33, %10 : vector<1x32xf32>
    %35 = arith.mulf %23, %34 : vector<1x32xf32>
    %36 = arith.addf %32, %35 : vector<1x32xf32>
    %37 = math.tanh %36 : vector<1x32xf32>
    %cst_22 = arith.constant 1.000000e+00 : f32
    %38 = vector.broadcast %cst_22 : f32 to vector<1x32xf32>
    %39 = arith.subf %38, %31 : vector<1x32xf32>
    %40 = arith.mulf %39, %37 : vector<1x32xf32>
    %41 = arith.mulf %31, %12 : vector<1x32xf32>
    %42 = arith.addf %40, %41 : vector<1x32xf32>
    %cst_23 = arith.constant dense<0.000000e+00> : vector<1x96xf32>
    %43 = tpu.matmul %42, %7, %cst_23 {dimension_numbers = #tpu.dot_dimension_numbers<[1], [0], [0], [1], [0, 0, 1, 1], [], []>} : vector<1x32xf32>, vector<32x96xf32>, vector<1x96xf32> -> vector<1x96xf32>
    %44 = arith.addf %43, %9 : vector<1x96xf32>
    %cst_24 = arith.constant dense<0.000000e+00> : vector<1x96xf32>
    %45 = tpu.matmul %13, %8, %cst_24 {dimension_numbers = #tpu.dot_dimension_numbers<[1], [0], [0], [1], [0, 0, 1, 1], [], []>} : vector<1x32xf32>, vector<32x96xf32>, vector<1x96xf32> -> vector<1x96xf32>
    %46 = vector.extract_strided_slice %44 {offsets = [0, 0], sizes = [1, 32], strides = [1, 1]} : vector<1x96xf32> to vector<1x32xf32>
    %47 = vector.extract_strided_slice %45 {offsets = [0, 0], sizes = [1, 32], strides = [1, 1]} : vector<1x96xf32> to vector<1x32xf32>
    %48 = arith.addf %46, %47 : vector<1x32xf32>
    %49 = arith.negf %48 : vector<1x32xf32>
    %50 = math.exp %49 : vector<1x32xf32>
    %cst_25 = arith.constant 1.000000e+00 : f32
    %51 = vector.broadcast %cst_25 : f32 to vector<1x32xf32>
    %52 = arith.addf %51, %50 : vector<1x32xf32>
    %53 = arith.divf %51, %52 : vector<1x32xf32>
    %54 = vector.extract_strided_slice %44 {offsets = [0, 32], sizes = [1, 32], strides = [1, 1]} : vector<1x96xf32> to vector<1x32xf32>
    %55 = vector.extract_strided_slice %45 {offsets = [0, 32], sizes = [1, 32], strides = [1, 1]} : vector<1x96xf32> to vector<1x32xf32>
    %56 = arith.addf %54, %55 : vector<1x32xf32>
    %57 = arith.negf %56 : vector<1x32xf32>
    %58 = math.exp %57 : vector<1x32xf32>
    %cst_26 = arith.constant 1.000000e+00 : f32
    %59 = vector.broadcast %cst_26 : f32 to vector<1x32xf32>
    %60 = arith.addf %59, %58 : vector<1x32xf32>
    %61 = arith.divf %59, %60 : vector<1x32xf32>
    %62 = vector.extract_strided_slice %44 {offsets = [0, 64], sizes = [1, 32], strides = [1, 1]} : vector<1x96xf32> to vector<1x32xf32>
    %63 = vector.extract_strided_slice %45 {offsets = [0, 64], sizes = [1, 32], strides = [1, 1]} : vector<1x96xf32> to vector<1x32xf32>
    %64 = arith.addf %63, %11 : vector<1x32xf32>
    %65 = arith.mulf %53, %64 : vector<1x32xf32>
    %66 = arith.addf %62, %65 : vector<1x32xf32>
    %67 = math.tanh %66 : vector<1x32xf32>
    %cst_27 = arith.constant 1.000000e+00 : f32
    %68 = vector.broadcast %cst_27 : f32 to vector<1x32xf32>
    %69 = arith.subf %68, %61 : vector<1x32xf32>
    %70 = arith.mulf %69, %67 : vector<1x32xf32>
    %71 = arith.mulf %61, %13 : vector<1x32xf32>
    %72 = arith.addf %70, %71 : vector<1x32xf32>
    %cst_28 = arith.constant dense<0.000000e+00> : vector<1x96xf32>
    %73 = tpu.matmul %42, %6, %cst_28 {dimension_numbers = #tpu.dot_dimension_numbers<[1], [0], [0], [1], [0, 0, 1, 1], [], []>} : vector<1x32xf32>, vector<32x96xf32>, vector<1x96xf32> -> vector<1x96xf32>
    %74 = vector.extract_strided_slice %5 {offsets = [1, 0], sizes = [1, 96], strides = [1, 1]} : vector<8x96xf32> to vector<1x96xf32>
    %75 = vector.extract_strided_slice %74 {offsets = [0, 0], sizes = [1, 32], strides = [1, 1]} : vector<1x96xf32> to vector<1x32xf32>
    %76 = vector.extract_strided_slice %73 {offsets = [0, 0], sizes = [1, 32], strides = [1, 1]} : vector<1x96xf32> to vector<1x32xf32>
    %77 = arith.addf %75, %76 : vector<1x32xf32>
    %78 = arith.negf %77 : vector<1x32xf32>
    %79 = math.exp %78 : vector<1x32xf32>
    %cst_29 = arith.constant 1.000000e+00 : f32
    %80 = vector.broadcast %cst_29 : f32 to vector<1x32xf32>
    %81 = arith.addf %80, %79 : vector<1x32xf32>
    %82 = arith.divf %80, %81 : vector<1x32xf32>
    %83 = vector.extract_strided_slice %74 {offsets = [0, 32], sizes = [1, 32], strides = [1, 1]} : vector<1x96xf32> to vector<1x32xf32>
    %84 = vector.extract_strided_slice %73 {offsets = [0, 32], sizes = [1, 32], strides = [1, 1]} : vector<1x96xf32> to vector<1x32xf32>
    %85 = arith.addf %83, %84 : vector<1x32xf32>
    %86 = arith.negf %85 : vector<1x32xf32>
    %87 = math.exp %86 : vector<1x32xf32>
    %cst_30 = arith.constant 1.000000e+00 : f32
    %88 = vector.broadcast %cst_30 : f32 to vector<1x32xf32>
    %89 = arith.addf %88, %87 : vector<1x32xf32>
    %90 = arith.divf %88, %89 : vector<1x32xf32>
    %91 = vector.extract_strided_slice %74 {offsets = [0, 64], sizes = [1, 32], strides = [1, 1]} : vector<1x96xf32> to vector<1x32xf32>
    %92 = vector.extract_strided_slice %73 {offsets = [0, 64], sizes = [1, 32], strides = [1, 1]} : vector<1x96xf32> to vector<1x32xf32>
    %93 = arith.addf %92, %10 : vector<1x32xf32>
    %94 = arith.mulf %82, %93 : vector<1x32xf32>
    %95 = arith.addf %91, %94 : vector<1x32xf32>
    %96 = math.tanh %95 : vector<1x32xf32>
    %cst_31 = arith.constant 1.000000e+00 : f32
    %97 = vector.broadcast %cst_31 : f32 to vector<1x32xf32>
    %98 = arith.subf %97, %90 : vector<1x32xf32>
    %99 = arith.mulf %98, %96 : vector<1x32xf32>
    %100 = arith.mulf %90, %42 : vector<1x32xf32>
    %101 = arith.addf %99, %100 : vector<1x32xf32>
    %cst_32 = arith.constant dense<0.000000e+00> : vector<1x96xf32>
    %102 = tpu.matmul %101, %7, %cst_32 {dimension_numbers = #tpu.dot_dimension_numbers<[1], [0], [0], [1], [0, 0, 1, 1], [], []>} : vector<1x32xf32>, vector<32x96xf32>, vector<1x96xf32> -> vector<1x96xf32>
    %103 = arith.addf %102, %9 : vector<1x96xf32>
    %cst_33 = arith.constant dense<0.000000e+00> : vector<1x96xf32>
    %104 = tpu.matmul %72, %8, %cst_33 {dimension_numbers = #tpu.dot_dimension_numbers<[1], [0], [0], [1], [0, 0, 1, 1], [], []>} : vector<1x32xf32>, vector<32x96xf32>, vector<1x96xf32> -> vector<1x96xf32>
    %105 = vector.extract_strided_slice %103 {offsets = [0, 0], sizes = [1, 32], strides = [1, 1]} : vector<1x96xf32> to vector<1x32xf32>
    %106 = vector.extract_strided_slice %104 {offsets = [0, 0], sizes = [1, 32], strides = [1, 1]} : vector<1x96xf32> to vector<1x32xf32>
    %107 = arith.addf %105, %106 : vector<1x32xf32>
    %108 = arith.negf %107 : vector<1x32xf32>
    %109 = math.exp %108 : vector<1x32xf32>
    %cst_34 = arith.constant 1.000000e+00 : f32
    %110 = vector.broadcast %cst_34 : f32 to vector<1x32xf32>
    %111 = arith.addf %110, %109 : vector<1x32xf32>
    %112 = arith.divf %110, %111 : vector<1x32xf32>
    %113 = vector.extract_strided_slice %103 {offsets = [0, 32], sizes = [1, 32], strides = [1, 1]} : vector<1x96xf32> to vector<1x32xf32>
    %114 = vector.extract_strided_slice %104 {offsets = [0, 32], sizes = [1, 32], strides = [1, 1]} : vector<1x96xf32> to vector<1x32xf32>
    %115 = arith.addf %113, %114 : vector<1x32xf32>
    %116 = arith.negf %115 : vector<1x32xf32>
    %117 = math.exp %116 : vector<1x32xf32>
    %cst_35 = arith.constant 1.000000e+00 : f32
    %118 = vector.broadcast %cst_35 : f32 to vector<1x32xf32>
    %119 = arith.addf %118, %117 : vector<1x32xf32>
    %120 = arith.divf %118, %119 : vector<1x32xf32>
    %121 = vector.extract_strided_slice %103 {offsets = [0, 64], sizes = [1, 32], strides = [1, 1]} : vector<1x96xf32> to vector<1x32xf32>
    %122 = vector.extract_strided_slice %104 {offsets = [0, 64], sizes = [1, 32], strides = [1, 1]} : vector<1x96xf32> to vector<1x32xf32>
    %123 = arith.addf %122, %11 : vector<1x32xf32>
    %124 = arith.mulf %112, %123 : vector<1x32xf32>
    %125 = arith.addf %121, %124 : vector<1x32xf32>
    %126 = math.tanh %125 : vector<1x32xf32>
    %cst_36 = arith.constant 1.000000e+00 : f32
    %127 = vector.broadcast %cst_36 : f32 to vector<1x32xf32>
    %128 = arith.subf %127, %120 : vector<1x32xf32>
    %129 = arith.mulf %128, %126 : vector<1x32xf32>
    %130 = arith.mulf %120, %72 : vector<1x32xf32>
    %131 = arith.addf %129, %130 : vector<1x32xf32>
    %cst_37 = arith.constant dense<0.000000e+00> : vector<1x96xf32>
    %132 = tpu.matmul %101, %6, %cst_37 {dimension_numbers = #tpu.dot_dimension_numbers<[1], [0], [0], [1], [0, 0, 1, 1], [], []>} : vector<1x32xf32>, vector<32x96xf32>, vector<1x96xf32> -> vector<1x96xf32>
    %133 = vector.extract_strided_slice %5 {offsets = [2, 0], sizes = [1, 96], strides = [1, 1]} : vector<8x96xf32> to vector<1x96xf32>
    %134 = vector.extract_strided_slice %133 {offsets = [0, 0], sizes = [1, 32], strides = [1, 1]} : vector<1x96xf32> to vector<1x32xf32>
    %135 = vector.extract_strided_slice %132 {offsets = [0, 0], sizes = [1, 32], strides = [1, 1]} : vector<1x96xf32> to vector<1x32xf32>
    %136 = arith.addf %134, %135 : vector<1x32xf32>
    %137 = arith.negf %136 : vector<1x32xf32>
    %138 = math.exp %137 : vector<1x32xf32>
    %cst_38 = arith.constant 1.000000e+00 : f32
    %139 = vector.broadcast %cst_38 : f32 to vector<1x32xf32>
    %140 = arith.addf %139, %138 : vector<1x32xf32>
    %141 = arith.divf %139, %140 : vector<1x32xf32>
    %142 = vector.extract_strided_slice %133 {offsets = [0, 32], sizes = [1, 32], strides = [1, 1]} : vector<1x96xf32> to vector<1x32xf32>
    %143 = vector.extract_strided_slice %132 {offsets = [0, 32], sizes = [1, 32], strides = [1, 1]} : vector<1x96xf32> to vector<1x32xf32>
    %144 = arith.addf %142, %143 : vector<1x32xf32>
    %145 = arith.negf %144 : vector<1x32xf32>
    %146 = math.exp %145 : vector<1x32xf32>
    %cst_39 = arith.constant 1.000000e+00 : f32
    %147 = vector.broadcast %cst_39 : f32 to vector<1x32xf32>
    %148 = arith.addf %147, %146 : vector<1x32xf32>
    %149 = arith.divf %147, %148 : vector<1x32xf32>
    %150 = vector.extract_strided_slice %133 {offsets = [0, 64], sizes = [1, 32], strides = [1, 1]} : vector<1x96xf32> to vector<1x32xf32>
    %151 = vector.extract_strided_slice %132 {offsets = [0, 64], sizes = [1, 32], strides = [1, 1]} : vector<1x96xf32> to vector<1x32xf32>
    %152 = arith.addf %151, %10 : vector<1x32xf32>
    %153 = arith.mulf %141, %152 : vector<1x32xf32>
    %154 = arith.addf %150, %153 : vector<1x32xf32>
    %155 = math.tanh %154 : vector<1x32xf32>
    %cst_40 = arith.constant 1.000000e+00 : f32
    %156 = vector.broadcast %cst_40 : f32 to vector<1x32xf32>
    %157 = arith.subf %156, %149 : vector<1x32xf32>
    %158 = arith.mulf %157, %155 : vector<1x32xf32>
    %159 = arith.mulf %149, %101 : vector<1x32xf32>
    %160 = arith.addf %158, %159 : vector<1x32xf32>
    %cst_41 = arith.constant dense<0.000000e+00> : vector<1x96xf32>
    %161 = tpu.matmul %160, %7, %cst_41 {dimension_numbers = #tpu.dot_dimension_numbers<[1], [0], [0], [1], [0, 0, 1, 1], [], []>} : vector<1x32xf32>, vector<32x96xf32>, vector<1x96xf32> -> vector<1x96xf32>
    %162 = arith.addf %161, %9 : vector<1x96xf32>
    %cst_42 = arith.constant dense<0.000000e+00> : vector<1x96xf32>
    %163 = tpu.matmul %131, %8, %cst_42 {dimension_numbers = #tpu.dot_dimension_numbers<[1], [0], [0], [1], [0, 0, 1, 1], [], []>} : vector<1x32xf32>, vector<32x96xf32>, vector<1x96xf32> -> vector<1x96xf32>
    %164 = vector.extract_strided_slice %162 {offsets = [0, 0], sizes = [1, 32], strides = [1, 1]} : vector<1x96xf32> to vector<1x32xf32>
    %165 = vector.extract_strided_slice %163 {offsets = [0, 0], sizes = [1, 32], strides = [1, 1]} : vector<1x96xf32> to vector<1x32xf32>
    %166 = arith.addf %164, %165 : vector<1x32xf32>
    %167 = arith.negf %166 : vector<1x32xf32>
    %168 = math.exp %167 : vector<1x32xf32>
    %cst_43 = arith.constant 1.000000e+00 : f32
    %169 = vector.broadcast %cst_43 : f32 to vector<1x32xf32>
    %170 = arith.addf %169, %168 : vector<1x32xf32>
    %171 = arith.divf %169, %170 : vector<1x32xf32>
    %172 = vector.extract_strided_slice %162 {offsets = [0, 32], sizes = [1, 32], strides = [1, 1]} : vector<1x96xf32> to vector<1x32xf32>
    %173 = vector.extract_strided_slice %163 {offsets = [0, 32], sizes = [1, 32], strides = [1, 1]} : vector<1x96xf32> to vector<1x32xf32>
    %174 = arith.addf %172, %173 : vector<1x32xf32>
    %175 = arith.negf %174 : vector<1x32xf32>
    %176 = math.exp %175 : vector<1x32xf32>
    %cst_44 = arith.constant 1.000000e+00 : f32
    %177 = vector.broadcast %cst_44 : f32 to vector<1x32xf32>
    %178 = arith.addf %177, %176 : vector<1x32xf32>
    %179 = arith.divf %177, %178 : vector<1x32xf32>
    %180 = vector.extract_strided_slice %162 {offsets = [0, 64], sizes = [1, 32], strides = [1, 1]} : vector<1x96xf32> to vector<1x32xf32>
    %181 = vector.extract_strided_slice %163 {offsets = [0, 64], sizes = [1, 32], strides = [1, 1]} : vector<1x96xf32> to vector<1x32xf32>
    %182 = arith.addf %181, %11 : vector<1x32xf32>
    %183 = arith.mulf %171, %182 : vector<1x32xf32>
    %184 = arith.addf %180, %183 : vector<1x32xf32>
    %185 = math.tanh %184 : vector<1x32xf32>
    %cst_45 = arith.constant 1.000000e+00 : f32
    %186 = vector.broadcast %cst_45 : f32 to vector<1x32xf32>
    %187 = arith.subf %186, %179 : vector<1x32xf32>
    %188 = arith.mulf %187, %185 : vector<1x32xf32>
    %189 = arith.mulf %179, %131 : vector<1x32xf32>
    %190 = arith.addf %188, %189 : vector<1x32xf32>
    %cst_46 = arith.constant dense<0.000000e+00> : vector<1x96xf32>
    %191 = tpu.matmul %160, %6, %cst_46 {dimension_numbers = #tpu.dot_dimension_numbers<[1], [0], [0], [1], [0, 0, 1, 1], [], []>} : vector<1x32xf32>, vector<32x96xf32>, vector<1x96xf32> -> vector<1x96xf32>
    %192 = vector.extract_strided_slice %5 {offsets = [3, 0], sizes = [1, 96], strides = [1, 1]} : vector<8x96xf32> to vector<1x96xf32>
    %193 = vector.extract_strided_slice %192 {offsets = [0, 0], sizes = [1, 32], strides = [1, 1]} : vector<1x96xf32> to vector<1x32xf32>
    %194 = vector.extract_strided_slice %191 {offsets = [0, 0], sizes = [1, 32], strides = [1, 1]} : vector<1x96xf32> to vector<1x32xf32>
    %195 = arith.addf %193, %194 : vector<1x32xf32>
    %196 = arith.negf %195 : vector<1x32xf32>
    %197 = math.exp %196 : vector<1x32xf32>
    %cst_47 = arith.constant 1.000000e+00 : f32
    %198 = vector.broadcast %cst_47 : f32 to vector<1x32xf32>
    %199 = arith.addf %198, %197 : vector<1x32xf32>
    %200 = arith.divf %198, %199 : vector<1x32xf32>
    %201 = vector.extract_strided_slice %192 {offsets = [0, 32], sizes = [1, 32], strides = [1, 1]} : vector<1x96xf32> to vector<1x32xf32>
    %202 = vector.extract_strided_slice %191 {offsets = [0, 32], sizes = [1, 32], strides = [1, 1]} : vector<1x96xf32> to vector<1x32xf32>
    %203 = arith.addf %201, %202 : vector<1x32xf32>
    %204 = arith.negf %203 : vector<1x32xf32>
    %205 = math.exp %204 : vector<1x32xf32>
    %cst_48 = arith.constant 1.000000e+00 : f32
    %206 = vector.broadcast %cst_48 : f32 to vector<1x32xf32>
    %207 = arith.addf %206, %205 : vector<1x32xf32>
    %208 = arith.divf %206, %207 : vector<1x32xf32>
    %209 = vector.extract_strided_slice %192 {offsets = [0, 64], sizes = [1, 32], strides = [1, 1]} : vector<1x96xf32> to vector<1x32xf32>
    %210 = vector.extract_strided_slice %191 {offsets = [0, 64], sizes = [1, 32], strides = [1, 1]} : vector<1x96xf32> to vector<1x32xf32>
    %211 = arith.addf %210, %10 : vector<1x32xf32>
    %212 = arith.mulf %200, %211 : vector<1x32xf32>
    %213 = arith.addf %209, %212 : vector<1x32xf32>
    %214 = math.tanh %213 : vector<1x32xf32>
    %cst_49 = arith.constant 1.000000e+00 : f32
    %215 = vector.broadcast %cst_49 : f32 to vector<1x32xf32>
    %216 = arith.subf %215, %208 : vector<1x32xf32>
    %217 = arith.mulf %216, %214 : vector<1x32xf32>
    %218 = arith.mulf %208, %160 : vector<1x32xf32>
    %219 = arith.addf %217, %218 : vector<1x32xf32>
    %cst_50 = arith.constant dense<0.000000e+00> : vector<1x96xf32>
    %220 = tpu.matmul %219, %7, %cst_50 {dimension_numbers = #tpu.dot_dimension_numbers<[1], [0], [0], [1], [0, 0, 1, 1], [], []>} : vector<1x32xf32>, vector<32x96xf32>, vector<1x96xf32> -> vector<1x96xf32>
    %221 = arith.addf %220, %9 : vector<1x96xf32>
    %cst_51 = arith.constant dense<0.000000e+00> : vector<1x96xf32>
    %222 = tpu.matmul %190, %8, %cst_51 {dimension_numbers = #tpu.dot_dimension_numbers<[1], [0], [0], [1], [0, 0, 1, 1], [], []>} : vector<1x32xf32>, vector<32x96xf32>, vector<1x96xf32> -> vector<1x96xf32>
    %223 = vector.extract_strided_slice %221 {offsets = [0, 0], sizes = [1, 32], strides = [1, 1]} : vector<1x96xf32> to vector<1x32xf32>
    %224 = vector.extract_strided_slice %222 {offsets = [0, 0], sizes = [1, 32], strides = [1, 1]} : vector<1x96xf32> to vector<1x32xf32>
    %225 = arith.addf %223, %224 : vector<1x32xf32>
    %226 = arith.negf %225 : vector<1x32xf32>
    %227 = math.exp %226 : vector<1x32xf32>
    %cst_52 = arith.constant 1.000000e+00 : f32
    %228 = vector.broadcast %cst_52 : f32 to vector<1x32xf32>
    %229 = arith.addf %228, %227 : vector<1x32xf32>
    %230 = arith.divf %228, %229 : vector<1x32xf32>
    %231 = vector.extract_strided_slice %221 {offsets = [0, 32], sizes = [1, 32], strides = [1, 1]} : vector<1x96xf32> to vector<1x32xf32>
    %232 = vector.extract_strided_slice %222 {offsets = [0, 32], sizes = [1, 32], strides = [1, 1]} : vector<1x96xf32> to vector<1x32xf32>
    %233 = arith.addf %231, %232 : vector<1x32xf32>
    %234 = arith.negf %233 : vector<1x32xf32>
    %235 = math.exp %234 : vector<1x32xf32>
    %cst_53 = arith.constant 1.000000e+00 : f32
    %236 = vector.broadcast %cst_53 : f32 to vector<1x32xf32>
    %237 = arith.addf %236, %235 : vector<1x32xf32>
    %238 = arith.divf %236, %237 : vector<1x32xf32>
    %239 = vector.extract_strided_slice %221 {offsets = [0, 64], sizes = [1, 32], strides = [1, 1]} : vector<1x96xf32> to vector<1x32xf32>
    %240 = vector.extract_strided_slice %222 {offsets = [0, 64], sizes = [1, 32], strides = [1, 1]} : vector<1x96xf32> to vector<1x32xf32>
    %241 = arith.addf %240, %11 : vector<1x32xf32>
    %242 = arith.mulf %230, %241 : vector<1x32xf32>
    %243 = arith.addf %239, %242 : vector<1x32xf32>
    %244 = math.tanh %243 : vector<1x32xf32>
    %cst_54 = arith.constant 1.000000e+00 : f32
    %245 = vector.broadcast %cst_54 : f32 to vector<1x32xf32>
    %246 = arith.subf %245, %238 : vector<1x32xf32>
    %247 = arith.mulf %246, %244 : vector<1x32xf32>
    %248 = arith.mulf %238, %190 : vector<1x32xf32>
    %249 = arith.addf %247, %248 : vector<1x32xf32>
    %cst_55 = arith.constant dense<0.000000e+00> : vector<1x96xf32>
    %250 = tpu.matmul %219, %6, %cst_55 {dimension_numbers = #tpu.dot_dimension_numbers<[1], [0], [0], [1], [0, 0, 1, 1], [], []>} : vector<1x32xf32>, vector<32x96xf32>, vector<1x96xf32> -> vector<1x96xf32>
    %251 = vector.extract_strided_slice %5 {offsets = [4, 0], sizes = [1, 96], strides = [1, 1]} : vector<8x96xf32> to vector<1x96xf32>
    %252 = vector.extract_strided_slice %251 {offsets = [0, 0], sizes = [1, 32], strides = [1, 1]} : vector<1x96xf32> to vector<1x32xf32>
    %253 = vector.extract_strided_slice %250 {offsets = [0, 0], sizes = [1, 32], strides = [1, 1]} : vector<1x96xf32> to vector<1x32xf32>
    %254 = arith.addf %252, %253 : vector<1x32xf32>
    %255 = arith.negf %254 : vector<1x32xf32>
    %256 = math.exp %255 : vector<1x32xf32>
    %cst_56 = arith.constant 1.000000e+00 : f32
    %257 = vector.broadcast %cst_56 : f32 to vector<1x32xf32>
    %258 = arith.addf %257, %256 : vector<1x32xf32>
    %259 = arith.divf %257, %258 : vector<1x32xf32>
    %260 = vector.extract_strided_slice %251 {offsets = [0, 32], sizes = [1, 32], strides = [1, 1]} : vector<1x96xf32> to vector<1x32xf32>
    %261 = vector.extract_strided_slice %250 {offsets = [0, 32], sizes = [1, 32], strides = [1, 1]} : vector<1x96xf32> to vector<1x32xf32>
    %262 = arith.addf %260, %261 : vector<1x32xf32>
    %263 = arith.negf %262 : vector<1x32xf32>
    %264 = math.exp %263 : vector<1x32xf32>
    %cst_57 = arith.constant 1.000000e+00 : f32
    %265 = vector.broadcast %cst_57 : f32 to vector<1x32xf32>
    %266 = arith.addf %265, %264 : vector<1x32xf32>
    %267 = arith.divf %265, %266 : vector<1x32xf32>
    %268 = vector.extract_strided_slice %251 {offsets = [0, 64], sizes = [1, 32], strides = [1, 1]} : vector<1x96xf32> to vector<1x32xf32>
    %269 = vector.extract_strided_slice %250 {offsets = [0, 64], sizes = [1, 32], strides = [1, 1]} : vector<1x96xf32> to vector<1x32xf32>
    %270 = arith.addf %269, %10 : vector<1x32xf32>
    %271 = arith.mulf %259, %270 : vector<1x32xf32>
    %272 = arith.addf %268, %271 : vector<1x32xf32>
    %273 = math.tanh %272 : vector<1x32xf32>
    %cst_58 = arith.constant 1.000000e+00 : f32
    %274 = vector.broadcast %cst_58 : f32 to vector<1x32xf32>
    %275 = arith.subf %274, %267 : vector<1x32xf32>
    %276 = arith.mulf %275, %273 : vector<1x32xf32>
    %277 = arith.mulf %267, %219 : vector<1x32xf32>
    %278 = arith.addf %276, %277 : vector<1x32xf32>
    %cst_59 = arith.constant dense<0.000000e+00> : vector<1x96xf32>
    %279 = tpu.matmul %278, %7, %cst_59 {dimension_numbers = #tpu.dot_dimension_numbers<[1], [0], [0], [1], [0, 0, 1, 1], [], []>} : vector<1x32xf32>, vector<32x96xf32>, vector<1x96xf32> -> vector<1x96xf32>
    %280 = arith.addf %279, %9 : vector<1x96xf32>
    %cst_60 = arith.constant dense<0.000000e+00> : vector<1x96xf32>
    %281 = tpu.matmul %249, %8, %cst_60 {dimension_numbers = #tpu.dot_dimension_numbers<[1], [0], [0], [1], [0, 0, 1, 1], [], []>} : vector<1x32xf32>, vector<32x96xf32>, vector<1x96xf32> -> vector<1x96xf32>
    %282 = vector.extract_strided_slice %280 {offsets = [0, 0], sizes = [1, 32], strides = [1, 1]} : vector<1x96xf32> to vector<1x32xf32>
    %283 = vector.extract_strided_slice %281 {offsets = [0, 0], sizes = [1, 32], strides = [1, 1]} : vector<1x96xf32> to vector<1x32xf32>
    %284 = arith.addf %282, %283 : vector<1x32xf32>
    %285 = arith.negf %284 : vector<1x32xf32>
    %286 = math.exp %285 : vector<1x32xf32>
    %cst_61 = arith.constant 1.000000e+00 : f32
    %287 = vector.broadcast %cst_61 : f32 to vector<1x32xf32>
    %288 = arith.addf %287, %286 : vector<1x32xf32>
    %289 = arith.divf %287, %288 : vector<1x32xf32>
    %290 = vector.extract_strided_slice %280 {offsets = [0, 32], sizes = [1, 32], strides = [1, 1]} : vector<1x96xf32> to vector<1x32xf32>
    %291 = vector.extract_strided_slice %281 {offsets = [0, 32], sizes = [1, 32], strides = [1, 1]} : vector<1x96xf32> to vector<1x32xf32>
    %292 = arith.addf %290, %291 : vector<1x32xf32>
    %293 = arith.negf %292 : vector<1x32xf32>
    %294 = math.exp %293 : vector<1x32xf32>
    %cst_62 = arith.constant 1.000000e+00 : f32
    %295 = vector.broadcast %cst_62 : f32 to vector<1x32xf32>
    %296 = arith.addf %295, %294 : vector<1x32xf32>
    %297 = arith.divf %295, %296 : vector<1x32xf32>
    %298 = vector.extract_strided_slice %280 {offsets = [0, 64], sizes = [1, 32], strides = [1, 1]} : vector<1x96xf32> to vector<1x32xf32>
    %299 = vector.extract_strided_slice %281 {offsets = [0, 64], sizes = [1, 32], strides = [1, 1]} : vector<1x96xf32> to vector<1x32xf32>
    %300 = arith.addf %299, %11 : vector<1x32xf32>
    %301 = arith.mulf %289, %300 : vector<1x32xf32>
    %302 = arith.addf %298, %301 : vector<1x32xf32>
    %303 = math.tanh %302 : vector<1x32xf32>
    %cst_63 = arith.constant 1.000000e+00 : f32
    %304 = vector.broadcast %cst_63 : f32 to vector<1x32xf32>
    %305 = arith.subf %304, %297 : vector<1x32xf32>
    %306 = arith.mulf %305, %303 : vector<1x32xf32>
    %307 = arith.mulf %297, %249 : vector<1x32xf32>
    %308 = arith.addf %306, %307 : vector<1x32xf32>
    %cst_64 = arith.constant dense<0.000000e+00> : vector<1x96xf32>
    %309 = tpu.matmul %278, %6, %cst_64 {dimension_numbers = #tpu.dot_dimension_numbers<[1], [0], [0], [1], [0, 0, 1, 1], [], []>} : vector<1x32xf32>, vector<32x96xf32>, vector<1x96xf32> -> vector<1x96xf32>
    %310 = vector.extract_strided_slice %5 {offsets = [5, 0], sizes = [1, 96], strides = [1, 1]} : vector<8x96xf32> to vector<1x96xf32>
    %311 = vector.extract_strided_slice %310 {offsets = [0, 0], sizes = [1, 32], strides = [1, 1]} : vector<1x96xf32> to vector<1x32xf32>
    %312 = vector.extract_strided_slice %309 {offsets = [0, 0], sizes = [1, 32], strides = [1, 1]} : vector<1x96xf32> to vector<1x32xf32>
    %313 = arith.addf %311, %312 : vector<1x32xf32>
    %314 = arith.negf %313 : vector<1x32xf32>
    %315 = math.exp %314 : vector<1x32xf32>
    %cst_65 = arith.constant 1.000000e+00 : f32
    %316 = vector.broadcast %cst_65 : f32 to vector<1x32xf32>
    %317 = arith.addf %316, %315 : vector<1x32xf32>
    %318 = arith.divf %316, %317 : vector<1x32xf32>
    %319 = vector.extract_strided_slice %310 {offsets = [0, 32], sizes = [1, 32], strides = [1, 1]} : vector<1x96xf32> to vector<1x32xf32>
    %320 = vector.extract_strided_slice %309 {offsets = [0, 32], sizes = [1, 32], strides = [1, 1]} : vector<1x96xf32> to vector<1x32xf32>
    %321 = arith.addf %319, %320 : vector<1x32xf32>
    %322 = arith.negf %321 : vector<1x32xf32>
    %323 = math.exp %322 : vector<1x32xf32>
    %cst_66 = arith.constant 1.000000e+00 : f32
    %324 = vector.broadcast %cst_66 : f32 to vector<1x32xf32>
    %325 = arith.addf %324, %323 : vector<1x32xf32>
    %326 = arith.divf %324, %325 : vector<1x32xf32>
    %327 = vector.extract_strided_slice %310 {offsets = [0, 64], sizes = [1, 32], strides = [1, 1]} : vector<1x96xf32> to vector<1x32xf32>
    %328 = vector.extract_strided_slice %309 {offsets = [0, 64], sizes = [1, 32], strides = [1, 1]} : vector<1x96xf32> to vector<1x32xf32>
    %329 = arith.addf %328, %10 : vector<1x32xf32>
    %330 = arith.mulf %318, %329 : vector<1x32xf32>
    %331 = arith.addf %327, %330 : vector<1x32xf32>
    %332 = math.tanh %331 : vector<1x32xf32>
    %cst_67 = arith.constant 1.000000e+00 : f32
    %333 = vector.broadcast %cst_67 : f32 to vector<1x32xf32>
    %334 = arith.subf %333, %326 : vector<1x32xf32>
    %335 = arith.mulf %334, %332 : vector<1x32xf32>
    %336 = arith.mulf %326, %278 : vector<1x32xf32>
    %337 = arith.addf %335, %336 : vector<1x32xf32>
    %cst_68 = arith.constant dense<0.000000e+00> : vector<1x96xf32>
    %338 = tpu.matmul %337, %7, %cst_68 {dimension_numbers = #tpu.dot_dimension_numbers<[1], [0], [0], [1], [0, 0, 1, 1], [], []>} : vector<1x32xf32>, vector<32x96xf32>, vector<1x96xf32> -> vector<1x96xf32>
    %339 = arith.addf %338, %9 : vector<1x96xf32>
    %cst_69 = arith.constant dense<0.000000e+00> : vector<1x96xf32>
    %340 = tpu.matmul %308, %8, %cst_69 {dimension_numbers = #tpu.dot_dimension_numbers<[1], [0], [0], [1], [0, 0, 1, 1], [], []>} : vector<1x32xf32>, vector<32x96xf32>, vector<1x96xf32> -> vector<1x96xf32>
    %341 = vector.extract_strided_slice %339 {offsets = [0, 0], sizes = [1, 32], strides = [1, 1]} : vector<1x96xf32> to vector<1x32xf32>
    %342 = vector.extract_strided_slice %340 {offsets = [0, 0], sizes = [1, 32], strides = [1, 1]} : vector<1x96xf32> to vector<1x32xf32>
    %343 = arith.addf %341, %342 : vector<1x32xf32>
    %344 = arith.negf %343 : vector<1x32xf32>
    %345 = math.exp %344 : vector<1x32xf32>
    %cst_70 = arith.constant 1.000000e+00 : f32
    %346 = vector.broadcast %cst_70 : f32 to vector<1x32xf32>
    %347 = arith.addf %346, %345 : vector<1x32xf32>
    %348 = arith.divf %346, %347 : vector<1x32xf32>
    %349 = vector.extract_strided_slice %339 {offsets = [0, 32], sizes = [1, 32], strides = [1, 1]} : vector<1x96xf32> to vector<1x32xf32>
    %350 = vector.extract_strided_slice %340 {offsets = [0, 32], sizes = [1, 32], strides = [1, 1]} : vector<1x96xf32> to vector<1x32xf32>
    %351 = arith.addf %349, %350 : vector<1x32xf32>
    %352 = arith.negf %351 : vector<1x32xf32>
    %353 = math.exp %352 : vector<1x32xf32>
    %cst_71 = arith.constant 1.000000e+00 : f32
    %354 = vector.broadcast %cst_71 : f32 to vector<1x32xf32>
    %355 = arith.addf %354, %353 : vector<1x32xf32>
    %356 = arith.divf %354, %355 : vector<1x32xf32>
    %357 = vector.extract_strided_slice %339 {offsets = [0, 64], sizes = [1, 32], strides = [1, 1]} : vector<1x96xf32> to vector<1x32xf32>
    %358 = vector.extract_strided_slice %340 {offsets = [0, 64], sizes = [1, 32], strides = [1, 1]} : vector<1x96xf32> to vector<1x32xf32>
    %359 = arith.addf %358, %11 : vector<1x32xf32>
    %360 = arith.mulf %348, %359 : vector<1x32xf32>
    %361 = arith.addf %357, %360 : vector<1x32xf32>
    %362 = math.tanh %361 : vector<1x32xf32>
    %cst_72 = arith.constant 1.000000e+00 : f32
    %363 = vector.broadcast %cst_72 : f32 to vector<1x32xf32>
    %364 = arith.subf %363, %356 : vector<1x32xf32>
    %365 = arith.mulf %364, %362 : vector<1x32xf32>
    %366 = arith.mulf %356, %308 : vector<1x32xf32>
    %367 = arith.addf %365, %366 : vector<1x32xf32>
    %cst_73 = arith.constant dense<0.000000e+00> : vector<1x96xf32>
    %368 = tpu.matmul %337, %6, %cst_73 {dimension_numbers = #tpu.dot_dimension_numbers<[1], [0], [0], [1], [0, 0, 1, 1], [], []>} : vector<1x32xf32>, vector<32x96xf32>, vector<1x96xf32> -> vector<1x96xf32>
    %369 = vector.extract_strided_slice %5 {offsets = [6, 0], sizes = [1, 96], strides = [1, 1]} : vector<8x96xf32> to vector<1x96xf32>
    %370 = vector.extract_strided_slice %369 {offsets = [0, 0], sizes = [1, 32], strides = [1, 1]} : vector<1x96xf32> to vector<1x32xf32>
    %371 = vector.extract_strided_slice %368 {offsets = [0, 0], sizes = [1, 32], strides = [1, 1]} : vector<1x96xf32> to vector<1x32xf32>
    %372 = arith.addf %370, %371 : vector<1x32xf32>
    %373 = arith.negf %372 : vector<1x32xf32>
    %374 = math.exp %373 : vector<1x32xf32>
    %cst_74 = arith.constant 1.000000e+00 : f32
    %375 = vector.broadcast %cst_74 : f32 to vector<1x32xf32>
    %376 = arith.addf %375, %374 : vector<1x32xf32>
    %377 = arith.divf %375, %376 : vector<1x32xf32>
    %378 = vector.extract_strided_slice %369 {offsets = [0, 32], sizes = [1, 32], strides = [1, 1]} : vector<1x96xf32> to vector<1x32xf32>
    %379 = vector.extract_strided_slice %368 {offsets = [0, 32], sizes = [1, 32], strides = [1, 1]} : vector<1x96xf32> to vector<1x32xf32>
    %380 = arith.addf %378, %379 : vector<1x32xf32>
    %381 = arith.negf %380 : vector<1x32xf32>
    %382 = math.exp %381 : vector<1x32xf32>
    %cst_75 = arith.constant 1.000000e+00 : f32
    %383 = vector.broadcast %cst_75 : f32 to vector<1x32xf32>
    %384 = arith.addf %383, %382 : vector<1x32xf32>
    %385 = arith.divf %383, %384 : vector<1x32xf32>
    %386 = vector.extract_strided_slice %369 {offsets = [0, 64], sizes = [1, 32], strides = [1, 1]} : vector<1x96xf32> to vector<1x32xf32>
    %387 = vector.extract_strided_slice %368 {offsets = [0, 64], sizes = [1, 32], strides = [1, 1]} : vector<1x96xf32> to vector<1x32xf32>
    %388 = arith.addf %387, %10 : vector<1x32xf32>
    %389 = arith.mulf %377, %388 : vector<1x32xf32>
    %390 = arith.addf %386, %389 : vector<1x32xf32>
    %391 = math.tanh %390 : vector<1x32xf32>
    %cst_76 = arith.constant 1.000000e+00 : f32
    %392 = vector.broadcast %cst_76 : f32 to vector<1x32xf32>
    %393 = arith.subf %392, %385 : vector<1x32xf32>
    %394 = arith.mulf %393, %391 : vector<1x32xf32>
    %395 = arith.mulf %385, %337 : vector<1x32xf32>
    %396 = arith.addf %394, %395 : vector<1x32xf32>
    %cst_77 = arith.constant dense<0.000000e+00> : vector<1x96xf32>
    %397 = tpu.matmul %396, %7, %cst_77 {dimension_numbers = #tpu.dot_dimension_numbers<[1], [0], [0], [1], [0, 0, 1, 1], [], []>} : vector<1x32xf32>, vector<32x96xf32>, vector<1x96xf32> -> vector<1x96xf32>
    %398 = arith.addf %397, %9 : vector<1x96xf32>
    %cst_78 = arith.constant dense<0.000000e+00> : vector<1x96xf32>
    %399 = tpu.matmul %367, %8, %cst_78 {dimension_numbers = #tpu.dot_dimension_numbers<[1], [0], [0], [1], [0, 0, 1, 1], [], []>} : vector<1x32xf32>, vector<32x96xf32>, vector<1x96xf32> -> vector<1x96xf32>
    %400 = vector.extract_strided_slice %398 {offsets = [0, 0], sizes = [1, 32], strides = [1, 1]} : vector<1x96xf32> to vector<1x32xf32>
    %401 = vector.extract_strided_slice %399 {offsets = [0, 0], sizes = [1, 32], strides = [1, 1]} : vector<1x96xf32> to vector<1x32xf32>
    %402 = arith.addf %400, %401 : vector<1x32xf32>
    %403 = arith.negf %402 : vector<1x32xf32>
    %404 = math.exp %403 : vector<1x32xf32>
    %cst_79 = arith.constant 1.000000e+00 : f32
    %405 = vector.broadcast %cst_79 : f32 to vector<1x32xf32>
    %406 = arith.addf %405, %404 : vector<1x32xf32>
    %407 = arith.divf %405, %406 : vector<1x32xf32>
    %408 = vector.extract_strided_slice %398 {offsets = [0, 32], sizes = [1, 32], strides = [1, 1]} : vector<1x96xf32> to vector<1x32xf32>
    %409 = vector.extract_strided_slice %399 {offsets = [0, 32], sizes = [1, 32], strides = [1, 1]} : vector<1x96xf32> to vector<1x32xf32>
    %410 = arith.addf %408, %409 : vector<1x32xf32>
    %411 = arith.negf %410 : vector<1x32xf32>
    %412 = math.exp %411 : vector<1x32xf32>
    %cst_80 = arith.constant 1.000000e+00 : f32
    %413 = vector.broadcast %cst_80 : f32 to vector<1x32xf32>
    %414 = arith.addf %413, %412 : vector<1x32xf32>
    %415 = arith.divf %413, %414 : vector<1x32xf32>
    %416 = vector.extract_strided_slice %398 {offsets = [0, 64], sizes = [1, 32], strides = [1, 1]} : vector<1x96xf32> to vector<1x32xf32>
    %417 = vector.extract_strided_slice %399 {offsets = [0, 64], sizes = [1, 32], strides = [1, 1]} : vector<1x96xf32> to vector<1x32xf32>
    %418 = arith.addf %417, %11 : vector<1x32xf32>
    %419 = arith.mulf %407, %418 : vector<1x32xf32>
    %420 = arith.addf %416, %419 : vector<1x32xf32>
    %421 = math.tanh %420 : vector<1x32xf32>
    %cst_81 = arith.constant 1.000000e+00 : f32
    %422 = vector.broadcast %cst_81 : f32 to vector<1x32xf32>
    %423 = arith.subf %422, %415 : vector<1x32xf32>
    %424 = arith.mulf %423, %421 : vector<1x32xf32>
    %425 = arith.mulf %415, %367 : vector<1x32xf32>
    %426 = arith.addf %424, %425 : vector<1x32xf32>
    %cst_82 = arith.constant dense<0.000000e+00> : vector<1x96xf32>
    %427 = tpu.matmul %396, %6, %cst_82 {dimension_numbers = #tpu.dot_dimension_numbers<[1], [0], [0], [1], [0, 0, 1, 1], [], []>} : vector<1x32xf32>, vector<32x96xf32>, vector<1x96xf32> -> vector<1x96xf32>
    %428 = vector.extract_strided_slice %5 {offsets = [7, 0], sizes = [1, 96], strides = [1, 1]} : vector<8x96xf32> to vector<1x96xf32>
    %429 = vector.extract_strided_slice %428 {offsets = [0, 0], sizes = [1, 32], strides = [1, 1]} : vector<1x96xf32> to vector<1x32xf32>
    %430 = vector.extract_strided_slice %427 {offsets = [0, 0], sizes = [1, 32], strides = [1, 1]} : vector<1x96xf32> to vector<1x32xf32>
    %431 = arith.addf %429, %430 : vector<1x32xf32>
    %432 = arith.negf %431 : vector<1x32xf32>
    %433 = math.exp %432 : vector<1x32xf32>
    %cst_83 = arith.constant 1.000000e+00 : f32
    %434 = vector.broadcast %cst_83 : f32 to vector<1x32xf32>
    %435 = arith.addf %434, %433 : vector<1x32xf32>
    %436 = arith.divf %434, %435 : vector<1x32xf32>
    %437 = vector.extract_strided_slice %428 {offsets = [0, 32], sizes = [1, 32], strides = [1, 1]} : vector<1x96xf32> to vector<1x32xf32>
    %438 = vector.extract_strided_slice %427 {offsets = [0, 32], sizes = [1, 32], strides = [1, 1]} : vector<1x96xf32> to vector<1x32xf32>
    %439 = arith.addf %437, %438 : vector<1x32xf32>
    %440 = arith.negf %439 : vector<1x32xf32>
    %441 = math.exp %440 : vector<1x32xf32>
    %cst_84 = arith.constant 1.000000e+00 : f32
    %442 = vector.broadcast %cst_84 : f32 to vector<1x32xf32>
    %443 = arith.addf %442, %441 : vector<1x32xf32>
    %444 = arith.divf %442, %443 : vector<1x32xf32>
    %445 = vector.extract_strided_slice %428 {offsets = [0, 64], sizes = [1, 32], strides = [1, 1]} : vector<1x96xf32> to vector<1x32xf32>
    %446 = vector.extract_strided_slice %427 {offsets = [0, 64], sizes = [1, 32], strides = [1, 1]} : vector<1x96xf32> to vector<1x32xf32>
    %447 = arith.addf %446, %10 : vector<1x32xf32>
    %448 = arith.mulf %436, %447 : vector<1x32xf32>
    %449 = arith.addf %445, %448 : vector<1x32xf32>
    %450 = math.tanh %449 : vector<1x32xf32>
    %cst_85 = arith.constant 1.000000e+00 : f32
    %451 = vector.broadcast %cst_85 : f32 to vector<1x32xf32>
    %452 = arith.subf %451, %444 : vector<1x32xf32>
    %453 = arith.mulf %452, %450 : vector<1x32xf32>
    %454 = arith.mulf %444, %396 : vector<1x32xf32>
    %455 = arith.addf %453, %454 : vector<1x32xf32>
    %cst_86 = arith.constant dense<0.000000e+00> : vector<1x96xf32>
    %456 = tpu.matmul %455, %7, %cst_86 {dimension_numbers = #tpu.dot_dimension_numbers<[1], [0], [0], [1], [0, 0, 1, 1], [], []>} : vector<1x32xf32>, vector<32x96xf32>, vector<1x96xf32> -> vector<1x96xf32>
    %457 = arith.addf %456, %9 : vector<1x96xf32>
    %cst_87 = arith.constant dense<0.000000e+00> : vector<1x96xf32>
    %458 = tpu.matmul %426, %8, %cst_87 {dimension_numbers = #tpu.dot_dimension_numbers<[1], [0], [0], [1], [0, 0, 1, 1], [], []>} : vector<1x32xf32>, vector<32x96xf32>, vector<1x96xf32> -> vector<1x96xf32>
    %459 = vector.extract_strided_slice %457 {offsets = [0, 0], sizes = [1, 32], strides = [1, 1]} : vector<1x96xf32> to vector<1x32xf32>
    %460 = vector.extract_strided_slice %458 {offsets = [0, 0], sizes = [1, 32], strides = [1, 1]} : vector<1x96xf32> to vector<1x32xf32>
    %461 = arith.addf %459, %460 : vector<1x32xf32>
    %462 = arith.negf %461 : vector<1x32xf32>
    %463 = math.exp %462 : vector<1x32xf32>
    %cst_88 = arith.constant 1.000000e+00 : f32
    %464 = vector.broadcast %cst_88 : f32 to vector<1x32xf32>
    %465 = arith.addf %464, %463 : vector<1x32xf32>
    %466 = arith.divf %464, %465 : vector<1x32xf32>
    %467 = vector.extract_strided_slice %457 {offsets = [0, 32], sizes = [1, 32], strides = [1, 1]} : vector<1x96xf32> to vector<1x32xf32>
    %468 = vector.extract_strided_slice %458 {offsets = [0, 32], sizes = [1, 32], strides = [1, 1]} : vector<1x96xf32> to vector<1x32xf32>
    %469 = arith.addf %467, %468 : vector<1x32xf32>
    %470 = arith.negf %469 : vector<1x32xf32>
    %471 = math.exp %470 : vector<1x32xf32>
    %cst_89 = arith.constant 1.000000e+00 : f32
    %472 = vector.broadcast %cst_89 : f32 to vector<1x32xf32>
    %473 = arith.addf %472, %471 : vector<1x32xf32>
    %474 = arith.divf %472, %473 : vector<1x32xf32>
    %475 = vector.extract_strided_slice %457 {offsets = [0, 64], sizes = [1, 32], strides = [1, 1]} : vector<1x96xf32> to vector<1x32xf32>
    %476 = vector.extract_strided_slice %458 {offsets = [0, 64], sizes = [1, 32], strides = [1, 1]} : vector<1x96xf32> to vector<1x32xf32>
    %477 = arith.addf %476, %11 : vector<1x32xf32>
    %478 = arith.mulf %466, %477 : vector<1x32xf32>
    %479 = arith.addf %475, %478 : vector<1x32xf32>
    %480 = math.tanh %479 : vector<1x32xf32>
    %cst_90 = arith.constant 1.000000e+00 : f32
    %481 = vector.broadcast %cst_90 : f32 to vector<1x32xf32>
    %482 = arith.subf %481, %474 : vector<1x32xf32>
    %483 = arith.mulf %482, %480 : vector<1x32xf32>
    %484 = arith.mulf %474, %426 : vector<1x32xf32>
    %485 = arith.addf %483, %484 : vector<1x32xf32>
    %486 = tpu.concatenate %72, %131, %190, %249, %308, %367, %426, %485 in 0 : vector<1x32xf32>, vector<1x32xf32>, vector<1x32xf32>, vector<1x32xf32>, vector<1x32xf32>, vector<1x32xf32>, vector<1x32xf32>, vector<1x32xf32> -> vector<8x32xf32>
    %c0_91 = arith.constant 0 : index
    %c0_92 = arith.constant 0 : index
    %487 = vector.load %arg9[%c0_91, %c0_92] : memref<32x6xf32, #tpu.memory_space<vmem>>, vector<32x6xf32>
    %cst_93 = arith.constant dense<0.000000e+00> : vector<8x6xf32>
    %488 = tpu.matmul %486, %487, %cst_93 {dimension_numbers = #tpu.dot_dimension_numbers<[1], [0], [0], [1], [0, 0, 1, 1], [], []>} : vector<8x32xf32>, vector<32x6xf32>, vector<8x6xf32> -> vector<8x6xf32>
    %c0_94 = arith.constant 0 : index
    %c0_95 = arith.constant 0 : index
    %489 = vector.load %arg10[%c0_94, %c0_95] : memref<1x6xf32, #tpu.memory_space<vmem>>, vector<1x6xf32>
    %490 = vector.broadcast %489 : vector<1x6xf32> to vector<8x6xf32>
    %491 = arith.addf %488, %490 : vector<8x6xf32>
    %c0_96 = arith.constant 0 : index
    %c0_97 = arith.constant 0 : index
    %492 = vector.load %arg11[%c0_96, %c0_97] : memref<8x6xf32, #tpu.memory_space<vmem>>, vector<8x6xf32>
    tpu.vector_store %arg11[%c0_96, %c0_97], %491 {strides = array<i32>} : memref<8x6xf32, #tpu.memory_space<vmem>>, vector<8x6xf32>,
    return
  }
}

</mosaic_0001>

<llo_original>
// kernel: gru_forward.1
$region0: #{gru_forward.1}
  #allocation0 [shape = 'u32[]', space=smem, size = 0x4, offset = 0x4, fixed_abs, tag = 'smem constant byte address 0x4 - core index']
  #allocation1 [shape = 'u32[144,128]{1,0:T(1,128)}', space=vmem, size = 0x12000, scoped, tag = 'internal scratch']
  %s0 = inlined_call_operand.vmem [shape: f32[8,4], index: 0, kind: input, shape index: {}]
  %s1 = inlined_call_operand.vmem [shape: f32[4,96], index: 1, kind: input, shape index: {}]
  %s2 = inlined_call_operand.vmem [shape: f32[32,96], index: 2, kind: input, shape index: {}]
  %s3 = inlined_call_operand.vmem [shape: f32[1,96], index: 3, kind: input, shape index: {}]
  %s4 = inlined_call_operand.vmem [shape: f32[1,32], index: 4, kind: input, shape index: {}]
  %s5 = inlined_call_operand.vmem [shape: f32[32,96], index: 5, kind: input, shape index: {}]
  %s6 = inlined_call_operand.hbm [shape: f32[32,96], index: 6, kind: input, shape index: {}]
  %s7 = inlined_call_operand.vmem [shape: f32[1,96], index: 7, kind: input, shape index: {}]
  %s8 = inlined_call_operand.vmem [shape: f32[1,32], index: 8, kind: input, shape index: {}]
  %s9 = inlined_call_operand.vmem [shape: f32[32,6], index: 9, kind: input, shape index: {}]
  %s10 = inlined_call_operand.vmem [shape: f32[1,6], index: 10, kind: input, shape index: {}]
  %s11 = inlined_call_operand.hbm [shape: f32[8,6], index: 11, kind: output, shape index: {}]
  %s12 = sld [smem:[#allocation0]]
  $region58: #{gru_forward.1} parent=0
    _
  %s14 = ssub.s32 1, %s12
  %s15 = scalar_select 0, %s14, %s12
  $region1: #{gru_forward.1} parent=0
    #allocation2 [shape = 'u8[16384]{0}', space=vmem, size = 0x4000, scoped, tag = 'input window, operand 6, single buffered']
    #allocation3 [shape = 's32[1]{0}', space=sflag, size = 0x4, scoped, tag = 'scoped memory for gru_forward.1']
    #allocation4 [shape = 's32[1]{0}', space=sflag, size = 0x4, scoped, tag = 'scoped memory for gru_forward.1']
    #allocation5 [shape = 'u8[4096]{0}', space=vmem, size = 0x1000, scoped, tag = 'output window, operand 0, single buffered']
    %16 = vsyncpa [#allocation3], 0
    %17 = vsyncpa [#allocation4], 0
    // Predicated region
    $region2: #{gru_forward.1} parent=1 // pred_check
      _
    $region3: #{gru_forward.1} parent=1 // pred_check_branch
      %19 = sbr.rel (0) target = $region5
    $region4: #{gru_forward.1} parent=1 // pred_region
      _
    $region5: #{gru_forward.1} parent=1 // pred_fallthru
      _
    // Predicated region
    $region6: #{gru_forward.1} parent=1 // pred_check
      _
    $region7: #{gru_forward.1} parent=1 // pred_check_branch
      %21 = sbr.rel (0) target = $region9
    $region8: #{gru_forward.1} parent=1 // pred_region
      _
    $region9: #{gru_forward.1} parent=1 // pred_fallthru
      _
    // Predicated region
    $region10: #{gru_forward.1} parent=1 // pred_check
      _
    $region11: #{gru_forward.1} parent=1 // pred_check_branch
      %23 = sbr.rel (0) target = $region13
    $region12: #{gru_forward.1} parent=1 // pred_region
      _
    $region13: #{gru_forward.1} parent=1 // pred_fallthru
      _
    // Predicated region
    $region14: #{gru_forward.1} parent=1 // pred_check
      _
    $region15: #{gru_forward.1} parent=1 // pred_check_branch
      %25 = sbr.rel (0) target = $region17
    $region16: #{gru_forward.1} parent=1 // pred_region
      _
    $region17: #{gru_forward.1} parent=1 // pred_fallthru
      _
    // Predicated region
    $region18: #{gru_forward.1} parent=1 // pred_check
      _
    $region19: #{gru_forward.1} parent=1 // pred_check_branch
      %27 = sbr.rel (0) target = $region21
    $region20: #{gru_forward.1} parent=1 // pred_region
      _
    $region21: #{gru_forward.1} parent=1 // pred_fallthru
      _
    // Predicated region
    $region22: #{gru_forward.1} parent=1 // pred_check
      _
    $region23: #{gru_forward.1} parent=1 // pred_check_branch
      %29 = sbr.rel (0) target = $region25
    $region24: #{gru_forward.1} parent=1 // pred_region
      _
    $region25: #{gru_forward.1} parent=1 // pred_fallthru
      _
    // Predicated region
    $region26: #{gru_forward.1} parent=1 // pred_check
      _
    $region27: #{gru_forward.1} parent=1 // pred_check_branch
      %31 = sbr.rel (0) target = $region29
    $region28: #{gru_forward.1} parent=1 // pred_region
      %s33 = ssub.s32 512, 512
      %34 = vsyncadd [#allocation3], %s33
      %s35 = sshll.u32 [#allocation2], 4
      %s36 = int_to_ptr.vmem [resolvable:$true] %s35
      %41 = dma.hbm_to_vmem [thread:$0]  %s6, 512, %s36, [#allocation3], 128, 128, 8
    $region29: #{gru_forward.1} parent=1 // pred_fallthru
      _
    // Predicated region
    $region30: #{gru_forward.1} parent=1 // pred_check
      _
    $region31: #{gru_forward.1} parent=1 // pred_check_branch
      %43 = sbr.rel (0) target = $region33
    $region32: #{gru_forward.1} parent=1 // pred_region
      _
    $region33: #{gru_forward.1} parent=1 // pred_fallthru
      _
    // Predicated region
    $region34: #{gru_forward.1} parent=1 // pred_check
      _
    $region35: #{gru_forward.1} parent=1 // pred_check_branch
      %45 = sbr.rel (0) target = $region37
    $region36: #{gru_forward.1} parent=1 // pred_region
      _
    $region37: #{gru_forward.1} parent=1 // pred_fallthru
      _
    // Predicated region
    $region38: #{gru_forward.1} parent=1 // pred_check
      _
    $region39: #{gru_forward.1} parent=1 // pred_check_branch
      %47 = sbr.rel (0) target = $region41
    $region40: #{gru_forward.1} parent=1 // pred_region
      _
    $region41: #{gru_forward.1} parent=1 // pred_fallthru
      _
    // Predicated region
    $region42: #{gru_forward.1} parent=1 // pred_check
      _
    $region43: #{gru_forward.1} parent=1 // pred_check_branch
      %49 = sbr.rel (0) target = $region45
    $region44: #{gru_forward.1} parent=1 // pred_region
      _
    $region45: #{gru_forward.1} parent=1 // pred_fallthru
      _
    // Predicated region
    $region46: #{gru_forward.1} parent=1 // pred_check
      _
    $region47: #{gru_forward.1} parent=1 // pred_check_branch
      %51 = sbr.rel (0) target = $region49
    $region48: #{gru_forward.1} parent=1 // pred_region
      %52 = dma.done [#allocation3], 512
    $region49: #{gru_forward.1} parent=1 // pred_fallthru
      _
    %v53 = vld [vmem:[%s0] sm:$0xff]
    %v54 = vld [vmem:[%s1] sm:$0xf]
    %v55 = vld [vmem:[%s3] sm:$0x1]
    %v57 = vlaneseq
    %v58 = vshrl.u32 %v57, 7
    %v59 = vsub.s32 0, %v58
    %v60 = vrot.slane %v55, %v59
    %vm62 = vcmask 31744
    %v64 = vsel %vm62, %v53, 0
    %vm66 = vcmask 1043456
    %v68 = vsel %vm66, %v54, 0
    %70 = vmatprep.subr.mxu0 0.0
    %71 = vmatpush1.msra.mxu0 0.0
    %72 = vmatprep.subr.mxu0 0.0
    %73 = vmatpush1.msra.mxu0 0.0
    %74 = vmatprep.subr.mxu0 0.0
    %75 = vmatpush1.msra.mxu0 0.0
    %76 = vmatprep.subr.mxu0 0.0
    %77 = vmatpush1.msra.mxu0 0.0
    %78 = vmatprep.subr.mxu0 0.0
    %79 = vmatpush1.msra.mxu0 0.0
    %80 = vmatprep.subr.mxu0 0.0
    %81 = vmatpush1.msra.mxu0 0.0
    %82 = vmatprep.subr.mxu0 0.0
    %83 = vmatpush1.msra.mxu0 0.0
    %84 = vmatprep.subr.mxu0 0.0
    %85 = vmatpush1.msra.mxu0 0.0
    %86 = vmatprep.subr.mxu0 0.0
    %87 = vmatpush1.msra.mxu0 0.0
    %88 = vmatprep.subr.mxu0 0.0
    %89 = vmatpush1.msra.mxu0 0.0
    %90 = vmatprep.subr.mxu0 0.0
    %91 = vmatpush1.msra.mxu0 0.0
    %92 = vmatprep.subr.mxu0 0.0
    %93 = vmatpush1.msra.mxu0 0.0
    %94 = vmatprep.subr.mxu0 0.0
    %95 = vmatpush1.msra.mxu0 0.0
    %96 = vmatprep.subr.mxu0 0.0
    %97 = vmatpush1.msra.mxu0 0.0
    %98 = vmatprep.subr.mxu0 0.0
    %99 = vmatpush1.msra.mxu0 0.0
    %100 = vmatprep.subr.mxu0 0.0
    %101 = vmatpush1.msra.mxu0 %v68
    %102 = vmatprep.subr.mxu0 0.0
    %103 = vmatpush2.msra.mxu0 0.0
    %104 = vmatprep.subr.mxu0 0.0
    %105 = vmatpush2.msra.mxu0 0.0
    %106 = vmatprep.subr.mxu0 0.0
    %107 = vmatpush2.msra.mxu0 0.0
    %108 = vmatprep.subr.mxu0 0.0
    %109 = vmatpush2.msra.mxu0 0.0
    %110 = vmatprep.subr.mxu0 0.0
    %111 = vmatpush2.msra.mxu0 0.0
    %112 = vmatprep.subr.mxu0 0.0
    %113 = vmatpush2.msra.mxu0 0.0
    %114 = vmatprep.subr.mxu0 0.0
    %115 = vmatpush2.msra.mxu0 0.0
    %116 = vmatprep.subr.mxu0 0.0
    %117 = vmatpush2.msra.mxu0 0.0
    %118 = vmatprep.subr.mxu0 0.0
    %119 = vmatpush2.msra.mxu0 0.0
    %120 = vmatprep.subr.mxu0 0.0
    %121 = vmatpush2.msra.mxu0 0.0
    %122 = vmatprep.subr.mxu0 0.0
    %123 = vmatpush2.msra.mxu0 0.0
    %124 = vmatprep.subr.mxu0 0.0
    %125 = vmatpush2.msra.mxu0 0.0
    %126 = vmatprep.subr.mxu0 0.0
    %127 = vmatpush2.msra.mxu0 0.0
    %128 = vmatprep.subr.mxu0 0.0
    %129 = vmatpush2.msra.mxu0 0.0
    %130 = vmatprep.subr.mxu0 0.0
    %131 = vmatpush2.msra.mxu0 0.0
    %132 = vmatprep.subr.mxu0 0.0
    %133 = vmatpush2.msra.mxu0 0.0
    %134 = vmatprep.mubr.f32.mxu0 0.0
    %135 = vmatmul.mubr.f32.gmra.mxu0 %v64
    %v136 = vpop.f32.mrf.mxu0
    %v137 = vadd.f32 %v60, %v136
    %v138 = vpop.f32.mrf.mxu0
    %139 = vdwg.mxu0
    %v140 = vld [vmem:[%s2] sm:$0xff]
    %v141 = vld [vmem:[%s2 + $0x8] sm:$0xff]
    %v142 = vld [vmem:[%s2 + $0x10] sm:$0xff]
    %v143 = vld [vmem:[%s2 + $0x18] sm:$0xff]
    %v144 = vld [vmem:[%s5] sm:$0xff]
    %v145 = vld [vmem:[%s5 + $0x8] sm:$0xff]
    %v146 = vld [vmem:[%s5 + $0x10] sm:$0xff]
    %v147 = vld [vmem:[%s5 + $0x18] sm:$0xff]
    %v148 = vld [vmem:[#allocation2] sm:$0xff]
    %v149 = vld [vmem:[#allocation2 + $0x8] sm:$0xff]
    %v150 = vld [vmem:[#allocation2 + $0x10] sm:$0xff]
    %v151 = vld [vmem:[#allocation2 + $0x18] sm:$0xff]
    %v152 = vld [vmem:[%s7] sm:$0x1]
    %v153 = vld [vmem:[%s4] sm:$0x1]
    %v154 = vld [vmem:[%s8] sm:$0x1]
    %vm155 = vcmask 261120
    %v157 = vsel %vm155, 0.0, 0
    %159 = vmatprep.subr.mxu0 0.0
    %160 = vmatpush1.msra.mxu0 0.0
    %161 = vmatprep.subr.mxu0 0.0
    %162 = vmatpush1.msra.mxu0 0.0
    %163 = vmatprep.subr.mxu0 0.0
    %164 = vmatpush1.msra.mxu0 0.0
    %165 = vmatprep.subr.mxu0 0.0
    %166 = vmatpush1.msra.mxu0 0.0
    %167 = vmatprep.subr.mxu0 0.0
    %168 = vmatpush1.msra.mxu0 0.0
    %169 = vmatprep.subr.mxu0 0.0
    %170 = vmatpush1.msra.mxu0 0.0
    %171 = vmatprep.subr.mxu0 0.0
    %172 = vmatpush1.msra.mxu0 0.0
    %173 = vmatprep.subr.mxu0 0.0
    %174 = vmatpush1.msra.mxu0 0.0
    %175 = vmatprep.subr.mxu0 0.0
    %176 = vmatpush1.msra.mxu0 0.0
    %177 = vmatprep.subr.mxu0 0.0
    %178 = vmatpush1.msra.mxu0 0.0
    %179 = vmatprep.subr.mxu0 0.0
    %180 = vmatpush1.msra.mxu0 0.0
    %181 = vmatprep.subr.mxu0 0.0
    %182 = vmatpush1.msra.mxu0 0.0
    %183 = vmatprep.subr.mxu0 0.0
    %184 = vmatpush1.msra.mxu0 %v143
    %185 = vmatprep.subr.mxu0 0.0
    %186 = vmatpush1.msra.mxu0 %v142
    %187 = vmatprep.subr.mxu0 0.0
    %188 = vmatpush1.msra.mxu0 %v141
    %189 = vmatprep.subr.mxu0 0.0
    %190 = vmatpush1.msra.mxu0 %v140
    %191 = vmatprep.subr.mxu0 0.0
    %192 = vmatpush2.msra.mxu0 0.0
    %193 = vmatprep.subr.mxu0 0.0
    %194 = vmatpush2.msra.mxu0 0.0
    %195 = vmatprep.subr.mxu0 0.0
    %196 = vmatpush2.msra.mxu0 0.0
    %197 = vmatprep.subr.mxu0 0.0
    %198 = vmatpush2.msra.mxu0 0.0
    %199 = vmatprep.subr.mxu0 0.0
    %200 = vmatpush2.msra.mxu0 0.0
    %201 = vmatprep.subr.mxu0 0.0
    %202 = vmatpush2.msra.mxu0 0.0
    %203 = vmatprep.subr.mxu0 0.0
    %204 = vmatpush2.msra.mxu0 0.0
    %205 = vmatprep.subr.mxu0 0.0
    %206 = vmatpush2.msra.mxu0 0.0
    %207 = vmatprep.subr.mxu0 0.0
    %208 = vmatpush2.msra.mxu0 0.0
    %209 = vmatprep.subr.mxu0 0.0
    %210 = vmatpush2.msra.mxu0 0.0
    %211 = vmatprep.subr.mxu0 0.0
    %212 = vmatpush2.msra.mxu0 0.0
    %213 = vmatprep.subr.mxu0 0.0
    %214 = vmatpush2.msra.mxu0 0.0
    %215 = vmatprep.subr.mxu0 0.0
    %216 = vmatpush2.msra.mxu0 0.0
    %217 = vmatprep.subr.mxu0 0.0
    %218 = vmatpush2.msra.mxu0 0.0
    %219 = vmatprep.subr.mxu0 0.0
    %220 = vmatpush2.msra.mxu0 0.0
    %221 = vmatprep.subr.mxu0 0.0
    %222 = vmatpush2.msra.mxu0 0.0
    %223 = vmatprep.mubr.f32.mxu0 0.0
    %224 = vmatmul.mubr.f32.gmra.mxu0 %v157
    %v225 = vpop.f32.mrf.mxu0
    %v226 = vadd.f32 0.0, %v225
    %v227 = vpop.f32.mrf.mxu0
    %228 = vdwg.mxu0
    %v229 = vadd.f32 %v137, %v226
    %v230 = vxor.u32 %v229, 2147483648
    %v231 = vmul.f32 %v230, 1.442695
    %v232 = vpow.pop %v231
    %v233 = vadd.f32 %v232, 1.0
    %v234 = vrcp.pop %v233
    %v235 = vmul.f32 1.0, %v234
    %v237 = vlaneseq
    %v238 = vshrl.u32 %v237, 7
    %v239 = vsub.s32 0, %v238
    %v240 = vrot.slane %v153, %v239
    %241 = vrot.lane.b32.xlu0 %v240, 64
    %v242 = vpop.permute.xlu0 %241
    %v244 = vadd.f32 %v226, %v242
    %246 = vrot.lane.b32.xlu0 %v244, 64
    %v247 = vpop.permute.xlu0 %246
    %v249 = vmul.f32 %v235, %v247
    %251 = vrot.lane.b32.xlu0 %v249, 64
    %v252 = vpop.permute.xlu0 %251
    %v254 = vadd.f32 %v137, %v252
    %v255 = vtanh.pop %v254
    %v256 = vsub.f32 1.0, %v235
    %258 = vrot.lane.b32.xlu0 %v255, 96
    %v259 = vpop.permute.xlu0 %258
    %v261 = vmul.f32 %v256, %v259
    %v262 = vmul.f32 %v235, 0.0
    %v263 = vadd.f32 %v261, %v262
    %265 = vrot.lane.b32.xlu0 %v263, 96
    %v266 = vpop.permute.xlu0 %265
    %v267 = vsel %vm155, %v266, 0
    %269 = vmatprep.subr.mxu0 0.0
    %270 = vmatpush1.msra.mxu0 0.0
    %271 = vmatprep.subr.mxu0 0.0
    %272 = vmatpush1.msra.mxu0 0.0
    %273 = vmatprep.subr.mxu0 0.0
    %274 = vmatpush1.msra.mxu0 0.0
    %275 = vmatprep.subr.mxu0 0.0
    %276 = vmatpush1.msra.mxu0 0.0
    %277 = vmatprep.subr.mxu0 0.0
    %278 = vmatpush1.msra.mxu0 0.0
    %279 = vmatprep.subr.mxu0 0.0
    %280 = vmatpush1.msra.mxu0 0.0
    %281 = vmatprep.subr.mxu0 0.0
    %282 = vmatpush1.msra.mxu0 0.0
    %283 = vmatprep.subr.mxu0 0.0
    %284 = vmatpush1.msra.mxu0 0.0
    %285 = vmatprep.subr.mxu0 0.0
    %286 = vmatpush1.msra.mxu0 0.0
    %287 = vmatprep.subr.mxu0 0.0
    %288 = vmatpush1.msra.mxu0 0.0
    %289 = vmatprep.subr.mxu0 0.0
    %290 = vmatpush1.msra.mxu0 0.0
    %291 = vmatprep.subr.mxu0 0.0
    %292 = vmatpush1.msra.mxu0 0.0
    %293 = vmatprep.subr.mxu0 0.0
    %294 = vmatpush1.msra.mxu0 %v147
    %295 = vmatprep.subr.mxu0 0.0
    %296 = vmatpush1.msra.mxu0 %v146
    %297 = vmatprep.subr.mxu0 0.0
    %298 = vmatpush1.msra.mxu0 %v145
    %299 = vmatprep.subr.mxu0 0.0
    %300 = vmatpush1.msra.mxu0 %v144
    %301 = vmatprep.subr.mxu0 0.0
    %302 = vmatpush2.msra.mxu0 0.0
    %303 = vmatprep.subr.mxu0 0.0
    %304 = vmatpush2.msra.mxu0 0.0
    %305 = vmatprep.subr.mxu0 0.0
    %306 = vmatpush2.msra.mxu0 0.0
    %307 = vmatprep.subr.mxu0 0.0
    %308 = vmatpush2.msra.mxu0 0.0
    %309 = vmatprep.subr.mxu0 0.0
    %310 = vmatpush2.msra.mxu0 0.0
    %311 = vmatprep.subr.mxu0 0.0
    %312 = vmatpush2.msra.mxu0 0.0
    %313 = vmatprep.subr.mxu0 0.0
    %314 = vmatpush2.msra.mxu0 0.0
    %315 = vmatprep.subr.mxu0 0.0
    %316 = vmatpush2.msra.mxu0 0.0
    %317 = vmatprep.subr.mxu0 0.0
    %318 = vmatpush2.msra.mxu0 0.0
    %319 = vmatprep.subr.mxu0 0.0
    %320 = vmatpush2.msra.mxu0 0.0
    %321 = vmatprep.subr.mxu0 0.0
    %322 = vmatpush2.msra.mxu0 0.0
    %323 = vmatprep.subr.mxu0 0.0
    %324 = vmatpush2.msra.mxu0 0.0
    %325 = vmatprep.subr.mxu0 0.0
    %326 = vmatpush2.msra.mxu0 0.0
    %327 = vmatprep.subr.mxu0 0.0
    %328 = vmatpush2.msra.mxu0 0.0
    %329 = vmatprep.subr.mxu0 0.0
    %330 = vmatpush2.msra.mxu0 0.0
    %331 = vmatprep.subr.mxu0 0.0
    %332 = vmatpush2.msra.mxu0 0.0
    %333 = vmatprep.mubr.f32.mxu0 0.0
    %334 = vmatmul.mubr.f32.gmra.mxu0 %v267
    %v335 = vpop.f32.mrf.mxu0
    %v336 = vadd.f32 %v152, %v335
    %v337 = vpop.f32.mrf.mxu0
    %338 = vdwg.mxu0
    %339 = vmatprep.subr.mxu0 0.0
    %340 = vmatpush1.msra.mxu0 0.0
    %341 = vmatprep.subr.mxu0 0.0
    %342 = vmatpush1.msra.mxu0 0.0
    %343 = vmatprep.subr.mxu0 0.0
    %344 = vmatpush1.msra.mxu0 0.0
    %345 = vmatprep.subr.mxu0 0.0
    %346 = vmatpush1.msra.mxu0 0.0
    %347 = vmatprep.subr.mxu0 0.0
    %348 = vmatpush1.msra.mxu0 0.0
    %349 = vmatprep.subr.mxu0 0.0
    %350 = vmatpush1.msra.mxu0 0.0
    %351 = vmatprep.subr.mxu0 0.0
    %352 = vmatpush1.msra.mxu0 0.0
    %353 = vmatprep.subr.mxu0 0.0
    %354 = vmatpush1.msra.mxu0 0.0
    %355 = vmatprep.subr.mxu0 0.0
    %356 = vmatpush1.msra.mxu0 0.0
    %357 = vmatprep.subr.mxu0 0.0
    %358 = vmatpush1.msra.mxu0 0.0
    %359 = vmatprep.subr.mxu0 0.0
    %360 = vmatpush1.msra.mxu0 0.0
    %361 = vmatprep.subr.mxu0 0.0
    %362 = vmatpush1.msra.mxu0 0.0
    %363 = vmatprep.subr.mxu0 0.0
    %364 = vmatpush1.msra.mxu0 %v151
    %365 = vmatprep.subr.mxu0 0.0
    %366 = vmatpush1.msra.mxu0 %v150
    %367 = vmatprep.subr.mxu0 0.0
    %368 = vmatpush1.msra.mxu0 %v149
    %369 = vmatprep.subr.mxu0 0.0
    %370 = vmatpush1.msra.mxu0 %v148
    %371 = vmatprep.subr.mxu0 0.0
    %372 = vmatpush2.msra.mxu0 0.0
    %373 = vmatprep.subr.mxu0 0.0
    %374 = vmatpush2.msra.mxu0 0.0
    %375 = vmatprep.subr.mxu0 0.0
    %376 = vmatpush2.msra.mxu0 0.0
    %377 = vmatprep.subr.mxu0 0.0
    %378 = vmatpush2.msra.mxu0 0.0
    %379 = vmatprep.subr.mxu0 0.0
    %380 = vmatpush2.msra.mxu0 0.0
    %381 = vmatprep.subr.mxu0 0.0
    %382 = vmatpush2.msra.mxu0 0.0
    %383 = vmatprep.subr.mxu0 0.0
    %384 = vmatpush2.msra.mxu0 0.0
    %385 = vmatprep.subr.mxu0 0.0
    %386 = vmatpush2.msra.mxu0 0.0
    %387 = vmatprep.subr.mxu0 0.0
    %388 = vmatpush2.msra.mxu0 0.0
    %389 = vmatprep.subr.mxu0 0.0
    %390 = vmatpush2.msra.mxu0 0.0
    %391 = vmatprep.subr.mxu0 0.0
    %392 = vmatpush2.msra.mxu0 0.0
    %393 = vmatprep.subr.mxu0 0.0
    %394 = vmatpush2.msra.mxu0 0.0
    %395 = vmatprep.subr.mxu0 0.0
    %396 = vmatpush2.msra.mxu0 0.0
    %397 = vmatprep.subr.mxu0 0.0
    %398 = vmatpush2.msra.mxu0 0.0
    %399 = vmatprep.subr.mxu0 0.0
    %400 = vmatpush2.msra.mxu0 0.0
    %401 = vmatprep.subr.mxu0 0.0
    %402 = vmatpush2.msra.mxu0 0.0
    %403 = vmatprep.mubr.f32.mxu0 0.0
    %404 = vmatmul.mubr.f32.gmra.mxu0 %v157
    %v405 = vpop.f32.mrf.mxu0
    %v406 = vadd.f32 0.0, %v405
    %v407 = vpop.f32.mrf.mxu0
    %408 = vdwg.mxu0
    %v409 = vadd.f32 %v336, %v406
    %v410 = vxor.u32 %v409, 2147483648
    %v411 = vmul.f32 %v410, 1.442695
    %v412 = vpow.pop %v411
    %v413 = vadd.f32 %v412, 1.0
    %v414 = vrcp.pop %v413
    %v415 = vmul.f32 1.0, %v414
    %v417 = vlaneseq
    %v418 = vshrl.u32 %v417, 7
    %v419 = vsub.s32 0, %v418
    %v420 = vrot.slane %v154, %v419
    %421 = vrot.lane.b32.xlu0 %v420, 64
    %v422 = vpop.permute.xlu0 %421
    %v424 = vadd.f32 %v406, %v422
    %426 = vrot.lane.b32.xlu0 %v424, 64
    %v427 = vpop.permute.xlu0 %426
    %v429 = vmul.f32 %v415, %v427
    %431 = vrot.lane.b32.xlu0 %v429, 64
    %v432 = vpop.permute.xlu0 %431
    %v434 = vadd.f32 %v336, %v432
    %v435 = vtanh.pop %v434
    %v436 = vsub.f32 1.0, %v415
    %438 = vrot.lane.b32.xlu0 %v435, 96
    %v439 = vpop.permute.xlu0 %438
    %v441 = vmul.f32 %v436, %v439
    %v442 = vmul.f32 %v415, 0.0
    %v443 = vadd.f32 %v441, %v442
    %444 = vmatprep.subr.mxu0 0.0
    %445 = vmatpush1.msra.mxu0 0.0
    %446 = vmatprep.subr.mxu0 0.0
    %447 = vmatpush1.msra.mxu0 0.0
    %448 = vmatprep.subr.mxu0 0.0
    %449 = vmatpush1.msra.mxu0 0.0
    %450 = vmatprep.subr.mxu0 0.0
    %451 = vmatpush1.msra.mxu0 0.0
    %452 = vmatprep.subr.mxu0 0.0
    %453 = vmatpush1.msra.mxu0 0.0
    %454 = vmatprep.subr.mxu0 0.0
    %455 = vmatpush1.msra.mxu0 0.0
    %456 = vmatprep.subr.mxu0 0.0
    %457 = vmatpush1.msra.mxu0 0.0
    %458 = vmatprep.subr.mxu0 0.0
    %459 = vmatpush1.msra.mxu0 0.0
    %460 = vmatprep.subr.mxu0 0.0
    %461 = vmatpush1.msra.mxu0 0.0
    %462 = vmatprep.subr.mxu0 0.0
    %463 = vmatpush1.msra.mxu0 0.0
    %464 = vmatprep.subr.mxu0 0.0
    %465 = vmatpush1.msra.mxu0 0.0
    %466 = vmatprep.subr.mxu0 0.0
    %467 = vmatpush1.msra.mxu0 0.0
    %468 = vmatprep.subr.mxu0 0.0
    %469 = vmatpush1.msra.mxu0 %v143
    %470 = vmatprep.subr.mxu0 0.0
    %471 = vmatpush1.msra.mxu0 %v142
    %472 = vmatprep.subr.mxu0 0.0
    %473 = vmatpush1.msra.mxu0 %v141
    %474 = vmatprep.subr.mxu0 0.0
    %475 = vmatpush1.msra.mxu0 %v140
    %476 = vmatprep.subr.mxu0 0.0
    %477 = vmatpush2.msra.mxu0 0.0
    %478 = vmatprep.subr.mxu0 0.0
    %479 = vmatpush2.msra.mxu0 0.0
    %480 = vmatprep.subr.mxu0 0.0
    %481 = vmatpush2.msra.mxu0 0.0
    %482 = vmatprep.subr.mxu0 0.0
    %483 = vmatpush2.msra.mxu0 0.0
    %484 = vmatprep.subr.mxu0 0.0
    %485 = vmatpush2.msra.mxu0 0.0
    %486 = vmatprep.subr.mxu0 0.0
    %487 = vmatpush2.msra.mxu0 0.0
    %488 = vmatprep.subr.mxu0 0.0
    %489 = vmatpush2.msra.mxu0 0.0
    %490 = vmatprep.subr.mxu0 0.0
    %491 = vmatpush2.msra.mxu0 0.0
    %492 = vmatprep.subr.mxu0 0.0
    %493 = vmatpush2.msra.mxu0 0.0
    %494 = vmatprep.subr.mxu0 0.0
    %495 = vmatpush2.msra.mxu0 0.0
    %496 = vmatprep.subr.mxu0 0.0
    %497 = vmatpush2.msra.mxu0 0.0
    %498 = vmatprep.subr.mxu0 0.0
    %499 = vmatpush2.msra.mxu0 0.0
    %500 = vmatprep.subr.mxu0 0.0
    %501 = vmatpush2.msra.mxu0 0.0
    %502 = vmatprep.subr.mxu0 0.0
    %503 = vmatpush2.msra.mxu0 0.0
    %504 = vmatprep.subr.mxu0 0.0
    %505 = vmatpush2.msra.mxu0 0.0
    %506 = vmatprep.subr.mxu0 0.0
    %507 = vmatpush2.msra.mxu0 0.0
    %508 = vmatprep.mubr.f32.mxu0 0.0
    %509 = vmatmul.mubr.f32.gmra.mxu0 %v267
    %v510 = vpop.f32.mrf.mxu0
    %v511 = vadd.f32 0.0, %v510
    %v512 = vpop.f32.mrf.mxu0
    %513 = vdwg.mxu0
    %v515 = vrot.slane %v511, 7
    %v517 = vadd.f32 %v137, %v515
    %v518 = vxor.u32 %v517, 2147483648
    %v519 = vmul.f32 %v518, 1.442695
    %v520 = vpow.pop %v519
    %v521 = vadd.f32 %v520, 1.0
    %v522 = vrcp.pop %v521
    %v523 = vmul.f32 1.0, %v522
    %v524 = vadd.f32 %v511, %v242
    %v526 = vrot.slane %v524, 7
    %527 = vrot.lane.b32.xlu0 %v526, 64
    %v528 = vpop.permute.xlu0 %527
    %v530 = vmul.f32 %v523, %v528
    %532 = vrot.lane.b32.xlu0 %v530, 64
    %v533 = vpop.permute.xlu0 %532
    %v535 = vadd.f32 %v137, %v533
    %v536 = vtanh.pop %v535
    %v537 = vsub.f32 1.0, %v523
    %539 = vrot.lane.b32.xlu0 %v536, 96
    %v540 = vpop.permute.xlu0 %539
    %v542 = vmul.f32 %v537, %v540
    %v543 = vrot.slane %v263, 7
    %v545 = vmul.f32 %v523, %v543
    %v546 = vadd.f32 %v542, %v545
    %v548 = vrot.slane %v546, 1
    %549 = vrot.lane.b32.xlu0 %v548, 96
    %v550 = vpop.permute.xlu0 %549
    %v551 = vsel %vm155, %v550, 0
    %553 = vmatprep.subr.mxu0 0.0
    %554 = vmatpush1.msra.mxu0 0.0
    %555 = vmatprep.subr.mxu0 0.0
    %556 = vmatpush1.msra.mxu0 0.0
    %557 = vmatprep.subr.mxu0 0.0
    %558 = vmatpush1.msra.mxu0 0.0
    %559 = vmatprep.subr.mxu0 0.0
    %560 = vmatpush1.msra.mxu0 0.0
    %561 = vmatprep.subr.mxu0 0.0
    %562 = vmatpush1.msra.mxu0 0.0
    %563 = vmatprep.subr.mxu0 0.0
    %564 = vmatpush1.msra.mxu0 0.0
    %565 = vmatprep.subr.mxu0 0.0
    %566 = vmatpush1.msra.mxu0 0.0
    %567 = vmatprep.subr.mxu0 0.0
    %568 = vmatpush1.msra.mxu0 0.0
    %569 = vmatprep.subr.mxu0 0.0
    %570 = vmatpush1.msra.mxu0 0.0
    %571 = vmatprep.subr.mxu0 0.0
    %572 = vmatpush1.msra.mxu0 0.0
    %573 = vmatprep.subr.mxu0 0.0
    %574 = vmatpush1.msra.mxu0 0.0
    %575 = vmatprep.subr.mxu0 0.0
    %576 = vmatpush1.msra.mxu0 0.0
    %577 = vmatprep.subr.mxu0 0.0
    %578 = vmatpush1.msra.mxu0 %v147
    %579 = vmatprep.subr.mxu0 0.0
    %580 = vmatpush1.msra.mxu0 %v146
    %581 = vmatprep.subr.mxu0 0.0
    %582 = vmatpush1.msra.mxu0 %v145
    %583 = vmatprep.subr.mxu0 0.0
    %584 = vmatpush1.msra.mxu0 %v144
    %585 = vmatprep.subr.mxu0 0.0
    %586 = vmatpush2.msra.mxu0 0.0
    %587 = vmatprep.subr.mxu0 0.0
    %588 = vmatpush2.msra.mxu0 0.0
    %589 = vmatprep.subr.mxu0 0.0
    %590 = vmatpush2.msra.mxu0 0.0
    %591 = vmatprep.subr.mxu0 0.0
    %592 = vmatpush2.msra.mxu0 0.0
    %593 = vmatprep.subr.mxu0 0.0
    %594 = vmatpush2.msra.mxu0 0.0
    %595 = vmatprep.subr.mxu0 0.0
    %596 = vmatpush2.msra.mxu0 0.0
    %597 = vmatprep.subr.mxu0 0.0
    %598 = vmatpush2.msra.mxu0 0.0
    %599 = vmatprep.subr.mxu0 0.0
    %600 = vmatpush2.msra.mxu0 0.0
    %601 = vmatprep.subr.mxu0 0.0
    %602 = vmatpush2.msra.mxu0 0.0
    %603 = vmatprep.subr.mxu0 0.0
    %604 = vmatpush2.msra.mxu0 0.0
    %605 = vmatprep.subr.mxu0 0.0
    %606 = vmatpush2.msra.mxu0 0.0
    %607 = vmatprep.subr.mxu0 0.0
    %608 = vmatpush2.msra.mxu0 0.0
    %609 = vmatprep.subr.mxu0 0.0
    %610 = vmatpush2.msra.mxu0 0.0
    %611 = vmatprep.subr.mxu0 0.0
    %612 = vmatpush2.msra.mxu0 0.0
    %613 = vmatprep.subr.mxu0 0.0
    %614 = vmatpush2.msra.mxu0 0.0
    %615 = vmatprep.subr.mxu0 0.0
    %616 = vmatpush2.msra.mxu0 0.0
    %617 = vmatprep.mubr.f32.mxu0 0.0
    %618 = vmatmul.mubr.f32.gmra.mxu0 %v551
    %v619 = vpop.f32.mrf.mxu0
    %v620 = vadd.f32 %v152, %v619
    %v621 = vpop.f32.mrf.mxu0
    %622 = vdwg.mxu0
    %624 = vrot.lane.b32.xlu0 %v443, 96
    %v625 = vpop.permute.xlu0 %624
    %v626 = vsel %vm155, %v625, 0
    %628 = vmatprep.subr.mxu0 0.0
    %629 = vmatpush1.msra.mxu0 0.0
    %630 = vmatprep.subr.mxu0 0.0
    %631 = vmatpush1.msra.mxu0 0.0
    %632 = vmatprep.subr.mxu0 0.0
    %633 = vmatpush1.msra.mxu0 0.0
    %634 = vmatprep.subr.mxu0 0.0
    %635 = vmatpush1.msra.mxu0 0.0
    %636 = vmatprep.subr.mxu0 0.0
    %637 = vmatpush1.msra.mxu0 0.0
    %638 = vmatprep.subr.mxu0 0.0
    %639 = vmatpush1.msra.mxu0 0.0
    %640 = vmatprep.subr.mxu0 0.0
    %641 = vmatpush1.msra.mxu0 0.0
    %642 = vmatprep.subr.mxu0 0.0
    %643 = vmatpush1.msra.mxu0 0.0
    %644 = vmatprep.subr.mxu0 0.0
    %645 = vmatpush1.msra.mxu0 0.0
    %646 = vmatprep.subr.mxu0 0.0
    %647 = vmatpush1.msra.mxu0 0.0
    %648 = vmatprep.subr.mxu0 0.0
    %649 = vmatpush1.msra.mxu0 0.0
    %650 = vmatprep.subr.mxu0 0.0
    %651 = vmatpush1.msra.mxu0 0.0
    %652 = vmatprep.subr.mxu0 0.0
    %653 = vmatpush1.msra.mxu0 %v151
    %654 = vmatprep.subr.mxu0 0.0
    %655 = vmatpush1.msra.mxu0 %v150
    %656 = vmatprep.subr.mxu0 0.0
    %657 = vmatpush1.msra.mxu0 %v149
    %658 = vmatprep.subr.mxu0 0.0
    %659 = vmatpush1.msra.mxu0 %v148
    %660 = vmatprep.subr.mxu0 0.0
    %661 = vmatpush2.msra.mxu0 0.0
    %662 = vmatprep.subr.mxu0 0.0
    %663 = vmatpush2.msra.mxu0 0.0
    %664 = vmatprep.subr.mxu0 0.0
    %665 = vmatpush2.msra.mxu0 0.0
    %666 = vmatprep.subr.mxu0 0.0
    %667 = vmatpush2.msra.mxu0 0.0
    %668 = vmatprep.subr.mxu0 0.0
    %669 = vmatpush2.msra.mxu0 0.0
    %670 = vmatprep.subr.mxu0 0.0
    %671 = vmatpush2.msra.mxu0 0.0
    %672 = vmatprep.subr.mxu0 0.0
    %673 = vmatpush2.msra.mxu0 0.0
    %674 = vmatprep.subr.mxu0 0.0
    %675 = vmatpush2.msra.mxu0 0.0
    %676 = vmatprep.subr.mxu0 0.0
    %677 = vmatpush2.msra.mxu0 0.0
    %678 = vmatprep.subr.mxu0 0.0
    %679 = vmatpush2.msra.mxu0 0.0
    %680 = vmatprep.subr.mxu0 0.0
    %681 = vmatpush2.msra.mxu0 0.0
    %682 = vmatprep.subr.mxu0 0.0
    %683 = vmatpush2.msra.mxu0 0.0
    %684 = vmatprep.subr.mxu0 0.0
    %685 = vmatpush2.msra.mxu0 0.0
    %686 = vmatprep.subr.mxu0 0.0
    %687 = vmatpush2.msra.mxu0 0.0
    %688 = vmatprep.subr.mxu0 0.0
    %689 = vmatpush2.msra.mxu0 0.0
    %690 = vmatprep.subr.mxu0 0.0
    %691 = vmatpush2.msra.mxu0 0.0
    %692 = vmatprep.mubr.f32.mxu0 0.0
    %693 = vmatmul.mubr.f32.gmra.mxu0 %v626
    %v694 = vpop.f32.mrf.mxu0
    %v695 = vadd.f32 0.0, %v694
    %v696 = vpop.f32.mrf.mxu0
    %697 = vdwg.mxu0
    %v698 = vadd.f32 %v620, %v695
    %v699 = vxor.u32 %v698, 2147483648
    %v700 = vmul.f32 %v699, 1.442695
    %v701 = vpow.pop %v700
    %v702 = vadd.f32 %v701, 1.0
    %v703 = vrcp.pop %v702
    %v704 = vmul.f32 1.0, %v703
    %v705 = vadd.f32 %v695, %v422
    %707 = vrot.lane.b32.xlu0 %v705, 64
    %v708 = vpop.permute.xlu0 %707
    %v710 = vmul.f32 %v704, %v708
    %712 = vrot.lane.b32.xlu0 %v710, 64
    %v713 = vpop.permute.xlu0 %712
    %v715 = vadd.f32 %v620, %v713
    %v716 = vtanh.pop %v715
    %v717 = vsub.f32 1.0, %v704
    %719 = vrot.lane.b32.xlu0 %v716, 96
    %v720 = vpop.permute.xlu0 %719
    %v722 = vmul.f32 %v717, %v720
    %v723 = vmul.f32 %v704, %v443
    %v724 = vadd.f32 %v722, %v723
    %725 = vmatprep.subr.mxu0 0.0
    %726 = vmatpush1.msra.mxu0 0.0
    %727 = vmatprep.subr.mxu0 0.0
    %728 = vmatpush1.msra.mxu0 0.0
    %729 = vmatprep.subr.mxu0 0.0
    %730 = vmatpush1.msra.mxu0 0.0
    %731 = vmatprep.subr.mxu0 0.0
    %732 = vmatpush1.msra.mxu0 0.0
    %733 = vmatprep.subr.mxu0 0.0
    %734 = vmatpush1.msra.mxu0 0.0
    %735 = vmatprep.subr.mxu0 0.0
    %736 = vmatpush1.msra.mxu0 0.0
    %737 = vmatprep.subr.mxu0 0.0
    %738 = vmatpush1.msra.mxu0 0.0
    %739 = vmatprep.subr.mxu0 0.0
    %740 = vmatpush1.msra.mxu0 0.0
    %741 = vmatprep.subr.mxu0 0.0
    %742 = vmatpush1.msra.mxu0 0.0
    %743 = vmatprep.subr.mxu0 0.0
    %744 = vmatpush1.msra.mxu0 0.0
    %745 = vmatprep.subr.mxu0 0.0
    %746 = vmatpush1.msra.mxu0 0.0
    %747 = vmatprep.subr.mxu0 0.0
    %748 = vmatpush1.msra.mxu0 0.0
    %749 = vmatprep.subr.mxu0 0.0
    %750 = vmatpush1.msra.mxu0 %v143
    %751 = vmatprep.subr.mxu0 0.0
    %752 = vmatpush1.msra.mxu0 %v142
    %753 = vmatprep.subr.mxu0 0.0
    %754 = vmatpush1.msra.mxu0 %v141
    %755 = vmatprep.subr.mxu0 0.0
    %756 = vmatpush1.msra.mxu0 %v140
    %757 = vmatprep.subr.mxu0 0.0
    %758 = vmatpush2.msra.mxu0 0.0
    %759 = vmatprep.subr.mxu0 0.0
    %760 = vmatpush2.msra.mxu0 0.0
    %761 = vmatprep.subr.mxu0 0.0
    %762 = vmatpush2.msra.mxu0 0.0
    %763 = vmatprep.subr.mxu0 0.0
    %764 = vmatpush2.msra.mxu0 0.0
    %765 = vmatprep.subr.mxu0 0.0
    %766 = vmatpush2.msra.mxu0 0.0
    %767 = vmatprep.subr.mxu0 0.0
    %768 = vmatpush2.msra.mxu0 0.0
    %769 = vmatprep.subr.mxu0 0.0
    %770 = vmatpush2.msra.mxu0 0.0
    %771 = vmatprep.subr.mxu0 0.0
    %772 = vmatpush2.msra.mxu0 0.0
    %773 = vmatprep.subr.mxu0 0.0
    %774 = vmatpush2.msra.mxu0 0.0
    %775 = vmatprep.subr.mxu0 0.0
    %776 = vmatpush2.msra.mxu0 0.0
    %777 = vmatprep.subr.mxu0 0.0
    %778 = vmatpush2.msra.mxu0 0.0
    %779 = vmatprep.subr.mxu0 0.0
    %780 = vmatpush2.msra.mxu0 0.0
    %781 = vmatprep.subr.mxu0 0.0
    %782 = vmatpush2.msra.mxu0 0.0
    %783 = vmatprep.subr.mxu0 0.0
    %784 = vmatpush2.msra.mxu0 0.0
    %785 = vmatprep.subr.mxu0 0.0
    %786 = vmatpush2.msra.mxu0 0.0
    %787 = vmatprep.subr.mxu0 0.0
    %788 = vmatpush2.msra.mxu0 0.0
    %789 = vmatprep.mubr.f32.mxu0 0.0
    %790 = vmatmul.mubr.f32.gmra.mxu0 %v551
    %v791 = vpop.f32.mrf.mxu0
    %v792 = vadd.f32 0.0, %v791
    %v793 = vpop.f32.mrf.mxu0
    %794 = vdwg.mxu0
    %v796 = vrot.slane %v792, 6
    %v798 = vadd.f32 %v137, %v796
    %v799 = vxor.u32 %v798, 2147483648
    %v800 = vmul.f32 %v799, 1.442695
    %v801 = vpow.pop %v800
    %v802 = vadd.f32 %v801, 1.0
    %v803 = vrcp.pop %v802
    %v804 = vmul.f32 1.0, %v803
    %v805 = vadd.f32 %v792, %v242
    %v807 = vrot.slane %v805, 6
    %808 = vrot.lane.b32.xlu0 %v807, 64
    %v809 = vpop.permute.xlu0 %808
    %v811 = vmul.f32 %v804, %v809
    %813 = vrot.lane.b32.xlu0 %v811, 64
    %v814 = vpop.permute.xlu0 %813
    %v816 = vadd.f32 %v137, %v814
    %v817 = vtanh.pop %v816
    %v818 = vsub.f32 1.0, %v804
    %820 = vrot.lane.b32.xlu0 %v817, 96
    %v821 = vpop.permute.xlu0 %820
    %v823 = vmul.f32 %v818, %v821
    %v824 = vrot.slane %v546, 7
    %v826 = vmul.f32 %v804, %v824
    %v827 = vadd.f32 %v823, %v826
    %v829 = vrot.slane %v827, 2
    %830 = vrot.lane.b32.xlu0 %v829, 96
    %v831 = vpop.permute.xlu0 %830
    %v832 = vsel %vm155, %v831, 0
    %834 = vmatprep.subr.mxu0 0.0
    %835 = vmatpush1.msra.mxu0 0.0
    %836 = vmatprep.subr.mxu0 0.0
    %837 = vmatpush1.msra.mxu0 0.0
    %838 = vmatprep.subr.mxu0 0.0
    %839 = vmatpush1.msra.mxu0 0.0
    %840 = vmatprep.subr.mxu0 0.0
    %841 = vmatpush1.msra.mxu0 0.0
    %842 = vmatprep.subr.mxu0 0.0
    %843 = vmatpush1.msra.mxu0 0.0
    %844 = vmatprep.subr.mxu0 0.0
    %845 = vmatpush1.msra.mxu0 0.0
    %846 = vmatprep.subr.mxu0 0.0
    %847 = vmatpush1.msra.mxu0 0.0
    %848 = vmatprep.subr.mxu0 0.0
    %849 = vmatpush1.msra.mxu0 0.0
    %850 = vmatprep.subr.mxu0 0.0
    %851 = vmatpush1.msra.mxu0 0.0
    %852 = vmatprep.subr.mxu0 0.0
    %853 = vmatpush1.msra.mxu0 0.0
    %854 = vmatprep.subr.mxu0 0.0
    %855 = vmatpush1.msra.mxu0 0.0
    %856 = vmatprep.subr.mxu0 0.0
    %857 = vmatpush1.msra.mxu0 0.0
    %858 = vmatprep.subr.mxu0 0.0
    %859 = vmatpush1.msra.mxu0 %v147
    %860 = vmatprep.subr.mxu0 0.0
    %861 = vmatpush1.msra.mxu0 %v146
    %862 = vmatprep.subr.mxu0 0.0
    %863 = vmatpush1.msra.mxu0 %v145
    %864 = vmatprep.subr.mxu0 0.0
    %865 = vmatpush1.msra.mxu0 %v144
    %866 = vmatprep.subr.mxu0 0.0
    %867 = vmatpush2.msra.mxu0 0.0
    %868 = vmatprep.subr.mxu0 0.0
    %869 = vmatpush2.msra.mxu0 0.0
    %870 = vmatprep.subr.mxu0 0.0
    %871 = vmatpush2.msra.mxu0 0.0
    %872 = vmatprep.subr.mxu0 0.0
    %873 = vmatpush2.msra.mxu0 0.0
    %874 = vmatprep.subr.mxu0 0.0
    %875 = vmatpush2.msra.mxu0 0.0
    %876 = vmatprep.subr.mxu0 0.0
    %877 = vmatpush2.msra.mxu0 0.0
    %878 = vmatprep.subr.mxu0 0.0
    %879 = vmatpush2.msra.mxu0 0.0
    %880 = vmatprep.subr.mxu0 0.0
    %881 = vmatpush2.msra.mxu0 0.0
    %882 = vmatprep.subr.mxu0 0.0
    %883 = vmatpush2.msra.mxu0 0.0
    %884 = vmatprep.subr.mxu0 0.0
    %885 = vmatpush2.msra.mxu0 0.0
    %886 = vmatprep.subr.mxu0 0.0
    %887 = vmatpush2.msra.mxu0 0.0
    %888 = vmatprep.subr.mxu0 0.0
    %889 = vmatpush2.msra.mxu0 0.0
    %890 = vmatprep.subr.mxu0 0.0
    %891 = vmatpush2.msra.mxu0 0.0
    %892 = vmatprep.subr.mxu0 0.0
    %893 = vmatpush2.msra.mxu0 0.0
    %894 = vmatprep.subr.mxu0 0.0
    %895 = vmatpush2.msra.mxu0 0.0
    %896 = vmatprep.subr.mxu0 0.0
    %897 = vmatpush2.msra.mxu0 0.0
    %898 = vmatprep.mubr.f32.mxu0 0.0
    %899 = vmatmul.mubr.f32.gmra.mxu0 %v832
    %v900 = vpop.f32.mrf.mxu0
    %v901 = vadd.f32 %v152, %v900
    %v902 = vpop.f32.mrf.mxu0
    %903 = vdwg.mxu0
    %905 = vrot.lane.b32.xlu0 %v724, 96
    %v906 = vpop.permute.xlu0 %905
    %v907 = vsel %vm155, %v906, 0
    %909 = vmatprep.subr.mxu0 0.0
    %910 = vmatpush1.msra.mxu0 0.0
    %911 = vmatprep.subr.mxu0 0.0
    %912 = vmatpush1.msra.mxu0 0.0
    %913 = vmatprep.subr.mxu0 0.0
    %914 = vmatpush1.msra.mxu0 0.0
    %915 = vmatprep.subr.mxu0 0.0
    %916 = vmatpush1.msra.mxu0 0.0
    %917 = vmatprep.subr.mxu0 0.0
    %918 = vmatpush1.msra.mxu0 0.0
    %919 = vmatprep.subr.mxu0 0.0
    %920 = vmatpush1.msra.mxu0 0.0
    %921 = vmatprep.subr.mxu0 0.0
    %922 = vmatpush1.msra.mxu0 0.0
    %923 = vmatprep.subr.mxu0 0.0
    %924 = vmatpush1.msra.mxu0 0.0
    %925 = vmatprep.subr.mxu0 0.0
    %926 = vmatpush1.msra.mxu0 0.0
    %927 = vmatprep.subr.mxu0 0.0
    %928 = vmatpush1.msra.mxu0 0.0
    %929 = vmatprep.subr.mxu0 0.0
    %930 = vmatpush1.msra.mxu0 0.0
    %931 = vmatprep.subr.mxu0 0.0
    %932 = vmatpush1.msra.mxu0 0.0
    %933 = vmatprep.subr.mxu0 0.0
    %934 = vmatpush1.msra.mxu0 %v151
    %935 = vmatprep.subr.mxu0 0.0
    %936 = vmatpush1.msra.mxu0 %v150
    %937 = vmatprep.subr.mxu0 0.0
    %938 = vmatpush1.msra.mxu0 %v149
    %939 = vmatprep.subr.mxu0 0.0
    %940 = vmatpush1.msra.mxu0 %v148
    %941 = vmatprep.subr.mxu0 0.0
    %942 = vmatpush2.msra.mxu0 0.0
    %943 = vmatprep.subr.mxu0 0.0
    %944 = vmatpush2.msra.mxu0 0.0
    %945 = vmatprep.subr.mxu0 0.0
    %946 = vmatpush2.msra.mxu0 0.0
    %947 = vmatprep.subr.mxu0 0.0
    %948 = vmatpush2.msra.mxu0 0.0
    %949 = vmatprep.subr.mxu0 0.0
    %950 = vmatpush2.msra.mxu0 0.0
    %951 = vmatprep.subr.mxu0 0.0
    %952 = vmatpush2.msra.mxu0 0.0
    %953 = vmatprep.subr.mxu0 0.0
    %954 = vmatpush2.msra.mxu0 0.0
    %955 = vmatprep.subr.mxu0 0.0
    %956 = vmatpush2.msra.mxu0 0.0
    %957 = vmatprep.subr.mxu0 0.0
    %958 = vmatpush2.msra.mxu0 0.0
    %959 = vmatprep.subr.mxu0 0.0
    %960 = vmatpush2.msra.mxu0 0.0
    %961 = vmatprep.subr.mxu0 0.0
    %962 = vmatpush2.msra.mxu0 0.0
    %963 = vmatprep.subr.mxu0 0.0
    %964 = vmatpush2.msra.mxu0 0.0
    %965 = vmatprep.subr.mxu0 0.0
    %966 = vmatpush2.msra.mxu0 0.0
    %967 = vmatprep.subr.mxu0 0.0
    %968 = vmatpush2.msra.mxu0 0.0
    %969 = vmatprep.subr.mxu0 0.0
    %970 = vmatpush2.msra.mxu0 0.0
    %971 = vmatprep.subr.mxu0 0.0
    %972 = vmatpush2.msra.mxu0 0.0
    %973 = vmatprep.mubr.f32.mxu0 0.0
    %974 = vmatmul.mubr.f32.gmra.mxu0 %v907
    %v975 = vpop.f32.mrf.mxu0
    %v976 = vadd.f32 0.0, %v975
    %v977 = vpop.f32.mrf.mxu0
    %978 = vdwg.mxu0
    %v979 = vadd.f32 %v901, %v976
    %v980 = vxor.u32 %v979, 2147483648
    %v981 = vmul.f32 %v980, 1.442695
    %v982 = vpow.pop %v981
    %v983 = vadd.f32 %v982, 1.0
    %v984 = vrcp.pop %v983
    %v985 = vmul.f32 1.0, %v984
    %v986 = vadd.f32 %v976, %v422
    %988 = vrot.lane.b32.xlu0 %v986, 64
    %v989 = vpop.permute.xlu0 %988
    %v991 = vmul.f32 %v985, %v989
    %993 = vrot.lane.b32.xlu0 %v991, 64
    %v994 = vpop.permute.xlu0 %993
    %v996 = vadd.f32 %v901, %v994
    %v997 = vtanh.pop %v996
    %v998 = vsub.f32 1.0, %v985
    %1000 = vrot.lane.b32.xlu0 %v997, 96
    %v1001 = vpop.permute.xlu0 %1000
    %v1003 = vmul.f32 %v998, %v1001
    %v1004 = vmul.f32 %v985, %v724
    %v1005 = vadd.f32 %v1003, %v1004
    %1006 = vmatprep.subr.mxu0 0.0
    %1007 = vmatpush1.msra.mxu0 0.0
    %1008 = vmatprep.subr.mxu0 0.0
    %1009 = vmatpush1.msra.mxu0 0.0
    %1010 = vmatprep.subr.mxu0 0.0
    %1011 = vmatpush1.msra.mxu0 0.0
    %1012 = vmatprep.subr.mxu0 0.0
    %1013 = vmatpush1.msra.mxu0 0.0
    %1014 = vmatprep.subr.mxu0 0.0
    %1015 = vmatpush1.msra.mxu0 0.0
    %1016 = vmatprep.subr.mxu0 0.0
    %1017 = vmatpush1.msra.mxu0 0.0
    %1018 = vmatprep.subr.mxu0 0.0
    %1019 = vmatpush1.msra.mxu0 0.0
    %1020 = vmatprep.subr.mxu0 0.0
    %1021 = vmatpush1.msra.mxu0 0.0
    %1022 = vmatprep.subr.mxu0 0.0
    %1023 = vmatpush1.msra.mxu0 0.0
    %1024 = vmatprep.subr.mxu0 0.0
    %1025 = vmatpush1.msra.mxu0 0.0
    %1026 = vmatprep.subr.mxu0 0.0
    %1027 = vmatpush1.msra.mxu0 0.0
    %1028 = vmatprep.subr.mxu0 0.0
    %1029 = vmatpush1.msra.mxu0 0.0
    %1030 = vmatprep.subr.mxu0 0.0
    %1031 = vmatpush1.msra.mxu0 %v143
    %1032 = vmatprep.subr.mxu0 0.0
    %1033 = vmatpush1.msra.mxu0 %v142
    %1034 = vmatprep.subr.mxu0 0.0
    %1035 = vmatpush1.msra.mxu0 %v141
    %1036 = vmatprep.subr.mxu0 0.0
    %1037 = vmatpush1.msra.mxu0 %v140
    %1038 = vmatprep.subr.mxu0 0.0
    %1039 = vmatpush2.msra.mxu0 0.0
    %1040 = vmatprep.subr.mxu0 0.0
    %1041 = vmatpush2.msra.mxu0 0.0
    %1042 = vmatprep.subr.mxu0 0.0
    %1043 = vmatpush2.msra.mxu0 0.0
    %1044 = vmatprep.subr.mxu0 0.0
    %1045 = vmatpush2.msra.mxu0 0.0
    %1046 = vmatprep.subr.mxu0 0.0
    %1047 = vmatpush2.msra.mxu0 0.0
    %1048 = vmatprep.subr.mxu0 0.0
    %1049 = vmatpush2.msra.mxu0 0.0
    %1050 = vmatprep.subr.mxu0 0.0
    %1051 = vmatpush2.msra.mxu0 0.0
    %1052 = vmatprep.subr.mxu0 0.0
    %1053 = vmatpush2.msra.mxu0 0.0
    %1054 = vmatprep.subr.mxu0 0.0
    %1055 = vmatpush2.msra.mxu0 0.0
    %1056 = vmatprep.subr.mxu0 0.0
    %1057 = vmatpush2.msra.mxu0 0.0
    %1058 = vmatprep.subr.mxu0 0.0
    %1059 = vmatpush2.msra.mxu0 0.0
    %1060 = vmatprep.subr.mxu0 0.0
    %1061 = vmatpush2.msra.mxu0 0.0
    %1062 = vmatprep.subr.mxu0 0.0
    %1063 = vmatpush2.msra.mxu0 0.0
    %1064 = vmatprep.subr.mxu0 0.0
    %1065 = vmatpush2.msra.mxu0 0.0
    %1066 = vmatprep.subr.mxu0 0.0
    %1067 = vmatpush2.msra.mxu0 0.0
    %1068 = vmatprep.subr.mxu0 0.0
    %1069 = vmatpush2.msra.mxu0 0.0
    %1070 = vmatprep.mubr.f32.mxu0 0.0
    %1071 = vmatmul.mubr.f32.gmra.mxu0 %v832
    %v1072 = vpop.f32.mrf.mxu0
    %v1073 = vadd.f32 0.0, %v1072
    %v1074 = vpop.f32.mrf.mxu0
    %1075 = vdwg.mxu0
    %v1077 = vrot.slane %v1073, 5
    %v1079 = vadd.f32 %v137, %v1077
    %v1080 = vxor.u32 %v1079, 2147483648
    %v1081 = vmul.f32 %v1080, 1.442695
    %v1082 = vpow.pop %v1081
    %v1083 = vadd.f32 %v1082, 1.0
    %v1084 = vrcp.pop %v1083
    %v1085 = vmul.f32 1.0, %v1084
    %v1086 = vadd.f32 %v1073, %v242
    %v1088 = vrot.slane %v1086, 5
    %1089 = vrot.lane.b32.xlu0 %v1088, 64
    %v1090 = vpop.permute.xlu0 %1089
    %v1092 = vmul.f32 %v1085, %v1090
    %1094 = vrot.lane.b32.xlu0 %v1092, 64
    %v1095 = vpop.permute.xlu0 %1094
    %v1097 = vadd.f32 %v137, %v1095
    %v1098 = vtanh.pop %v1097
    %v1099 = vsub.f32 1.0, %v1085
    %1101 = vrot.lane.b32.xlu0 %v1098, 96
    %v1102 = vpop.permute.xlu0 %1101
    %v1104 = vmul.f32 %v1099, %v1102
    %v1105 = vrot.slane %v827, 7
    %v1107 = vmul.f32 %v1085, %v1105
    %v1108 = vadd.f32 %v1104, %v1107
    %v1110 = vrot.slane %v1108, 3
    %1111 = vrot.lane.b32.xlu0 %v1110, 96
    %v1112 = vpop.permute.xlu0 %1111
    %v1113 = vsel %vm155, %v1112, 0
    %1115 = vmatprep.subr.mxu0 0.0
    %1116 = vmatpush1.msra.mxu0 0.0
    %1117 = vmatprep.subr.mxu0 0.0
    %1118 = vmatpush1.msra.mxu0 0.0
    %1119 = vmatprep.subr.mxu0 0.0
    %1120 = vmatpush1.msra.mxu0 0.0
    %1121 = vmatprep.subr.mxu0 0.0
    %1122 = vmatpush1.msra.mxu0 0.0
    %1123 = vmatprep.subr.mxu0 0.0
    %1124 = vmatpush1.msra.mxu0 0.0
    %1125 = vmatprep.subr.mxu0 0.0
    %1126 = vmatpush1.msra.mxu0 0.0
    %1127 = vmatprep.subr.mxu0 0.0
    %1128 = vmatpush1.msra.mxu0 0.0
    %1129 = vmatprep.subr.mxu0 0.0
    %1130 = vmatpush1.msra.mxu0 0.0
    %1131 = vmatprep.subr.mxu0 0.0
    %1132 = vmatpush1.msra.mxu0 0.0
    %1133 = vmatprep.subr.mxu0 0.0
    %1134 = vmatpush1.msra.mxu0 0.0
    %1135 = vmatprep.subr.mxu0 0.0
    %1136 = vmatpush1.msra.mxu0 0.0
    %1137 = vmatprep.subr.mxu0 0.0
    %1138 = vmatpush1.msra.mxu0 0.0
    %1139 = vmatprep.subr.mxu0 0.0
    %1140 = vmatpush1.msra.mxu0 %v147
    %1141 = vmatprep.subr.mxu0 0.0
    %1142 = vmatpush1.msra.mxu0 %v146
    %1143 = vmatprep.subr.mxu0 0.0
    %1144 = vmatpush1.msra.mxu0 %v145
    %1145 = vmatprep.subr.mxu0 0.0
    %1146 = vmatpush1.msra.mxu0 %v144
    %1147 = vmatprep.subr.mxu0 0.0
    %1148 = vmatpush2.msra.mxu0 0.0
    %1149 = vmatprep.subr.mxu0 0.0
    %1150 = vmatpush2.msra.mxu0 0.0
    %1151 = vmatprep.subr.mxu0 0.0
    %1152 = vmatpush2.msra.mxu0 0.0
    %1153 = vmatprep.subr.mxu0 0.0
    %1154 = vmatpush2.msra.mxu0 0.0
    %1155 = vmatprep.subr.mxu0 0.0
    %1156 = vmatpush2.msra.mxu0 0.0
    %1157 = vmatprep.subr.mxu0 0.0
    %1158 = vmatpush2.msra.mxu0 0.0
    %1159 = vmatprep.subr.mxu0 0.0
    %1160 = vmatpush2.msra.mxu0 0.0
    %1161 = vmatprep.subr.mxu0 0.0
    %1162 = vmatpush2.msra.mxu0 0.0
    %1163 = vmatprep.subr.mxu0 0.0
    %1164 = vmatpush2.msra.mxu0 0.0
    %1165 = vmatprep.subr.mxu0 0.0
    %1166 = vmatpush2.msra.mxu0 0.0
    %1167 = vmatprep.subr.mxu0 0.0
    %1168 = vmatpush2.msra.mxu0 0.0
    %1169 = vmatprep.subr.mxu0 0.0
    %1170 = vmatpush2.msra.mxu0 0.0
    %1171 = vmatprep.subr.mxu0 0.0
    %1172 = vmatpush2.msra.mxu0 0.0
    %1173 = vmatprep.subr.mxu0 0.0
    %1174 = vmatpush2.msra.mxu0 0.0
    %1175 = vmatprep.subr.mxu0 0.0
    %1176 = vmatpush2.msra.mxu0 0.0
    %1177 = vmatprep.subr.mxu0 0.0
    %1178 = vmatpush2.msra.mxu0 0.0
    %1179 = vmatprep.mubr.f32.mxu0 0.0
    %1180 = vmatmul.mubr.f32.gmra.mxu0 %v1113
    %v1181 = vpop.f32.mrf.mxu0
    %v1182 = vadd.f32 %v152, %v1181
    %v1183 = vpop.f32.mrf.mxu0
    %1184 = vdwg.mxu0
    %1186 = vrot.lane.b32.xlu0 %v1005, 96
    %v1187 = vpop.permute.xlu0 %1186
    %v1188 = vsel %vm155, %v1187, 0
    %1190 = vmatprep.subr.mxu0 0.0
    %1191 = vmatpush1.msra.mxu0 0.0
    %1192 = vmatprep.subr.mxu0 0.0
    %1193 = vmatpush1.msra.mxu0 0.0
    %1194 = vmatprep.subr.mxu0 0.0
    %1195 = vmatpush1.msra.mxu0 0.0
    %1196 = vmatprep.subr.mxu0 0.0
    %1197 = vmatpush1.msra.mxu0 0.0
    %1198 = vmatprep.subr.mxu0 0.0
    %1199 = vmatpush1.msra.mxu0 0.0
    %1200 = vmatprep.subr.mxu0 0.0
    %1201 = vmatpush1.msra.mxu0 0.0
    %1202 = vmatprep.subr.mxu0 0.0
    %1203 = vmatpush1.msra.mxu0 0.0
    %1204 = vmatprep.subr.mxu0 0.0
    %1205 = vmatpush1.msra.mxu0 0.0
    %1206 = vmatprep.subr.mxu0 0.0
    %1207 = vmatpush1.msra.mxu0 0.0
    %1208 = vmatprep.subr.mxu0 0.0
    %1209 = vmatpush1.msra.mxu0 0.0
    %1210 = vmatprep.subr.mxu0 0.0
    %1211 = vmatpush1.msra.mxu0 0.0
    %1212 = vmatprep.subr.mxu0 0.0
    %1213 = vmatpush1.msra.mxu0 0.0
    %1214 = vmatprep.subr.mxu0 0.0
    %1215 = vmatpush1.msra.mxu0 %v151
    %1216 = vmatprep.subr.mxu0 0.0
    %1217 = vmatpush1.msra.mxu0 %v150
    %1218 = vmatprep.subr.mxu0 0.0
    %1219 = vmatpush1.msra.mxu0 %v149
    %1220 = vmatprep.subr.mxu0 0.0
    %1221 = vmatpush1.msra.mxu0 %v148
    %1222 = vmatprep.subr.mxu0 0.0
    %1223 = vmatpush2.msra.mxu0 0.0
    %1224 = vmatprep.subr.mxu0 0.0
    %1225 = vmatpush2.msra.mxu0 0.0
    %1226 = vmatprep.subr.mxu0 0.0
    %1227 = vmatpush2.msra.mxu0 0.0
    %1228 = vmatprep.subr.mxu0 0.0
    %1229 = vmatpush2.msra.mxu0 0.0
    %1230 = vmatprep.subr.mxu0 0.0
    %1231 = vmatpush2.msra.mxu0 0.0
    %1232 = vmatprep.subr.mxu0 0.0
    %1233 = vmatpush2.msra.mxu0 0.0
    %1234 = vmatprep.subr.mxu0 0.0
    %1235 = vmatpush2.msra.mxu0 0.0
    %1236 = vmatprep.subr.mxu0 0.0
    %1237 = vmatpush2.msra.mxu0 0.0
    %1238 = vmatprep.subr.mxu0 0.0
    %1239 = vmatpush2.msra.mxu0 0.0
    %1240 = vmatprep.subr.mxu0 0.0
    %1241 = vmatpush2.msra.mxu0 0.0
    %1242 = vmatprep.subr.mxu0 0.0
    %1243 = vmatpush2.msra.mxu0 0.0
    %1244 = vmatprep.subr.mxu0 0.0
    %1245 = vmatpush2.msra.mxu0 0.0
    %1246 = vmatprep.subr.mxu0 0.0
    %1247 = vmatpush2.msra.mxu0 0.0
    %1248 = vmatprep.subr.mxu0 0.0
    %1249 = vmatpush2.msra.mxu0 0.0
    %1250 = vmatprep.subr.mxu0 0.0
    %1251 = vmatpush2.msra.mxu0 0.0
    %1252 = vmatprep.subr.mxu0 0.0
    %1253 = vmatpush2.msra.mxu0 0.0
    %1254 = vmatprep.mubr.f32.mxu0 0.0
    %1255 = vmatmul.mubr.f32.gmra.mxu0 %v1188
    %v1256 = vpop.f32.mrf.mxu0
    %v1257 = vadd.f32 0.0, %v1256
    %v1258 = vpop.f32.mrf.mxu0
    %1259 = vdwg.mxu0
    %v1260 = vadd.f32 %v1182, %v1257
    %v1261 = vxor.u32 %v1260, 2147483648
    %v1262 = vmul.f32 %v1261, 1.442695
    %v1263 = vpow.pop %v1262
    %v1264 = vadd.f32 %v1263, 1.0
    %v1265 = vrcp.pop %v1264
    %v1266 = vmul.f32 1.0, %v1265
    %v1267 = vadd.f32 %v1257, %v422
    %1269 = vrot.lane.b32.xlu0 %v1267, 64
    %v1270 = vpop.permute.xlu0 %1269
    %v1272 = vmul.f32 %v1266, %v1270
    %1274 = vrot.lane.b32.xlu0 %v1272, 64
    %v1275 = vpop.permute.xlu0 %1274
    %v1277 = vadd.f32 %v1182, %v1275
    %v1278 = vtanh.pop %v1277
    %v1279 = vsub.f32 1.0, %v1266
    %1281 = vrot.lane.b32.xlu0 %v1278, 96
    %v1282 = vpop.permute.xlu0 %1281
    %v1284 = vmul.f32 %v1279, %v1282
    %v1285 = vmul.f32 %v1266, %v1005
    %v1286 = vadd.f32 %v1284, %v1285
    %1287 = vmatprep.subr.mxu0 0.0
    %1288 = vmatpush1.msra.mxu0 0.0
    %1289 = vmatprep.subr.mxu0 0.0
    %1290 = vmatpush1.msra.mxu0 0.0
    %1291 = vmatprep.subr.mxu0 0.0
    %1292 = vmatpush1.msra.mxu0 0.0
    %1293 = vmatprep.subr.mxu0 0.0
    %1294 = vmatpush1.msra.mxu0 0.0
    %1295 = vmatprep.subr.mxu0 0.0
    %1296 = vmatpush1.msra.mxu0 0.0
    %1297 = vmatprep.subr.mxu0 0.0
    %1298 = vmatpush1.msra.mxu0 0.0
    %1299 = vmatprep.subr.mxu0 0.0
    %1300 = vmatpush1.msra.mxu0 0.0
    %1301 = vmatprep.subr.mxu0 0.0
    %1302 = vmatpush1.msra.mxu0 0.0
    %1303 = vmatprep.subr.mxu0 0.0
    %1304 = vmatpush1.msra.mxu0 0.0
    %1305 = vmatprep.subr.mxu0 0.0
    %1306 = vmatpush1.msra.mxu0 0.0
    %1307 = vmatprep.subr.mxu0 0.0
    %1308 = vmatpush1.msra.mxu0 0.0
    %1309 = vmatprep.subr.mxu0 0.0
    %1310 = vmatpush1.msra.mxu0 0.0
    %1311 = vmatprep.subr.mxu0 0.0
    %1312 = vmatpush1.msra.mxu0 %v143
    %1313 = vmatprep.subr.mxu0 0.0
    %1314 = vmatpush1.msra.mxu0 %v142
    %1315 = vmatprep.subr.mxu0 0.0
    %1316 = vmatpush1.msra.mxu0 %v141
    %1317 = vmatprep.subr.mxu0 0.0
    %1318 = vmatpush1.msra.mxu0 %v140
    %1319 = vmatprep.subr.mxu0 0.0
    %1320 = vmatpush2.msra.mxu0 0.0
    %1321 = vmatprep.subr.mxu0 0.0
    %1322 = vmatpush2.msra.mxu0 0.0
    %1323 = vmatprep.subr.mxu0 0.0
    %1324 = vmatpush2.msra.mxu0 0.0
    %1325 = vmatprep.subr.mxu0 0.0
    %1326 = vmatpush2.msra.mxu0 0.0
    %1327 = vmatprep.subr.mxu0 0.0
    %1328 = vmatpush2.msra.mxu0 0.0
    %1329 = vmatprep.subr.mxu0 0.0
    %1330 = vmatpush2.msra.mxu0 0.0
    %1331 = vmatprep.subr.mxu0 0.0
    %1332 = vmatpush2.msra.mxu0 0.0
    %1333 = vmatprep.subr.mxu0 0.0
    %1334 = vmatpush2.msra.mxu0 0.0
    %1335 = vmatprep.subr.mxu0 0.0
    %1336 = vmatpush2.msra.mxu0 0.0
    %1337 = vmatprep.subr.mxu0 0.0
    %1338 = vmatpush2.msra.mxu0 0.0
    %1339 = vmatprep.subr.mxu0 0.0
    %1340 = vmatpush2.msra.mxu0 0.0
    %1341 = vmatprep.subr.mxu0 0.0
    %1342 = vmatpush2.msra.mxu0 0.0
    %1343 = vmatprep.subr.mxu0 0.0
    %1344 = vmatpush2.msra.mxu0 0.0
    %1345 = vmatprep.subr.mxu0 0.0
    %1346 = vmatpush2.msra.mxu0 0.0
    %1347 = vmatprep.subr.mxu0 0.0
    %1348 = vmatpush2.msra.mxu0 0.0
    %1349 = vmatprep.subr.mxu0 0.0
    %1350 = vmatpush2.msra.mxu0 0.0
    %1351 = vmatprep.mubr.f32.mxu0 0.0
    %1352 = vmatmul.mubr.f32.gmra.mxu0 %v1113
    %v1353 = vpop.f32.mrf.mxu0
    %v1354 = vadd.f32 0.0, %v1353
    %v1355 = vpop.f32.mrf.mxu0
    %1356 = vdwg.mxu0
    %v1358 = vrot.slane %v1354, 4
    %v1360 = vadd.f32 %v137, %v1358
    %v1361 = vxor.u32 %v1360, 2147483648
    %v1362 = vmul.f32 %v1361, 1.442695
    %v1363 = vpow.pop %v1362
    %v1364 = vadd.f32 %v1363, 1.0
    %v1365 = vrcp.pop %v1364
    %v1366 = vmul.f32 1.0, %v1365
    %v1367 = vadd.f32 %v1354, %v242
    %v1369 = vrot.slane %v1367, 4
    %1370 = vrot.lane.b32.xlu0 %v1369, 64
    %v1371 = vpop.permute.xlu0 %1370
    %v1373 = vmul.f32 %v1366, %v1371
    %1375 = vrot.lane.b32.xlu0 %v1373, 64
    %v1376 = vpop.permute.xlu0 %1375
    %v1378 = vadd.f32 %v137, %v1376
    %v1379 = vtanh.pop %v1378
    %v1380 = vsub.f32 1.0, %v1366
    %1382 = vrot.lane.b32.xlu0 %v1379, 96
    %v1383 = vpop.permute.xlu0 %1382
    %v1385 = vmul.f32 %v1380, %v1383
    %v1386 = vrot.slane %v1108, 7
    %v1388 = vmul.f32 %v1366, %v1386
    %v1389 = vadd.f32 %v1385, %v1388
    %v1391 = vrot.slane %v1389, 4
    %1392 = vrot.lane.b32.xlu0 %v1391, 96
    %v1393 = vpop.permute.xlu0 %1392
    %v1394 = vsel %vm155, %v1393, 0
    %1396 = vmatprep.subr.mxu0 0.0
    %1397 = vmatpush1.msra.mxu0 0.0
    %1398 = vmatprep.subr.mxu0 0.0
    %1399 = vmatpush1.msra.mxu0 0.0
    %1400 = vmatprep.subr.mxu0 0.0
    %1401 = vmatpush1.msra.mxu0 0.0
    %1402 = vmatprep.subr.mxu0 0.0
    %1403 = vmatpush1.msra.mxu0 0.0
    %1404 = vmatprep.subr.mxu0 0.0
    %1405 = vmatpush1.msra.mxu0 0.0
    %1406 = vmatprep.subr.mxu0 0.0
    %1407 = vmatpush1.msra.mxu0 0.0
    %1408 = vmatprep.subr.mxu0 0.0
    %1409 = vmatpush1.msra.mxu0 0.0
    %1410 = vmatprep.subr.mxu0 0.0
    %1411 = vmatpush1.msra.mxu0 0.0
    %1412 = vmatprep.subr.mxu0 0.0
    %1413 = vmatpush1.msra.mxu0 0.0
    %1414 = vmatprep.subr.mxu0 0.0
    %1415 = vmatpush1.msra.mxu0 0.0
    %1416 = vmatprep.subr.mxu0 0.0
    %1417 = vmatpush1.msra.mxu0 0.0
    %1418 = vmatprep.subr.mxu0 0.0
    %1419 = vmatpush1.msra.mxu0 0.0
    %1420 = vmatprep.subr.mxu0 0.0
    %1421 = vmatpush1.msra.mxu0 %v147
    %1422 = vmatprep.subr.mxu0 0.0
    %1423 = vmatpush1.msra.mxu0 %v146
    %1424 = vmatprep.subr.mxu0 0.0
    %1425 = vmatpush1.msra.mxu0 %v145
    %1426 = vmatprep.subr.mxu0 0.0
    %1427 = vmatpush1.msra.mxu0 %v144
    %1428 = vmatprep.subr.mxu0 0.0
    %1429 = vmatpush2.msra.mxu0 0.0
    %1430 = vmatprep.subr.mxu0 0.0
    %1431 = vmatpush2.msra.mxu0 0.0
    %1432 = vmatprep.subr.mxu0 0.0
    %1433 = vmatpush2.msra.mxu0 0.0
    %1434 = vmatprep.subr.mxu0 0.0
    %1435 = vmatpush2.msra.mxu0 0.0
    %1436 = vmatprep.subr.mxu0 0.0
    %1437 = vmatpush2.msra.mxu0 0.0
    %1438 = vmatprep.subr.mxu0 0.0
    %1439 = vmatpush2.msra.mxu0 0.0
    %1440 = vmatprep.subr.mxu0 0.0
    %1441 = vmatpush2.msra.mxu0 0.0
    %1442 = vmatprep.subr.mxu0 0.0
    %1443 = vmatpush2.msra.mxu0 0.0
    %1444 = vmatprep.subr.mxu0 0.0
    %1445 = vmatpush2.msra.mxu0 0.0
    %1446 = vmatprep.subr.mxu0 0.0
    %1447 = vmatpush2.msra.mxu0 0.0
    %1448 = vmatprep.subr.mxu0 0.0
    %1449 = vmatpush2.msra.mxu0 0.0
    %1450 = vmatprep.subr.mxu0 0.0
    %1451 = vmatpush2.msra.mxu0 0.0
    %1452 = vmatprep.subr.mxu0 0.0
    %1453 = vmatpush2.msra.mxu0 0.0
    %1454 = vmatprep.subr.mxu0 0.0
    %1455 = vmatpush2.msra.mxu0 0.0
    %1456 = vmatprep.subr.mxu0 0.0
    %1457 = vmatpush2.msra.mxu0 0.0
    %1458 = vmatprep.subr.mxu0 0.0
    %1459 = vmatpush2.msra.mxu0 0.0
    %1460 = vmatprep.mubr.f32.mxu0 0.0
    %1461 = vmatmul.mubr.f32.gmra.mxu0 %v1394
    %v1462 = vpop.f32.mrf.mxu0
    %v1463 = vadd.f32 %v152, %v1462
    %v1464 = vpop.f32.mrf.mxu0
    %1465 = vdwg.mxu0
    %1467 = vrot.lane.b32.xlu0 %v1286, 96
    %v1468 = vpop.permute.xlu0 %1467
    %v1469 = vsel %vm155, %v1468, 0
    %1471 = vmatprep.subr.mxu0 0.0
    %1472 = vmatpush1.msra.mxu0 0.0
    %1473 = vmatprep.subr.mxu0 0.0
    %1474 = vmatpush1.msra.mxu0 0.0
    %1475 = vmatprep.subr.mxu0 0.0
    %1476 = vmatpush1.msra.mxu0 0.0
    %1477 = vmatprep.subr.mxu0 0.0
    %1478 = vmatpush1.msra.mxu0 0.0
    %1479 = vmatprep.subr.mxu0 0.0
    %1480 = vmatpush1.msra.mxu0 0.0
    %1481 = vmatprep.subr.mxu0 0.0
    %1482 = vmatpush1.msra.mxu0 0.0
    %1483 = vmatprep.subr.mxu0 0.0
    %1484 = vmatpush1.msra.mxu0 0.0
    %1485 = vmatprep.subr.mxu0 0.0
    %1486 = vmatpush1.msra.mxu0 0.0
    %1487 = vmatprep.subr.mxu0 0.0
    %1488 = vmatpush1.msra.mxu0 0.0
    %1489 = vmatprep.subr.mxu0 0.0
    %1490 = vmatpush1.msra.mxu0 0.0
    %1491 = vmatprep.subr.mxu0 0.0
    %1492 = vmatpush1.msra.mxu0 0.0
    %1493 = vmatprep.subr.mxu0 0.0
    %1494 = vmatpush1.msra.mxu0 0.0
    %1495 = vmatprep.subr.mxu0 0.0
    %1496 = vmatpush1.msra.mxu0 %v151
    %1497 = vmatprep.subr.mxu0 0.0
    %1498 = vmatpush1.msra.mxu0 %v150
    %1499 = vmatprep.subr.mxu0 0.0
    %1500 = vmatpush1.msra.mxu0 %v149
    %1501 = vmatprep.subr.mxu0 0.0
    %1502 = vmatpush1.msra.mxu0 %v148
    %1503 = vmatprep.subr.mxu0 0.0
    %1504 = vmatpush2.msra.mxu0 0.0
    %1505 = vmatprep.subr.mxu0 0.0
    %1506 = vmatpush2.msra.mxu0 0.0
    %1507 = vmatprep.subr.mxu0 0.0
    %1508 = vmatpush2.msra.mxu0 0.0
    %1509 = vmatprep.subr.mxu0 0.0
    %1510 = vmatpush2.msra.mxu0 0.0
    %1511 = vmatprep.subr.mxu0 0.0
    %1512 = vmatpush2.msra.mxu0 0.0
    %1513 = vmatprep.subr.mxu0 0.0
    %1514 = vmatpush2.msra.mxu0 0.0
    %1515 = vmatprep.subr.mxu0 0.0
    %1516 = vmatpush2.msra.mxu0 0.0
    %1517 = vmatprep.subr.mxu0 0.0
    %1518 = vmatpush2.msra.mxu0 0.0
    %1519 = vmatprep.subr.mxu0 0.0
    %1520 = vmatpush2.msra.mxu0 0.0
    %1521 = vmatprep.subr.mxu0 0.0
    %1522 = vmatpush2.msra.mxu0 0.0
    %1523 = vmatprep.subr.mxu0 0.0
    %1524 = vmatpush2.msra.mxu0 0.0
    %1525 = vmatprep.subr.mxu0 0.0
    %1526 = vmatpush2.msra.mxu0 0.0
    %1527 = vmatprep.subr.mxu0 0.0
    %1528 = vmatpush2.msra.mxu0 0.0
    %1529 = vmatprep.subr.mxu0 0.0
    %1530 = vmatpush2.msra.mxu0 0.0
    %1531 = vmatprep.subr.mxu0 0.0
    %1532 = vmatpush2.msra.mxu0 0.0
    %1533 = vmatprep.subr.mxu0 0.0
    %1534 = vmatpush2.msra.mxu0 0.0
    %1535 = vmatprep.mubr.f32.mxu0 0.0
    %1536 = vmatmul.mubr.f32.gmra.mxu0 %v1469
    %v1537 = vpop.f32.mrf.mxu0
    %v1538 = vadd.f32 0.0, %v1537
    %v1539 = vpop.f32.mrf.mxu0
    %1540 = vdwg.mxu0
    %v1541 = vadd.f32 %v1463, %v1538
    %v1542 = vxor.u32 %v1541, 2147483648
    %v1543 = vmul.f32 %v1542, 1.442695
    %v1544 = vpow.pop %v1543
    %v1545 = vadd.f32 %v1544, 1.0
    %v1546 = vrcp.pop %v1545
    %v1547 = vmul.f32 1.0, %v1546
    %v1548 = vadd.f32 %v1538, %v422
    %1550 = vrot.lane.b32.xlu0 %v1548, 64
    %v1551 = vpop.permute.xlu0 %1550
    %v1553 = vmul.f32 %v1547, %v1551
    %1555 = vrot.lane.b32.xlu0 %v1553, 64
    %v1556 = vpop.permute.xlu0 %1555
    %v1558 = vadd.f32 %v1463, %v1556
    %v1559 = vtanh.pop %v1558
    %v1560 = vsub.f32 1.0, %v1547
    %1562 = vrot.lane.b32.xlu0 %v1559, 96
    %v1563 = vpop.permute.xlu0 %1562
    %v1565 = vmul.f32 %v1560, %v1563
    %v1566 = vmul.f32 %v1547, %v1286
    %v1567 = vadd.f32 %v1565, %v1566
    %1568 = vmatprep.subr.mxu0 0.0
    %1569 = vmatpush1.msra.mxu0 0.0
    %1570 = vmatprep.subr.mxu0 0.0
    %1571 = vmatpush1.msra.mxu0 0.0
    %1572 = vmatprep.subr.mxu0 0.0
    %1573 = vmatpush1.msra.mxu0 0.0
    %1574 = vmatprep.subr.mxu0 0.0
    %1575 = vmatpush1.msra.mxu0 0.0
    %1576 = vmatprep.subr.mxu0 0.0
    %1577 = vmatpush1.msra.mxu0 0.0
    %1578 = vmatprep.subr.mxu0 0.0
    %1579 = vmatpush1.msra.mxu0 0.0
    %1580 = vmatprep.subr.mxu0 0.0
    %1581 = vmatpush1.msra.mxu0 0.0
    %1582 = vmatprep.subr.mxu0 0.0
    %1583 = vmatpush1.msra.mxu0 0.0
    %1584 = vmatprep.subr.mxu0 0.0
    %1585 = vmatpush1.msra.mxu0 0.0
    %1586 = vmatprep.subr.mxu0 0.0
    %1587 = vmatpush1.msra.mxu0 0.0
    %1588 = vmatprep.subr.mxu0 0.0
    %1589 = vmatpush1.msra.mxu0 0.0
    %1590 = vmatprep.subr.mxu0 0.0
    %1591 = vmatpush1.msra.mxu0 0.0
    %1592 = vmatprep.subr.mxu0 0.0
    %1593 = vmatpush1.msra.mxu0 %v143
    %1594 = vmatprep.subr.mxu0 0.0
    %1595 = vmatpush1.msra.mxu0 %v142
    %1596 = vmatprep.subr.mxu0 0.0
    %1597 = vmatpush1.msra.mxu0 %v141
    %1598 = vmatprep.subr.mxu0 0.0
    %1599 = vmatpush1.msra.mxu0 %v140
    %1600 = vmatprep.subr.mxu0 0.0
    %1601 = vmatpush2.msra.mxu0 0.0
    %1602 = vmatprep.subr.mxu0 0.0
    %1603 = vmatpush2.msra.mxu0 0.0
    %1604 = vmatprep.subr.mxu0 0.0
    %1605 = vmatpush2.msra.mxu0 0.0
    %1606 = vmatprep.subr.mxu0 0.0
    %1607 = vmatpush2.msra.mxu0 0.0
    %1608 = vmatprep.subr.mxu0 0.0
    %1609 = vmatpush2.msra.mxu0 0.0
    %1610 = vmatprep.subr.mxu0 0.0
    %1611 = vmatpush2.msra.mxu0 0.0
    %1612 = vmatprep.subr.mxu0 0.0
    %1613 = vmatpush2.msra.mxu0 0.0
    %1614 = vmatprep.subr.mxu0 0.0
    %1615 = vmatpush2.msra.mxu0 0.0
    %1616 = vmatprep.subr.mxu0 0.0
    %1617 = vmatpush2.msra.mxu0 0.0
    %1618 = vmatprep.subr.mxu0 0.0
    %1619 = vmatpush2.msra.mxu0 0.0
    %1620 = vmatprep.subr.mxu0 0.0
    %1621 = vmatpush2.msra.mxu0 0.0
    %1622 = vmatprep.subr.mxu0 0.0
    %1623 = vmatpush2.msra.mxu0 0.0
    %1624 = vmatprep.subr.mxu0 0.0
    %1625 = vmatpush2.msra.mxu0 0.0
    %1626 = vmatprep.subr.mxu0 0.0
    %1627 = vmatpush2.msra.mxu0 0.0
    %1628 = vmatprep.subr.mxu0 0.0
    %1629 = vmatpush2.msra.mxu0 0.0
    %1630 = vmatprep.subr.mxu0 0.0
    %1631 = vmatpush2.msra.mxu0 0.0
    %1632 = vmatprep.mubr.f32.mxu0 0.0
    %1633 = vmatmul.mubr.f32.gmra.mxu0 %v1394
    %v1634 = vpop.f32.mrf.mxu0
    %v1635 = vadd.f32 0.0, %v1634
    %v1636 = vpop.f32.mrf.mxu0
    %1637 = vdwg.mxu0
    %v1639 = vrot.slane %v1635, 3
    %v1641 = vadd.f32 %v137, %v1639
    %v1642 = vxor.u32 %v1641, 2147483648
    %v1643 = vmul.f32 %v1642, 1.442695
    %v1644 = vpow.pop %v1643
    %v1645 = vadd.f32 %v1644, 1.0
    %v1646 = vrcp.pop %v1645
    %v1647 = vmul.f32 1.0, %v1646
    %v1648 = vadd.f32 %v1635, %v242
    %v1650 = vrot.slane %v1648, 3
    %1651 = vrot.lane.b32.xlu0 %v1650, 64
    %v1652 = vpop.permute.xlu0 %1651
    %v1654 = vmul.f32 %v1647, %v1652
    %1656 = vrot.lane.b32.xlu0 %v1654, 64
    %v1657 = vpop.permute.xlu0 %1656
    %v1659 = vadd.f32 %v137, %v1657
    %v1660 = vtanh.pop %v1659
    %v1661 = vsub.f32 1.0, %v1647
    %1663 = vrot.lane.b32.xlu0 %v1660, 96
    %v1664 = vpop.permute.xlu0 %1663
    %v1666 = vmul.f32 %v1661, %v1664
    %v1667 = vrot.slane %v1389, 7
    %v1669 = vmul.f32 %v1647, %v1667
    %v1670 = vadd.f32 %v1666, %v1669
    %v1672 = vrot.slane %v1670, 5
    %1673 = vrot.lane.b32.xlu0 %v1672, 96
    %v1674 = vpop.permute.xlu0 %1673
    %v1675 = vsel %vm155, %v1674, 0
    %1677 = vmatprep.subr.mxu0 0.0
    %1678 = vmatpush1.msra.mxu0 0.0
    %1679 = vmatprep.subr.mxu0 0.0
    %1680 = vmatpush1.msra.mxu0 0.0
    %1681 = vmatprep.subr.mxu0 0.0
    %1682 = vmatpush1.msra.mxu0 0.0
    %1683 = vmatprep.subr.mxu0 0.0
    %1684 = vmatpush1.msra.mxu0 0.0
    %1685 = vmatprep.subr.mxu0 0.0
    %1686 = vmatpush1.msra.mxu0 0.0
    %1687 = vmatprep.subr.mxu0 0.0
    %1688 = vmatpush1.msra.mxu0 0.0
    %1689 = vmatprep.subr.mxu0 0.0
    %1690 = vmatpush1.msra.mxu0 0.0
    %1691 = vmatprep.subr.mxu0 0.0
    %1692 = vmatpush1.msra.mxu0 0.0
    %1693 = vmatprep.subr.mxu0 0.0
    %1694 = vmatpush1.msra.mxu0 0.0
    %1695 = vmatprep.subr.mxu0 0.0
    %1696 = vmatpush1.msra.mxu0 0.0
    %1697 = vmatprep.subr.mxu0 0.0
    %1698 = vmatpush1.msra.mxu0 0.0
    %1699 = vmatprep.subr.mxu0 0.0
    %1700 = vmatpush1.msra.mxu0 0.0
    %1701 = vmatprep.subr.mxu0 0.0
    %1702 = vmatpush1.msra.mxu0 %v147
    %1703 = vmatprep.subr.mxu0 0.0
    %1704 = vmatpush1.msra.mxu0 %v146
    %1705 = vmatprep.subr.mxu0 0.0
    %1706 = vmatpush1.msra.mxu0 %v145
    %1707 = vmatprep.subr.mxu0 0.0
    %1708 = vmatpush1.msra.mxu0 %v144
    %1709 = vmatprep.subr.mxu0 0.0
    %1710 = vmatpush2.msra.mxu0 0.0
    %1711 = vmatprep.subr.mxu0 0.0
    %1712 = vmatpush2.msra.mxu0 0.0
    %1713 = vmatprep.subr.mxu0 0.0
    %1714 = vmatpush2.msra.mxu0 0.0
    %1715 = vmatprep.subr.mxu0 0.0
    %1716 = vmatpush2.msra.mxu0 0.0
    %1717 = vmatprep.subr.mxu0 0.0
    %1718 = vmatpush2.msra.mxu0 0.0
    %1719 = vmatprep.subr.mxu0 0.0
    %1720 = vmatpush2.msra.mxu0 0.0
    %1721 = vmatprep.subr.mxu0 0.0
    %1722 = vmatpush2.msra.mxu0 0.0
    %1723 = vmatprep.subr.mxu0 0.0
    %1724 = vmatpush2.msra.mxu0 0.0
    %1725 = vmatprep.subr.mxu0 0.0
    %1726 = vmatpush2.msra.mxu0 0.0
    %1727 = vmatprep.subr.mxu0 0.0
    %1728 = vmatpush2.msra.mxu0 0.0
    %1729 = vmatprep.subr.mxu0 0.0
    %1730 = vmatpush2.msra.mxu0 0.0
    %1731 = vmatprep.subr.mxu0 0.0
    %1732 = vmatpush2.msra.mxu0 0.0
    %1733 = vmatprep.subr.mxu0 0.0
    %1734 = vmatpush2.msra.mxu0 0.0
    %1735 = vmatprep.subr.mxu0 0.0
    %1736 = vmatpush2.msra.mxu0 0.0
    %1737 = vmatprep.subr.mxu0 0.0
    %1738 = vmatpush2.msra.mxu0 0.0
    %1739 = vmatprep.subr.mxu0 0.0
    %1740 = vmatpush2.msra.mxu0 0.0
    %1741 = vmatprep.mubr.f32.mxu0 0.0
    %1742 = vmatmul.mubr.f32.gmra.mxu0 %v1675
    %v1743 = vpop.f32.mrf.mxu0
    %v1744 = vadd.f32 %v152, %v1743
    %v1745 = vpop.f32.mrf.mxu0
    %1746 = vdwg.mxu0
    %1748 = vrot.lane.b32.xlu0 %v1567, 96
    %v1749 = vpop.permute.xlu0 %1748
    %v1750 = vsel %vm155, %v1749, 0
    %1752 = vmatprep.subr.mxu0 0.0
    %1753 = vmatpush1.msra.mxu0 0.0
    %1754 = vmatprep.subr.mxu0 0.0
    %1755 = vmatpush1.msra.mxu0 0.0
    %1756 = vmatprep.subr.mxu0 0.0
    %1757 = vmatpush1.msra.mxu0 0.0
    %1758 = vmatprep.subr.mxu0 0.0
    %1759 = vmatpush1.msra.mxu0 0.0
    %1760 = vmatprep.subr.mxu0 0.0
    %1761 = vmatpush1.msra.mxu0 0.0
    %1762 = vmatprep.subr.mxu0 0.0
    %1763 = vmatpush1.msra.mxu0 0.0
    %1764 = vmatprep.subr.mxu0 0.0
    %1765 = vmatpush1.msra.mxu0 0.0
    %1766 = vmatprep.subr.mxu0 0.0
    %1767 = vmatpush1.msra.mxu0 0.0
    %1768 = vmatprep.subr.mxu0 0.0
    %1769 = vmatpush1.msra.mxu0 0.0
    %1770 = vmatprep.subr.mxu0 0.0
    %1771 = vmatpush1.msra.mxu0 0.0
    %1772 = vmatprep.subr.mxu0 0.0
    %1773 = vmatpush1.msra.mxu0 0.0
    %1774 = vmatprep.subr.mxu0 0.0
    %1775 = vmatpush1.msra.mxu0 0.0
    %1776 = vmatprep.subr.mxu0 0.0
    %1777 = vmatpush1.msra.mxu0 %v151
    %1778 = vmatprep.subr.mxu0 0.0
    %1779 = vmatpush1.msra.mxu0 %v150
    %1780 = vmatprep.subr.mxu0 0.0
    %1781 = vmatpush1.msra.mxu0 %v149
    %1782 = vmatprep.subr.mxu0 0.0
    %1783 = vmatpush1.msra.mxu0 %v148
    %1784 = vmatprep.subr.mxu0 0.0
    %1785 = vmatpush2.msra.mxu0 0.0
    %1786 = vmatprep.subr.mxu0 0.0
    %1787 = vmatpush2.msra.mxu0 0.0
    %1788 = vmatprep.subr.mxu0 0.0
    %1789 = vmatpush2.msra.mxu0 0.0
    %1790 = vmatprep.subr.mxu0 0.0
    %1791 = vmatpush2.msra.mxu0 0.0
    %1792 = vmatprep.subr.mxu0 0.0
    %1793 = vmatpush2.msra.mxu0 0.0
    %1794 = vmatprep.subr.mxu0 0.0
    %1795 = vmatpush2.msra.mxu0 0.0
    %1796 = vmatprep.subr.mxu0 0.0
    %1797 = vmatpush2.msra.mxu0 0.0
    %1798 = vmatprep.subr.mxu0 0.0
    %1799 = vmatpush2.msra.mxu0 0.0
    %1800 = vmatprep.subr.mxu0 0.0
    %1801 = vmatpush2.msra.mxu0 0.0
    %1802 = vmatprep.subr.mxu0 0.0
    %1803 = vmatpush2.msra.mxu0 0.0
    %1804 = vmatprep.subr.mxu0 0.0
    %1805 = vmatpush2.msra.mxu0 0.0
    %1806 = vmatprep.subr.mxu0 0.0
    %1807 = vmatpush2.msra.mxu0 0.0
    %1808 = vmatprep.subr.mxu0 0.0
    %1809 = vmatpush2.msra.mxu0 0.0
    %1810 = vmatprep.subr.mxu0 0.0
    %1811 = vmatpush2.msra.mxu0 0.0
    %1812 = vmatprep.subr.mxu0 0.0
    %1813 = vmatpush2.msra.mxu0 0.0
    %1814 = vmatprep.subr.mxu0 0.0
    %1815 = vmatpush2.msra.mxu0 0.0
    %1816 = vmatprep.mubr.f32.mxu0 0.0
    %1817 = vmatmul.mubr.f32.gmra.mxu0 %v1750
    %v1818 = vpop.f32.mrf.mxu0
    %v1819 = vadd.f32 0.0, %v1818
    %v1820 = vpop.f32.mrf.mxu0
    %1821 = vdwg.mxu0
    %v1822 = vadd.f32 %v1744, %v1819
    %v1823 = vxor.u32 %v1822, 2147483648
    %v1824 = vmul.f32 %v1823, 1.442695
    %v1825 = vpow.pop %v1824
    %v1826 = vadd.f32 %v1825, 1.0
    %v1827 = vrcp.pop %v1826
    %v1828 = vmul.f32 1.0, %v1827
    %v1829 = vadd.f32 %v1819, %v422
    %1831 = vrot.lane.b32.xlu0 %v1829, 64
    %v1832 = vpop.permute.xlu0 %1831
    %v1834 = vmul.f32 %v1828, %v1832
    %1836 = vrot.lane.b32.xlu0 %v1834, 64
    %v1837 = vpop.permute.xlu0 %1836
    %v1839 = vadd.f32 %v1744, %v1837
    %v1840 = vtanh.pop %v1839
    %v1841 = vsub.f32 1.0, %v1828
    %1843 = vrot.lane.b32.xlu0 %v1840, 96
    %v1844 = vpop.permute.xlu0 %1843
    %v1846 = vmul.f32 %v1841, %v1844
    %v1847 = vmul.f32 %v1828, %v1567
    %v1848 = vadd.f32 %v1846, %v1847
    %1849 = vmatprep.subr.mxu0 0.0
    %1850 = vmatpush1.msra.mxu0 0.0
    %1851 = vmatprep.subr.mxu0 0.0
    %1852 = vmatpush1.msra.mxu0 0.0
    %1853 = vmatprep.subr.mxu0 0.0
    %1854 = vmatpush1.msra.mxu0 0.0
    %1855 = vmatprep.subr.mxu0 0.0
    %1856 = vmatpush1.msra.mxu0 0.0
    %1857 = vmatprep.subr.mxu0 0.0
    %1858 = vmatpush1.msra.mxu0 0.0
    %1859 = vmatprep.subr.mxu0 0.0
    %1860 = vmatpush1.msra.mxu0 0.0
    %1861 = vmatprep.subr.mxu0 0.0
    %1862 = vmatpush1.msra.mxu0 0.0
    %1863 = vmatprep.subr.mxu0 0.0
    %1864 = vmatpush1.msra.mxu0 0.0
    %1865 = vmatprep.subr.mxu0 0.0
    %1866 = vmatpush1.msra.mxu0 0.0
    %1867 = vmatprep.subr.mxu0 0.0
    %1868 = vmatpush1.msra.mxu0 0.0
    %1869 = vmatprep.subr.mxu0 0.0
    %1870 = vmatpush1.msra.mxu0 0.0
    %1871 = vmatprep.subr.mxu0 0.0
    %1872 = vmatpush1.msra.mxu0 0.0
    %1873 = vmatprep.subr.mxu0 0.0
    %1874 = vmatpush1.msra.mxu0 %v143
    %1875 = vmatprep.subr.mxu0 0.0
    %1876 = vmatpush1.msra.mxu0 %v142
    %1877 = vmatprep.subr.mxu0 0.0
    %1878 = vmatpush1.msra.mxu0 %v141
    %1879 = vmatprep.subr.mxu0 0.0
    %1880 = vmatpush1.msra.mxu0 %v140
    %1881 = vmatprep.subr.mxu0 0.0
    %1882 = vmatpush2.msra.mxu0 0.0
    %1883 = vmatprep.subr.mxu0 0.0
    %1884 = vmatpush2.msra.mxu0 0.0
    %1885 = vmatprep.subr.mxu0 0.0
    %1886 = vmatpush2.msra.mxu0 0.0
    %1887 = vmatprep.subr.mxu0 0.0
    %1888 = vmatpush2.msra.mxu0 0.0
    %1889 = vmatprep.subr.mxu0 0.0
    %1890 = vmatpush2.msra.mxu0 0.0
    %1891 = vmatprep.subr.mxu0 0.0
    %1892 = vmatpush2.msra.mxu0 0.0
    %1893 = vmatprep.subr.mxu0 0.0
    %1894 = vmatpush2.msra.mxu0 0.0
    %1895 = vmatprep.subr.mxu0 0.0
    %1896 = vmatpush2.msra.mxu0 0.0
    %1897 = vmatprep.subr.mxu0 0.0
    %1898 = vmatpush2.msra.mxu0 0.0
    %1899 = vmatprep.subr.mxu0 0.0
    %1900 = vmatpush2.msra.mxu0 0.0
    %1901 = vmatprep.subr.mxu0 0.0
    %1902 = vmatpush2.msra.mxu0 0.0
    %1903 = vmatprep.subr.mxu0 0.0
    %1904 = vmatpush2.msra.mxu0 0.0
    %1905 = vmatprep.subr.mxu0 0.0
    %1906 = vmatpush2.msra.mxu0 0.0
    %1907 = vmatprep.subr.mxu0 0.0
    %1908 = vmatpush2.msra.mxu0 0.0
    %1909 = vmatprep.subr.mxu0 0.0
    %1910 = vmatpush2.msra.mxu0 0.0
    %1911 = vmatprep.subr.mxu0 0.0
    %1912 = vmatpush2.msra.mxu0 0.0
    %1913 = vmatprep.mubr.f32.mxu0 0.0
    %1914 = vmatmul.mubr.f32.gmra.mxu0 %v1675
    %v1915 = vpop.f32.mrf.mxu0
    %v1916 = vadd.f32 0.0, %v1915
    %v1917 = vpop.f32.mrf.mxu0
    %1918 = vdwg.mxu0
    %v1920 = vrot.slane %v1916, 2
    %v1922 = vadd.f32 %v137, %v1920
    %v1923 = vxor.u32 %v1922, 2147483648
    %v1924 = vmul.f32 %v1923, 1.442695
    %v1925 = vpow.pop %v1924
    %v1926 = vadd.f32 %v1925, 1.0
    %v1927 = vrcp.pop %v1926
    %v1928 = vmul.f32 1.0, %v1927
    %v1929 = vadd.f32 %v1916, %v242
    %v1931 = vrot.slane %v1929, 2
    %1932 = vrot.lane.b32.xlu0 %v1931, 64
    %v1933 = vpop.permute.xlu0 %1932
    %v1935 = vmul.f32 %v1928, %v1933
    %1937 = vrot.lane.b32.xlu0 %v1935, 64
    %v1938 = vpop.permute.xlu0 %1937
    %v1940 = vadd.f32 %v137, %v1938
    %v1941 = vtanh.pop %v1940
    %v1942 = vsub.f32 1.0, %v1928
    %1944 = vrot.lane.b32.xlu0 %v1941, 96
    %v1945 = vpop.permute.xlu0 %1944
    %v1947 = vmul.f32 %v1942, %v1945
    %v1948 = vrot.slane %v1670, 7
    %v1950 = vmul.f32 %v1928, %v1948
    %v1951 = vadd.f32 %v1947, %v1950
    %v1953 = vrot.slane %v1951, 6
    %1954 = vrot.lane.b32.xlu0 %v1953, 96
    %v1955 = vpop.permute.xlu0 %1954
    %v1956 = vsel %vm155, %v1955, 0
    %1958 = vmatprep.subr.mxu0 0.0
    %1959 = vmatpush1.msra.mxu0 0.0
    %1960 = vmatprep.subr.mxu0 0.0
    %1961 = vmatpush1.msra.mxu0 0.0
    %1962 = vmatprep.subr.mxu0 0.0
    %1963 = vmatpush1.msra.mxu0 0.0
    %1964 = vmatprep.subr.mxu0 0.0
    %1965 = vmatpush1.msra.mxu0 0.0
    %1966 = vmatprep.subr.mxu0 0.0
    %1967 = vmatpush1.msra.mxu0 0.0
    %1968 = vmatprep.subr.mxu0 0.0
    %1969 = vmatpush1.msra.mxu0 0.0
    %1970 = vmatprep.subr.mxu0 0.0
    %1971 = vmatpush1.msra.mxu0 0.0
    %1972 = vmatprep.subr.mxu0 0.0
    %1973 = vmatpush1.msra.mxu0 0.0
    %1974 = vmatprep.subr.mxu0 0.0
    %1975 = vmatpush1.msra.mxu0 0.0
    %1976 = vmatprep.subr.mxu0 0.0
    %1977 = vmatpush1.msra.mxu0 0.0
    %1978 = vmatprep.subr.mxu0 0.0
    %1979 = vmatpush1.msra.mxu0 0.0
    %1980 = vmatprep.subr.mxu0 0.0
    %1981 = vmatpush1.msra.mxu0 0.0
    %1982 = vmatprep.subr.mxu0 0.0
    %1983 = vmatpush1.msra.mxu0 %v147
    %1984 = vmatprep.subr.mxu0 0.0
    %1985 = vmatpush1.msra.mxu0 %v146
    %1986 = vmatprep.subr.mxu0 0.0
    %1987 = vmatpush1.msra.mxu0 %v145
    %1988 = vmatprep.subr.mxu0 0.0
    %1989 = vmatpush1.msra.mxu0 %v144
    %1990 = vmatprep.subr.mxu0 0.0
    %1991 = vmatpush2.msra.mxu0 0.0
    %1992 = vmatprep.subr.mxu0 0.0
    %1993 = vmatpush2.msra.mxu0 0.0
    %1994 = vmatprep.subr.mxu0 0.0
    %1995 = vmatpush2.msra.mxu0 0.0
    %1996 = vmatprep.subr.mxu0 0.0
    %1997 = vmatpush2.msra.mxu0 0.0
    %1998 = vmatprep.subr.mxu0 0.0
    %1999 = vmatpush2.msra.mxu0 0.0
    %2000 = vmatprep.subr.mxu0 0.0
    %2001 = vmatpush2.msra.mxu0 0.0
    %2002 = vmatprep.subr.mxu0 0.0
    %2003 = vmatpush2.msra.mxu0 0.0
    %2004 = vmatprep.subr.mxu0 0.0
    %2005 = vmatpush2.msra.mxu0 0.0
    %2006 = vmatprep.subr.mxu0 0.0
    %2007 = vmatpush2.msra.mxu0 0.0
    %2008 = vmatprep.subr.mxu0 0.0
    %2009 = vmatpush2.msra.mxu0 0.0
    %2010 = vmatprep.subr.mxu0 0.0
    %2011 = vmatpush2.msra.mxu0 0.0
    %2012 = vmatprep.subr.mxu0 0.0
    %2013 = vmatpush2.msra.mxu0 0.0
    %2014 = vmatprep.subr.mxu0 0.0
    %2015 = vmatpush2.msra.mxu0 0.0
    %2016 = vmatprep.subr.mxu0 0.0
    %2017 = vmatpush2.msra.mxu0 0.0
    %2018 = vmatprep.subr.mxu0 0.0
    %2019 = vmatpush2.msra.mxu0 0.0
    %2020 = vmatprep.subr.mxu0 0.0
    %2021 = vmatpush2.msra.mxu0 0.0
    %2022 = vmatprep.mubr.f32.mxu0 0.0
    %2023 = vmatmul.mubr.f32.gmra.mxu0 %v1956
    %v2024 = vpop.f32.mrf.mxu0
    %v2025 = vadd.f32 %v152, %v2024
    %v2026 = vpop.f32.mrf.mxu0
    %2027 = vdwg.mxu0
    %2029 = vrot.lane.b32.xlu0 %v1848, 96
    %v2030 = vpop.permute.xlu0 %2029
    %v2031 = vsel %vm155, %v2030, 0
    %2033 = vmatprep.subr.mxu0 0.0
    %2034 = vmatpush1.msra.mxu0 0.0
    %2035 = vmatprep.subr.mxu0 0.0
    %2036 = vmatpush1.msra.mxu0 0.0
    %2037 = vmatprep.subr.mxu0 0.0
    %2038 = vmatpush1.msra.mxu0 0.0
    %2039 = vmatprep.subr.mxu0 0.0
    %2040 = vmatpush1.msra.mxu0 0.0
    %2041 = vmatprep.subr.mxu0 0.0
    %2042 = vmatpush1.msra.mxu0 0.0
    %2043 = vmatprep.subr.mxu0 0.0
    %2044 = vmatpush1.msra.mxu0 0.0
    %2045 = vmatprep.subr.mxu0 0.0
    %2046 = vmatpush1.msra.mxu0 0.0
    %2047 = vmatprep.subr.mxu0 0.0
    %2048 = vmatpush1.msra.mxu0 0.0
    %2049 = vmatprep.subr.mxu0 0.0
    %2050 = vmatpush1.msra.mxu0 0.0
    %2051 = vmatprep.subr.mxu0 0.0
    %2052 = vmatpush1.msra.mxu0 0.0
    %2053 = vmatprep.subr.mxu0 0.0
    %2054 = vmatpush1.msra.mxu0 0.0
    %2055 = vmatprep.subr.mxu0 0.0
    %2056 = vmatpush1.msra.mxu0 0.0
    %2057 = vmatprep.subr.mxu0 0.0
    %2058 = vmatpush1.msra.mxu0 %v151
    %2059 = vmatprep.subr.mxu0 0.0
    %2060 = vmatpush1.msra.mxu0 %v150
    %2061 = vmatprep.subr.mxu0 0.0
    %2062 = vmatpush1.msra.mxu0 %v149
    %2063 = vmatprep.subr.mxu0 0.0
    %2064 = vmatpush1.msra.mxu0 %v148
    %2065 = vmatprep.subr.mxu0 0.0
    %2066 = vmatpush2.msra.mxu0 0.0
    %2067 = vmatprep.subr.mxu0 0.0
    %2068 = vmatpush2.msra.mxu0 0.0
    %2069 = vmatprep.subr.mxu0 0.0
    %2070 = vmatpush2.msra.mxu0 0.0
    %2071 = vmatprep.subr.mxu0 0.0
    %2072 = vmatpush2.msra.mxu0 0.0
    %2073 = vmatprep.subr.mxu0 0.0
    %2074 = vmatpush2.msra.mxu0 0.0
    %2075 = vmatprep.subr.mxu0 0.0
    %2076 = vmatpush2.msra.mxu0 0.0
    %2077 = vmatprep.subr.mxu0 0.0
    %2078 = vmatpush2.msra.mxu0 0.0
    %2079 = vmatprep.subr.mxu0 0.0
    %2080 = vmatpush2.msra.mxu0 0.0
    %2081 = vmatprep.subr.mxu0 0.0
    %2082 = vmatpush2.msra.mxu0 0.0
    %2083 = vmatprep.subr.mxu0 0.0
    %2084 = vmatpush2.msra.mxu0 0.0
    %2085 = vmatprep.subr.mxu0 0.0
    %2086 = vmatpush2.msra.mxu0 0.0
    %2087 = vmatprep.subr.mxu0 0.0
    %2088 = vmatpush2.msra.mxu0 0.0
    %2089 = vmatprep.subr.mxu0 0.0
    %2090 = vmatpush2.msra.mxu0 0.0
    %2091 = vmatprep.subr.mxu0 0.0
    %2092 = vmatpush2.msra.mxu0 0.0
    %2093 = vmatprep.subr.mxu0 0.0
    %2094 = vmatpush2.msra.mxu0 0.0
    %2095 = vmatprep.subr.mxu0 0.0
    %2096 = vmatpush2.msra.mxu0 0.0
    %2097 = vmatprep.mubr.f32.mxu0 0.0
    %2098 = vmatmul.mubr.f32.gmra.mxu0 %v2031
    %v2099 = vpop.f32.mrf.mxu0
    %v2100 = vadd.f32 0.0, %v2099
    %v2101 = vpop.f32.mrf.mxu0
    %2102 = vdwg.mxu0
    %v2103 = vadd.f32 %v2025, %v2100
    %v2104 = vxor.u32 %v2103, 2147483648
    %v2105 = vmul.f32 %v2104, 1.442695
    %v2106 = vpow.pop %v2105
    %v2107 = vadd.f32 %v2106, 1.0
    %v2108 = vrcp.pop %v2107
    %v2109 = vmul.f32 1.0, %v2108
    %v2110 = vadd.f32 %v2100, %v422
    %2112 = vrot.lane.b32.xlu0 %v2110, 64
    %v2113 = vpop.permute.xlu0 %2112
    %v2115 = vmul.f32 %v2109, %v2113
    %2117 = vrot.lane.b32.xlu0 %v2115, 64
    %v2118 = vpop.permute.xlu0 %2117
    %v2120 = vadd.f32 %v2025, %v2118
    %v2121 = vtanh.pop %v2120
    %v2122 = vsub.f32 1.0, %v2109
    %2124 = vrot.lane.b32.xlu0 %v2121, 96
    %v2125 = vpop.permute.xlu0 %2124
    %v2127 = vmul.f32 %v2122, %v2125
    %v2128 = vmul.f32 %v2109, %v1848
    %v2129 = vadd.f32 %v2127, %v2128
    %2130 = vmatprep.subr.mxu0 0.0
    %2131 = vmatpush1.msra.mxu0 0.0
    %2132 = vmatprep.subr.mxu0 0.0
    %2133 = vmatpush1.msra.mxu0 0.0
    %2134 = vmatprep.subr.mxu0 0.0
    %2135 = vmatpush1.msra.mxu0 0.0
    %2136 = vmatprep.subr.mxu0 0.0
    %2137 = vmatpush1.msra.mxu0 0.0
    %2138 = vmatprep.subr.mxu0 0.0
    %2139 = vmatpush1.msra.mxu0 0.0
    %2140 = vmatprep.subr.mxu0 0.0
    %2141 = vmatpush1.msra.mxu0 0.0
    %2142 = vmatprep.subr.mxu0 0.0
    %2143 = vmatpush1.msra.mxu0 0.0
    %2144 = vmatprep.subr.mxu0 0.0
    %2145 = vmatpush1.msra.mxu0 0.0
    %2146 = vmatprep.subr.mxu0 0.0
    %2147 = vmatpush1.msra.mxu0 0.0
    %2148 = vmatprep.subr.mxu0 0.0
    %2149 = vmatpush1.msra.mxu0 0.0
    %2150 = vmatprep.subr.mxu0 0.0
    %2151 = vmatpush1.msra.mxu0 0.0
    %2152 = vmatprep.subr.mxu0 0.0
    %2153 = vmatpush1.msra.mxu0 0.0
    %2154 = vmatprep.subr.mxu0 0.0
    %2155 = vmatpush1.msra.mxu0 %v143
    %2156 = vmatprep.subr.mxu0 0.0
    %2157 = vmatpush1.msra.mxu0 %v142
    %2158 = vmatprep.subr.mxu0 0.0
    %2159 = vmatpush1.msra.mxu0 %v141
    %2160 = vmatprep.subr.mxu0 0.0
    %2161 = vmatpush1.msra.mxu0 %v140
    %2162 = vmatprep.subr.mxu0 0.0
    %2163 = vmatpush2.msra.mxu0 0.0
    %2164 = vmatprep.subr.mxu0 0.0
    %2165 = vmatpush2.msra.mxu0 0.0
    %2166 = vmatprep.subr.mxu0 0.0
    %2167 = vmatpush2.msra.mxu0 0.0
    %2168 = vmatprep.subr.mxu0 0.0
    %2169 = vmatpush2.msra.mxu0 0.0
    %2170 = vmatprep.subr.mxu0 0.0
    %2171 = vmatpush2.msra.mxu0 0.0
    %2172 = vmatprep.subr.mxu0 0.0
    %2173 = vmatpush2.msra.mxu0 0.0
    %2174 = vmatprep.subr.mxu0 0.0
    %2175 = vmatpush2.msra.mxu0 0.0
    %2176 = vmatprep.subr.mxu0 0.0
    %2177 = vmatpush2.msra.mxu0 0.0
    %2178 = vmatprep.subr.mxu0 0.0
    %2179 = vmatpush2.msra.mxu0 0.0
    %2180 = vmatprep.subr.mxu0 0.0
    %2181 = vmatpush2.msra.mxu0 0.0
    %2182 = vmatprep.subr.mxu0 0.0
    %2183 = vmatpush2.msra.mxu0 0.0
    %2184 = vmatprep.subr.mxu0 0.0
    %2185 = vmatpush2.msra.mxu0 0.0
    %2186 = vmatprep.subr.mxu0 0.0
    %2187 = vmatpush2.msra.mxu0 0.0
    %2188 = vmatprep.subr.mxu0 0.0
    %2189 = vmatpush2.msra.mxu0 0.0
    %2190 = vmatprep.subr.mxu0 0.0
    %2191 = vmatpush2.msra.mxu0 0.0
    %2192 = vmatprep.subr.mxu0 0.0
    %2193 = vmatpush2.msra.mxu0 0.0
    %2194 = vmatprep.mubr.f32.mxu0 0.0
    %2195 = vmatmul.mubr.f32.gmra.mxu0 %v1956
    %v2196 = vpop.f32.mrf.mxu0
    %v2197 = vadd.f32 0.0, %v2196
    %v2198 = vpop.f32.mrf.mxu0
    %2199 = vdwg.mxu0
    %v2201 = vrot.slane %v2197, 1
    %v2203 = vadd.f32 %v137, %v2201
    %v2204 = vxor.u32 %v2203, 2147483648
    %v2205 = vmul.f32 %v2204, 1.442695
    %v2206 = vpow.pop %v2205
    %v2207 = vadd.f32 %v2206, 1.0
    %v2208 = vrcp.pop %v2207
    %v2209 = vmul.f32 1.0, %v2208
    %v2210 = vadd.f32 %v2197, %v242
    %v2212 = vrot.slane %v2210, 1
    %2213 = vrot.lane.b32.xlu0 %v2212, 64
    %v2214 = vpop.permute.xlu0 %2213
    %v2216 = vmul.f32 %v2209, %v2214
    %2218 = vrot.lane.b32.xlu0 %v2216, 64
    %v2219 = vpop.permute.xlu0 %2218
    %v2221 = vadd.f32 %v137, %v2219
    %v2222 = vtanh.pop %v2221
    %v2223 = vsub.f32 1.0, %v2209
    %2225 = vrot.lane.b32.xlu0 %v2222, 96
    %v2226 = vpop.permute.xlu0 %2225
    %v2228 = vmul.f32 %v2223, %v2226
    %v2229 = vrot.slane %v1951, 7
    %v2231 = vmul.f32 %v2209, %v2229
    %v2232 = vadd.f32 %v2228, %v2231
    %v2234 = vrot.slane %v2232, 7
    %2235 = vrot.lane.b32.xlu0 %v2234, 96
    %v2236 = vpop.permute.xlu0 %2235
    %v2237 = vsel %vm155, %v2236, 0
    %2239 = vmatprep.subr.mxu0 0.0
    %2240 = vmatpush1.msra.mxu0 0.0
    %2241 = vmatprep.subr.mxu0 0.0
    %2242 = vmatpush1.msra.mxu0 0.0
    %2243 = vmatprep.subr.mxu0 0.0
    %2244 = vmatpush1.msra.mxu0 0.0
    %2245 = vmatprep.subr.mxu0 0.0
    %2246 = vmatpush1.msra.mxu0 0.0
    %2247 = vmatprep.subr.mxu0 0.0
    %2248 = vmatpush1.msra.mxu0 0.0
    %2249 = vmatprep.subr.mxu0 0.0
    %2250 = vmatpush1.msra.mxu0 0.0
    %2251 = vmatprep.subr.mxu0 0.0
    %2252 = vmatpush1.msra.mxu0 0.0
    %2253 = vmatprep.subr.mxu0 0.0
    %2254 = vmatpush1.msra.mxu0 0.0
    %2255 = vmatprep.subr.mxu0 0.0
    %2256 = vmatpush1.msra.mxu0 0.0
    %2257 = vmatprep.subr.mxu0 0.0
    %2258 = vmatpush1.msra.mxu0 0.0
    %2259 = vmatprep.subr.mxu0 0.0
    %2260 = vmatpush1.msra.mxu0 0.0
    %2261 = vmatprep.subr.mxu0 0.0
    %2262 = vmatpush1.msra.mxu0 0.0
    %2263 = vmatprep.subr.mxu0 0.0
    %2264 = vmatpush1.msra.mxu0 %v147
    %2265 = vmatprep.subr.mxu0 0.0
    %2266 = vmatpush1.msra.mxu0 %v146
    %2267 = vmatprep.subr.mxu0 0.0
    %2268 = vmatpush1.msra.mxu0 %v145
    %2269 = vmatprep.subr.mxu0 0.0
    %2270 = vmatpush1.msra.mxu0 %v144
    %2271 = vmatprep.subr.mxu0 0.0
    %2272 = vmatpush2.msra.mxu0 0.0
    %2273 = vmatprep.subr.mxu0 0.0
    %2274 = vmatpush2.msra.mxu0 0.0
    %2275 = vmatprep.subr.mxu0 0.0
    %2276 = vmatpush2.msra.mxu0 0.0
    %2277 = vmatprep.subr.mxu0 0.0
    %2278 = vmatpush2.msra.mxu0 0.0
    %2279 = vmatprep.subr.mxu0 0.0
    %2280 = vmatpush2.msra.mxu0 0.0
    %2281 = vmatprep.subr.mxu0 0.0
    %2282 = vmatpush2.msra.mxu0 0.0
    %2283 = vmatprep.subr.mxu0 0.0
    %2284 = vmatpush2.msra.mxu0 0.0
    %2285 = vmatprep.subr.mxu0 0.0
    %2286 = vmatpush2.msra.mxu0 0.0
    %2287 = vmatprep.subr.mxu0 0.0
    %2288 = vmatpush2.msra.mxu0 0.0
    %2289 = vmatprep.subr.mxu0 0.0
    %2290 = vmatpush2.msra.mxu0 0.0
    %2291 = vmatprep.subr.mxu0 0.0
    %2292 = vmatpush2.msra.mxu0 0.0
    %2293 = vmatprep.subr.mxu0 0.0
    %2294 = vmatpush2.msra.mxu0 0.0
    %2295 = vmatprep.subr.mxu0 0.0
    %2296 = vmatpush2.msra.mxu0 0.0
    %2297 = vmatprep.subr.mxu0 0.0
    %2298 = vmatpush2.msra.mxu0 0.0
    %2299 = vmatprep.subr.mxu0 0.0
    %2300 = vmatpush2.msra.mxu0 0.0
    %2301 = vmatprep.subr.mxu0 0.0
    %2302 = vmatpush2.msra.mxu0 0.0
    %2303 = vmatprep.mubr.f32.mxu0 0.0
    %2304 = vmatmul.mubr.f32.gmra.mxu0 %v2237
    %v2305 = vpop.f32.mrf.mxu0
    %v2306 = vadd.f32 %v152, %v2305
    %v2307 = vpop.f32.mrf.mxu0
    %2308 = vdwg.mxu0
    %2310 = vrot.lane.b32.xlu0 %v2129, 96
    %v2311 = vpop.permute.xlu0 %2310
    %v2312 = vsel %vm155, %v2311, 0
    %2314 = vmatprep.subr.mxu0 0.0
    %2315 = vmatpush1.msra.mxu0 0.0
    %2316 = vmatprep.subr.mxu0 0.0
    %2317 = vmatpush1.msra.mxu0 0.0
    %2318 = vmatprep.subr.mxu0 0.0
    %2319 = vmatpush1.msra.mxu0 0.0
    %2320 = vmatprep.subr.mxu0 0.0
    %2321 = vmatpush1.msra.mxu0 0.0
    %2322 = vmatprep.subr.mxu0 0.0
    %2323 = vmatpush1.msra.mxu0 0.0
    %2324 = vmatprep.subr.mxu0 0.0
    %2325 = vmatpush1.msra.mxu0 0.0
    %2326 = vmatprep.subr.mxu0 0.0
    %2327 = vmatpush1.msra.mxu0 0.0
    %2328 = vmatprep.subr.mxu0 0.0
    %2329 = vmatpush1.msra.mxu0 0.0
    %2330 = vmatprep.subr.mxu0 0.0
    %2331 = vmatpush1.msra.mxu0 0.0
    %2332 = vmatprep.subr.mxu0 0.0
    %2333 = vmatpush1.msra.mxu0 0.0
    %2334 = vmatprep.subr.mxu0 0.0
    %2335 = vmatpush1.msra.mxu0 0.0
    %2336 = vmatprep.subr.mxu0 0.0
    %2337 = vmatpush1.msra.mxu0 0.0
    %2338 = vmatprep.subr.mxu0 0.0
    %2339 = vmatpush1.msra.mxu0 %v151
    %2340 = vmatprep.subr.mxu0 0.0
    %2341 = vmatpush1.msra.mxu0 %v150
    %2342 = vmatprep.subr.mxu0 0.0
    %2343 = vmatpush1.msra.mxu0 %v149
    %2344 = vmatprep.subr.mxu0 0.0
    %2345 = vmatpush1.msra.mxu0 %v148
    %2346 = vmatprep.subr.mxu0 0.0
    %2347 = vmatpush2.msra.mxu0 0.0
    %2348 = vmatprep.subr.mxu0 0.0
    %2349 = vmatpush2.msra.mxu0 0.0
    %2350 = vmatprep.subr.mxu0 0.0
    %2351 = vmatpush2.msra.mxu0 0.0
    %2352 = vmatprep.subr.mxu0 0.0
    %2353 = vmatpush2.msra.mxu0 0.0
    %2354 = vmatprep.subr.mxu0 0.0
    %2355 = vmatpush2.msra.mxu0 0.0
    %2356 = vmatprep.subr.mxu0 0.0
    %2357 = vmatpush2.msra.mxu0 0.0
    %2358 = vmatprep.subr.mxu0 0.0
    %2359 = vmatpush2.msra.mxu0 0.0
    %2360 = vmatprep.subr.mxu0 0.0
    %2361 = vmatpush2.msra.mxu0 0.0
    %2362 = vmatprep.subr.mxu0 0.0
    %2363 = vmatpush2.msra.mxu0 0.0
    %2364 = vmatprep.subr.mxu0 0.0
    %2365 = vmatpush2.msra.mxu0 0.0
    %2366 = vmatprep.subr.mxu0 0.0
    %2367 = vmatpush2.msra.mxu0 0.0
    %2368 = vmatprep.subr.mxu0 0.0
    %2369 = vmatpush2.msra.mxu0 0.0
    %2370 = vmatprep.subr.mxu0 0.0
    %2371 = vmatpush2.msra.mxu0 0.0
    %2372 = vmatprep.subr.mxu0 0.0
    %2373 = vmatpush2.msra.mxu0 0.0
    %2374 = vmatprep.subr.mxu0 0.0
    %2375 = vmatpush2.msra.mxu0 0.0
    %2376 = vmatprep.subr.mxu0 0.0
    %2377 = vmatpush2.msra.mxu0 0.0
    %2378 = vmatprep.mubr.f32.mxu0 0.0
    %2379 = vmatmul.mubr.f32.gmra.mxu0 %v2312
    %v2380 = vpop.f32.mrf.mxu0
    %v2381 = vadd.f32 0.0, %v2380
    %v2382 = vpop.f32.mrf.mxu0
    %2383 = vdwg.mxu0
    %v2384 = vadd.f32 %v2306, %v2381
    %v2385 = vxor.u32 %v2384, 2147483648
    %v2386 = vmul.f32 %v2385, 1.442695
    %v2387 = vpow.pop %v2386
    %v2388 = vadd.f32 %v2387, 1.0
    %v2389 = vrcp.pop %v2388
    %v2390 = vmul.f32 1.0, %v2389
    %v2391 = vadd.f32 %v2381, %v422
    %2393 = vrot.lane.b32.xlu0 %v2391, 64
    %v2394 = vpop.permute.xlu0 %2393
    %v2396 = vmul.f32 %v2390, %v2394
    %2398 = vrot.lane.b32.xlu0 %v2396, 64
    %v2399 = vpop.permute.xlu0 %2398
    %v2401 = vadd.f32 %v2306, %v2399
    %v2402 = vtanh.pop %v2401
    %v2403 = vsub.f32 1.0, %v2390
    %2405 = vrot.lane.b32.xlu0 %v2402, 96
    %v2406 = vpop.permute.xlu0 %2405
    %v2408 = vmul.f32 %v2403, %v2406
    %v2409 = vmul.f32 %v2390, %v2129
    %v2410 = vadd.f32 %v2408, %v2409
    %v2411 = vrot.slane %v724, 7
    %v2413 = vrot.slane %v1005, 6
    %v2415 = vrot.slane %v1286, 5
    %v2417 = vrot.slane %v1567, 4
    %v2419 = vrot.slane %v1848, 3
    %v2421 = vrot.slane %v2129, 2
    %v2424 = vrot.slane %v2410, 1
    %vm2426 = vcmask 1040384
    %v2427 = vsel %vm2426, %v443, %v2411
    %vm2428 = vcmask 1041408
    %v2429 = vsel %vm2428, %v2427, %v2413
    %vm2430 = vcmask 1042432
    %v2431 = vsel %vm2430, %v2429, %v2415
    %v2432 = vsel %vm66, %v2431, %v2417
    %vm2433 = vcmask 1044480
    %v2434 = vsel %vm2433, %v2432, %v2419
    %vm2435 = vcmask 1045504
    %v2436 = vsel %vm2435, %v2434, %v2421
    %vm2437 = vcmask 1046528
    %v2438 = vsel %vm2437, %v2436, %v2424
    %v2439 = vld [vmem:[%s9] sm:$0xff]
    %v2440 = vld [vmem:[%s9 + $0x8] sm:$0xff]
    %v2441 = vld [vmem:[%s9 + $0x10] sm:$0xff]
    %v2442 = vld [vmem:[%s9 + $0x18] sm:$0xff]
    %v2443 = vld [vmem:[%s10] sm:$0x1]
    %v2445 = vlaneseq
    %v2446 = vshrl.u32 %v2445, 7
    %v2447 = vsub.s32 0, %v2446
    %v2448 = vrot.slane %v2443, %v2447
    %2451 = vrot.lane.b32.xlu0 %v2438, 96
    %v2452 = vpop.permute.xlu0 %2451
    %v2453 = vsel %vm155, %v2452, 0
    %2455 = vmatprep.subr.mxu0 0.0
    %2456 = vmatpush1.msra.mxu0 0.0
    %2457 = vmatprep.subr.mxu0 0.0
    %2458 = vmatpush1.msra.mxu0 0.0
    %2459 = vmatprep.subr.mxu0 0.0
    %2460 = vmatpush1.msra.mxu0 0.0
    %2461 = vmatprep.subr.mxu0 0.0
    %2462 = vmatpush1.msra.mxu0 0.0
    %2463 = vmatprep.subr.mxu0 0.0
    %2464 = vmatpush1.msra.mxu0 0.0
    %2465 = vmatprep.subr.mxu0 0.0
    %2466 = vmatpush1.msra.mxu0 0.0
    %2467 = vmatprep.subr.mxu0 0.0
    %2468 = vmatpush1.msra.mxu0 0.0
    %2469 = vmatprep.subr.mxu0 0.0
    %2470 = vmatpush1.msra.mxu0 0.0
    %2471 = vmatprep.subr.mxu0 0.0
    %2472 = vmatpush1.msra.mxu0 0.0
    %2473 = vmatprep.subr.mxu0 0.0
    %2474 = vmatpush1.msra.mxu0 0.0
    %2475 = vmatprep.subr.mxu0 0.0
    %2476 = vmatpush1.msra.mxu0 0.0
    %2477 = vmatprep.subr.mxu0 0.0
    %2478 = vmatpush1.msra.mxu0 0.0
    %2479 = vmatprep.subr.mxu0 0.0
    %2480 = vmatpush1.msra.mxu0 %v2442
    %2481 = vmatprep.subr.mxu0 0.0
    %2482 = vmatpush1.msra.mxu0 %v2441
    %2483 = vmatprep.subr.mxu0 0.0
    %2484 = vmatpush1.msra.mxu0 %v2440
    %2485 = vmatprep.subr.mxu0 0.0
    %2486 = vmatpush1.msra.mxu0 %v2439
    %2487 = vmatprep.subr.mxu0 0.0
    %2488 = vmatpush2.msra.mxu0 0.0
    %2489 = vmatprep.subr.mxu0 0.0
    %2490 = vmatpush2.msra.mxu0 0.0
    %2491 = vmatprep.subr.mxu0 0.0
    %2492 = vmatpush2.msra.mxu0 0.0
    %2493 = vmatprep.subr.mxu0 0.0
    %2494 = vmatpush2.msra.mxu0 0.0
    %2495 = vmatprep.subr.mxu0 0.0
    %2496 = vmatpush2.msra.mxu0 0.0
    %2497 = vmatprep.subr.mxu0 0.0
    %2498 = vmatpush2.msra.mxu0 0.0
    %2499 = vmatprep.subr.mxu0 0.0
    %2500 = vmatpush2.msra.mxu0 0.0
    %2501 = vmatprep.subr.mxu0 0.0
    %2502 = vmatpush2.msra.mxu0 0.0
    %2503 = vmatprep.subr.mxu0 0.0
    %2504 = vmatpush2.msra.mxu0 0.0
    %2505 = vmatprep.subr.mxu0 0.0
    %2506 = vmatpush2.msra.mxu0 0.0
    %2507 = vmatprep.subr.mxu0 0.0
    %2508 = vmatpush2.msra.mxu0 0.0
    %2509 = vmatprep.subr.mxu0 0.0
    %2510 = vmatpush2.msra.mxu0 0.0
    %2511 = vmatprep.subr.mxu0 0.0
    %2512 = vmatpush2.msra.mxu0 0.0
    %2513 = vmatprep.subr.mxu0 0.0
    %2514 = vmatpush2.msra.mxu0 0.0
    %2515 = vmatprep.subr.mxu0 0.0
    %2516 = vmatpush2.msra.mxu0 0.0
    %2517 = vmatprep.subr.mxu0 0.0
    %2518 = vmatpush2.msra.mxu0 0.0
    %2519 = vmatprep.mubr.f32.mxu0 0.0
    %2520 = vmatmul.mubr.f32.gmra.mxu0 %v2453
    %v2521 = vpop.f32.mrf.mxu0
    %v2522 = vadd.f32 %v2448, %v2521
    %v2523 = vpop.f32.mrf.mxu0
    %2524 = vdwg.mxu0
    %vm2525 = vcmask 48128
    %2526 = vst.msk [vmem:[#allocation5] sm:$0xff] %vm2525, %v2522
    // Predicated region
    $region50: #{gru_forward.1} parent=1 // pred_check
      _
    $region51: #{gru_forward.1} parent=1 // pred_check_branch
      %2528 = sbr.rel (0) target = $region53
    $region52: #{gru_forward.1} parent=1 // pred_region
      %s2530 = ssub.s32 128, 128
      %2531 = vsyncadd [#allocation4], %s2530
      %s2533 = sshll.u32 [#allocation5], 4
      %s2534 = int_to_ptr.vmem [resolvable:$true] %s2533
      %2536 = dma.vmem_to_hbm [thread:$0]  %s2534, 128, %s11, [#allocation4]
    $region53: #{gru_forward.1} parent=1 // pred_fallthru
      _
    // Predicated region
    $region54: #{gru_forward.1} parent=1 // pred_check
      _
    $region55: #{gru_forward.1} parent=1 // pred_check_branch
      %2538 = sbr.rel (0) target = $region57
    $region56: #{gru_forward.1} parent=1 // pred_region
      %2539 = dma.done [#allocation4], 128
    $region57: #{gru_forward.1} parent=1 // pred_fallthru
      _
    %2540 = vsyncpa [#allocation3], 1
    %2541 = vsyncpa [#allocation4], 1

</llo_original>
